<compile_context>
chip_gen: v7x
topology: tpu7x:2x2x1
jax: 0.10.0
libtpu: 0.0.40
codegen_flags: <defaults>
</compile_context>

<pallas_src>
import math
import functools

import jax
import jax.numpy as jnp
from jax import lax
from jax.experimental import pallas as pl
from jax.experimental.pallas import tpu as pltpu


# -----------------------------------------------------------------------------
# Fused kernel: per-head projections + flash (online-softmax) attention + fc_out
# grid = (batch, q_tiles, k_tiles); K axis is the innermost reduction axis.
# -----------------------------------------------------------------------------
def _flash_attention_kernel(bias_ref, q_ref, k_ref, v_ref,
                            wq_ref, wk_ref, wv_ref, wfc_ref, bfc_ref,
                            out_ref,
                            qp_scr, m_scr, l_scr, acc_scr, *, scale):
    # block shapes:
    #   q_ref    : (1, TQ, H, D) f32      k_ref/v_ref : (1, TK, H, D) f32
    #   bias_ref : (1, 1, TQ, TK) bf16    wq/wk/wv    : (D, D) bf16
    #   wfc_ref  : (H, D, E) bf16         bfc_ref     : (1, E) f32
    #   out_ref  : (1, TQ, E) f32
    # scratch (persists across the K grid axis):
    #   qp_scr   : (H, TQ, D) bf16        m_scr/l_scr : (H, TQ, 1) f32
    #   acc_scr  : (H, TQ, D) f32
    H = q_ref.shape[2]
    ki = pl.program_id(2)

    @pl.when(ki == 0)
    def _init():
        m_scr[...] = jnp.full(m_scr.shape, -jnp.inf, dtype=m_scr.dtype)
        l_scr[...] = jnp.zeros(l_scr.shape, dtype=l_scr.dtype)
        acc_scr[...] = jnp.zeros(acc_scr.shape, dtype=acc_scr.dtype)
        # Project + pre-scale Q once per Q tile; reuse for every K tile.
        for h in range(H):
            q_h = q_ref[0, :, h, :].astype(jnp.bfloat16)            # (TQ, D)
            qp = jnp.dot(q_h, wq_ref[...],
                         preferred_element_type=jnp.float32)
            qp_scr[h] = (qp * jnp.float32(scale)).astype(jnp.bfloat16)

    # Additive mask bias for this (TQ, TK) tile (0 where kept, -1e20 where masked).
    bias = bias_ref[0, 0].astype(jnp.float32)                        # (TQ, TK)

    for h in range(H):
        # Shared per-head K/V projections for this K tile (bf16 MXU, f32 acc).
        k_h = k_ref[0, :, h, :].astype(jnp.bfloat16)                 # (TK, D)
        v_h = v_ref[0, :, h, :].astype(jnp.bfloat16)
        kp = jnp.dot(k_h, wk_ref[...],
                     preferred_element_type=jnp.float32).astype(jnp.bfloat16)
        vp = jnp.dot(v_h, wv_ref[...],
                     preferred_element_type=jnp.float32).astype(jnp.bfloat16)

        # s[q, k] = sum_d qp[q, d] * kp[k, d]  (no transposed VMEM copy)
        s = lax.dot_general(qp_scr[h], kp, (((1,), (1,)), ((), ())),
                            preferred_element_type=jnp.float32)     # (TQ, TK)
        s = s + bias

        # Online (flash) softmax update; statistics kept in f32.
        m_prev = m_scr[h]                                            # (TQ, 1)
        m_new = jnp.maximum(m_prev, jnp.max(s, axis=-1, keepdims=True))
        alpha = jnp.exp(m_prev - m_new)
        p = jnp.exp(s - m_new)
        l_scr[h] = alpha * l_scr[h] + jnp.sum(p, axis=-1, keepdims=True)
        acc_scr[h] = alpha * acc_scr[h] + jnp.dot(
            p.astype(jnp.bfloat16), vp, preferred_element_type=jnp.float32)
        m_scr[h] = m_new

    @pl.when(ki == pl.num_programs(2) - 1)
    def _finalize():
        tq = q_ref.shape[1]
        e = wfc_ref.shape[2]
        # Fused fc_out: accumulate per-head contributions into one lane-dense
        # (TQ, E) f32 slab (no (H, TQ, E) intermediate, no separate H-sum).
        out_acc = jnp.zeros((tq, e), dtype=jnp.float32)
        for h in range(H):
            ctx_h = acc_scr[h] / l_scr[h]          # exact normalization, f32
            out_acc = out_acc + jnp.dot(ctx_h.astype(jnp.bfloat16), wfc_ref[h],
                                        preferred_element_type=jnp.float32)
        out_ref[0] = out_acc + bfc_ref[...]


# -----------------------------------------------------------------------------
# Python wrapper (layout glue + pallas_call plumbing)
# -----------------------------------------------------------------------------
def self_attention_forward(values, keys, query, mask, params, *,
                           embed_size, heads, block_q=256, block_k=256):
    head_dim = embed_size // heads
    assert head_dim * heads == embed_size, "embed_size must be divisible by heads"
    N, q_len, _ = query.shape
    k_len = keys.shape[1]
    v_len = values.shape[1]
    assert k_len == v_len, "key/value lengths must match"
    scale = 1.0 / math.sqrt(float(embed_size))

    def pick_tile(total, want):
        want = min(want, total)
        return want if total % want == 0 else total

    tq = pick_tile(q_len, block_q)
    tk = pick_tile(k_len, block_k)
    n_q, n_k = q_len // tq, k_len // tk

    # Free reshapes only — no XLA head-transpose / extra HBM round trip.
    qh = query.reshape(N, q_len, heads, head_dim)
    kh = keys.reshape(N, k_len, heads, head_dim)
    vh = values.reshape(N, v_len, heads, head_dim)

    # Mask -> additive bf16 bias (2 B/elem, single VPU add in-kernel).
    if mask is None:
        bias = jnp.zeros((N, 1, q_len, k_len), jnp.bfloat16)
    else:
        bias = jnp.broadcast_to(
            jnp.where(mask == 0, jnp.float32(-1e20), jnp.float32(0.0)),
            (N, 1, q_len, k_len)).astype(jnp.bfloat16)

    # PyTorch Linear computes x @ W.T -> pre-transpose to (in, out); bf16 operands.
    wq_t = params["wq"].T.astype(jnp.bfloat16)
    wk_t = params["wk"].T.astype(jnp.bfloat16)
    wv_t = params["wv"].T.astype(jnp.bfloat16)
    # fc weight (E_out, E_in) -> (E_in, E_out) -> (H, D, E_out): the kernel
    # contracts per head and accumulates (head-concat folded into the layout).
    w_fc = params["w_fc"].T.reshape(heads, head_dim, embed_size).astype(jnp.bfloat16)
    b_fc = params["b_fc"].reshape(1, embed_size).astype(jnp.float32)

    grid = (N, n_q, n_k)
    kernel = functools.partial(_flash_attention_kernel, scale=scale)

    return pl.pallas_call(
        kernel,
        out_shape=jax.ShapeDtypeStruct((N, q_len, embed_size), jnp.float32),
        grid_spec=pltpu.PrefetchScalarGridSpec(
            num_scalar_prefetch=0,
            grid=grid,
            in_specs=[
                # mask bias tile (per batch, per q/k tile)
                pl.BlockSpec((1, 1, tq, tk), lambda n, qi, ki: (n, 0, qi, ki)),
                # Q / K / V tiles in the (L, H, D) layout (contiguous DMA slabs)
                pl.BlockSpec((1, tq, heads, head_dim),
                             lambda n, qi, ki: (n, qi, 0, 0)),
                pl.BlockSpec((1, tk, heads, head_dim),
                             lambda n, qi, ki: (n, ki, 0, 0)),
                pl.BlockSpec((1, tk, heads, head_dim),
                             lambda n, qi, ki: (n, ki, 0, 0)),
                # constant weight blocks (index maps never change)
                pl.BlockSpec((head_dim, head_dim), lambda n, qi, ki: (0, 0)),
                pl.BlockSpec((head_dim, head_dim), lambda n, qi, ki: (0, 0)),
                pl.BlockSpec((head_dim, head_dim), lambda n, qi, ki: (0, 0)),
                pl.BlockSpec((heads, head_dim, embed_size),
                             lambda n, qi, ki: (0, 0, 0)),
                pl.BlockSpec((1, embed_size), lambda n, qi, ki: (0, 0)),
            ],
            out_specs=pl.BlockSpec((1, tq, embed_size),
                                   lambda n, qi, ki: (n, qi, 0)),
            scratch_shapes=[
                pltpu.VMEM((heads, tq, head_dim), jnp.bfloat16),   # cached projected Q
                pltpu.VMEM((heads, tq, 1), jnp.float32),           # m (running max)
                pltpu.VMEM((heads, tq, 1), jnp.float32),           # l (running sum)
                pltpu.VMEM((heads, tq, head_dim), jnp.float32),    # acc (running PV)
            ],
        ),
        compiler_params=pltpu.CompilerParams(
            # batch & q-tile parallel (megacore), k-tile is the reduction axis.
            dimension_semantics=("parallel", "parallel", "arbitrary"),
            # explicit scoped-VMEM limit (v5e default is only 16 MiB); raise for
            # larger tiles on 128-MiB-VMEM parts.
            vmem_limit_bytes=32 * 1024 * 1024,
        ),
    )(bias, qh, kh, vh, wq_t, wk_t, wv_t, w_fc, b_fc)


# -----------------------------------------------------------------------------
# Pure-JAX f32 reference (mirrors the PyTorch forward) for a correctness check
# -----------------------------------------------------------------------------
def self_attention_ref(values, keys, query, mask, params, embed_size, heads):
    head_dim = embed_size // heads
    N, q_len, _ = query.shape
    k_len, v_len = keys.shape[1], values.shape[1]
    v = values.reshape(N, v_len, heads, head_dim) @ params["wv"].T
    k = keys.reshape(N, k_len, heads, head_dim) @ params["wk"].T
    q = query.reshape(N, q_len, heads, head_dim) @ params["wq"].T
    energy = jnp.einsum("nqhd,nkhd->nhqk", q, k)
    energy = jnp.where(mask == 0, -1e20, energy)
    attn = jax.nn.softmax(energy / (embed_size ** 0.5), axis=3)
    out = jnp.einsum("nhql,nlhd->nqhd", attn, v).reshape(N, q_len, embed_size)
    return out @ params["w_fc"].T + params["b_fc"]


if __name__ == "__main__":
    # NOTE: tiny demo shapes for a quick correctness check; for representative
    # performance use head_dim / embed_size that are multiples of 128.
    N, seq, embed_size, heads = 2, 8, 32, 4
    head_dim = embed_size // heads

    key = jax.random.PRNGKey(0)
    ks = jax.random.split(key, 8)

    values = jax.random.normal(ks[0], (N, seq, embed_size), jnp.float32)
    keys_in = jax.random.normal(ks[1], (N, seq, embed_size), jnp.float32)
    query = jax.random.normal(ks[2], (N, seq, embed_size), jnp.float32)

    # causal mask, broadcast over heads: (N, 1, q_len, k_len)
    mask = jnp.broadcast_to(
        jnp.tril(jnp.ones((seq, seq), jnp.float32))[None, None], (N, 1, seq, seq))

    params = {
        "wq": jax.random.normal(ks[3], (head_dim, head_dim), jnp.float32) * 0.1,
        "wk": jax.random.normal(ks[4], (head_dim, head_dim), jnp.float32) * 0.1,
        "wv": jax.random.normal(ks[5], (head_dim, head_dim), jnp.float32) * 0.1,
        "w_fc": jax.random.normal(ks[6], (embed_size, embed_size), jnp.float32) * 0.1,
        "b_fc": jax.random.normal(ks[7], (embed_size,), jnp.float32) * 0.1,
    }

    fwd = jax.jit(functools.partial(self_attention_forward,
                                    embed_size=embed_size, heads=heads))
    out = fwd(values, keys_in, query, mask, params)
    out = jax.block_until_ready(out)

    ref = self_attention_ref(values, keys_in, query, mask, params,
                             embed_size, heads)
    assert out.shape == (N, seq, embed_size)
    # tolerance covers bf16 MXU operands (f32 accumulation) vs the f32 reference
    assert jnp.allclose(out, ref, atol=3e-2, rtol=3e-2), "mismatch vs reference"

    print("KERNEL_OK")
</pallas_src>

<mosaic_0001>
module attributes {stable_mosaic.version = 11 : i64} {
  func.func @_flash_attention_kernel(%arg0: i32, %arg1: i32, %arg2: i32, %arg3: memref<1x1x8x8xbf16, #tpu.memory_space<vmem>>, %arg4: memref<1x8x4x8xf32, #tpu.memory_space<vmem>>, %arg5: memref<1x8x4x8xf32, #tpu.memory_space<vmem>>, %arg6: memref<1x8x4x8xf32, #tpu.memory_space<vmem>>, %arg7: memref<8x8xbf16, #tpu.memory_space<vmem>>, %arg8: memref<8x8xbf16, #tpu.memory_space<vmem>>, %arg9: memref<8x8xbf16, #tpu.memory_space<vmem>>, %arg10: memref<4x8x32xbf16, #tpu.memory_space<vmem>>, %arg11: memref<1x32xf32, #tpu.memory_space<vmem>>, %arg12: memref<1x8x32xf32, #tpu.memory_space<vmem>>, %arg13: memref<4x8x8xbf16, #tpu.memory_space<vmem>>, %arg14: memref<4x8x1xf32, #tpu.memory_space<vmem>>, %arg15: memref<4x8x1xf32, #tpu.memory_space<vmem>>, %arg16: memref<4x8x8xf32, #tpu.memory_space<vmem>>) attributes {dimension_semantics = [#tpu.dimension_semantics<parallel>, #tpu.dimension_semantics<parallel>, #tpu.dimension_semantics<arbitrary>], iteration_bounds = array<i64: 2, 1, 1>, scalar_prefetch = 0 : i64, scratch_operands = 4 : i64, tpu.core_type = #tpu.core_type<tc>, window_params = [{transform_indices = @transform_0, window_bounds = array<i64: 1, 1, 8, 8>}, {transform_indices = @transform_1, window_bounds = array<i64: 1, 8, 4, 8>}, {transform_indices = @transform_2, window_bounds = array<i64: 1, 8, 4, 8>}, {transform_indices = @transform_3, window_bounds = array<i64: 1, 8, 4, 8>}, {pipeline_mode = #tpu.pipeline_mode<synchronous>, transform_indices = @transform_4, window_bounds = array<i64: 8, 8>}, {pipeline_mode = #tpu.pipeline_mode<synchronous>, transform_indices = @transform_5, window_bounds = array<i64: 8, 8>}, {pipeline_mode = #tpu.pipeline_mode<synchronous>, transform_indices = @transform_6, window_bounds = array<i64: 8, 8>}, {pipeline_mode = #tpu.pipeline_mode<synchronous>, transform_indices = @transform_7, window_bounds = array<i64: 4, 8, 32>}, {pipeline_mode = #tpu.pipeline_mode<synchronous>, transform_indices = @transform_8, window_bounds = array<i64: 1, 32>}, {transform_indices = @transform_9, window_bounds = array<i64: 1, 8, 32>}]} {
    %c0_i32 = arith.constant 0 : i32
    %0 = arith.cmpi eq, %arg2, %c0_i32 : i32
    %1 = arith.extui %0 : i1 to i32
    %c0_i32_0 = arith.constant 0 : i32
    %2 = arith.cmpi ne, %1, %c0_i32_0 : i32
    scf.if %2 {
      %cst_158 = arith.constant 0xFF800000 : f32
      %201 = vector.broadcast %cst_158 : f32 to vector<4x8x1xf32>
      %c0_159 = arith.constant 0 : index
      %c0_160 = arith.constant 0 : index
      %c0_161 = arith.constant 0 : index
      %202 = vector.load %arg14[%c0_159, %c0_160, %c0_161] : memref<4x8x1xf32, #tpu.memory_space<vmem>>, vector<4x8x1xf32>
      tpu.vector_store %arg14[%c0_159, %c0_160, %c0_161], %201 {strides = array<i32>} : memref<4x8x1xf32, #tpu.memory_space<vmem>>, vector<4x8x1xf32>,
      %cst_162 = arith.constant 0.000000e+00 : f32
      %203 = vector.broadcast %cst_162 : f32 to vector<4x8x1xf32>
      %c0_163 = arith.constant 0 : index
      %c0_164 = arith.constant 0 : index
      %c0_165 = arith.constant 0 : index
      %204 = vector.load %arg15[%c0_163, %c0_164, %c0_165] : memref<4x8x1xf32, #tpu.memory_space<vmem>>, vector<4x8x1xf32>
      tpu.vector_store %arg15[%c0_163, %c0_164, %c0_165], %203 {strides = array<i32>} : memref<4x8x1xf32, #tpu.memory_space<vmem>>, vector<4x8x1xf32>,
      %cst_166 = arith.constant 0.000000e+00 : f32
      %205 = vector.broadcast %cst_166 : f32 to vector<4x8x8xf32>
      %c0_167 = arith.constant 0 : index
      %c0_168 = arith.constant 0 : index
      %c0_169 = arith.constant 0 : index
      %206 = vector.load %arg16[%c0_167, %c0_168, %c0_169] : memref<4x8x8xf32, #tpu.memory_space<vmem>>, vector<4x8x8xf32>
      tpu.vector_store %arg16[%c0_167, %c0_168, %c0_169], %205 {strides = array<i32>} : memref<4x8x8xf32, #tpu.memory_space<vmem>>, vector<4x8x8xf32>,
      %c0_170 = arith.constant 0 : index
      %c0_171 = arith.constant 0 : index
      %c0_172 = arith.constant 0 : index
      %c0_173 = arith.constant 0 : index
      %207 = vector.load %arg4[%c0_170, %c0_171, %c0_172, %c0_173] : memref<1x8x4x8xf32, #tpu.memory_space<vmem>>, vector<1x8x1x8xf32>
      %208 = vector.shape_cast %207 : vector<1x8x1x8xf32> to vector<8x8xf32>
      %209 = arith.truncf %208 : vector<8x8xf32> to vector<8x8xbf16>
      %c0_174 = arith.constant 0 : index
      %c0_175 = arith.constant 0 : index
      %210 = vector.load %arg7[%c0_174, %c0_175] : memref<8x8xbf16, #tpu.memory_space<vmem>>, vector<8x8xbf16>
      %cst_176 = arith.constant dense<0.000000e+00> : vector<8x8xf32>
      %211 = tpu.matmul %209, %210, %cst_176 {dimension_numbers = #tpu.dot_dimension_numbers<[1], [0], [0], [1], [0, 0, 1, 1], [], []>} : vector<8x8xbf16>, vector<8x8xbf16>, vector<8x8xf32> -> vector<8x8xf32>
      %cst_177 = arith.constant 0.176776692 : f32
      %212 = vector.broadcast %cst_177 : f32 to vector<8x8xf32>
      %213 = arith.mulf %211, %212 : vector<8x8xf32>
      %214 = arith.truncf %213 : vector<8x8xf32> to vector<8x8xbf16>
      %c0_178 = arith.constant 0 : index
      %c0_179 = arith.constant 0 : index
      %c0_180 = arith.constant 0 : index
      %215 = vector.load %arg13[%c0_178, %c0_179, %c0_180] : memref<4x8x8xbf16, #tpu.memory_space<vmem>>, vector<1x8x8xbf16>
      %216 = vector.shape_cast %215 : vector<1x8x8xbf16> to vector<8x8xbf16>
      %217 = vector.shape_cast %214 : vector<8x8xbf16> to vector<1x8x8xbf16>
      tpu.vector_store %arg13[%c0_178, %c0_179, %c0_180], %217 {strides = array<i32>} : memref<4x8x8xbf16, #tpu.memory_space<vmem>>, vector<1x8x8xbf16>,
      %c0_181 = arith.constant 0 : index
      %c0_182 = arith.constant 0 : index
      %c1_183 = arith.constant 1 : index
      %c0_184 = arith.constant 0 : index
      %218 = vector.load %arg4[%c0_181, %c0_182, %c1_183, %c0_184] : memref<1x8x4x8xf32, #tpu.memory_space<vmem>>, vector<1x8x1x8xf32>
      %219 = vector.shape_cast %218 : vector<1x8x1x8xf32> to vector<8x8xf32>
      %220 = arith.truncf %219 : vector<8x8xf32> to vector<8x8xbf16>
      %c0_185 = arith.constant 0 : index
      %c0_186 = arith.constant 0 : index
      %221 = vector.load %arg7[%c0_185, %c0_186] : memref<8x8xbf16, #tpu.memory_space<vmem>>, vector<8x8xbf16>
      %cst_187 = arith.constant dense<0.000000e+00> : vector<8x8xf32>
      %222 = tpu.matmul %220, %221, %cst_187 {dimension_numbers = #tpu.dot_dimension_numbers<[1], [0], [0], [1], [0, 0, 1, 1], [], []>} : vector<8x8xbf16>, vector<8x8xbf16>, vector<8x8xf32> -> vector<8x8xf32>
      %cst_188 = arith.constant 0.176776692 : f32
      %223 = vector.broadcast %cst_188 : f32 to vector<8x8xf32>
      %224 = arith.mulf %222, %223 : vector<8x8xf32>
      %225 = arith.truncf %224 : vector<8x8xf32> to vector<8x8xbf16>
      %c1_189 = arith.constant 1 : index
      %c0_190 = arith.constant 0 : index
      %c0_191 = arith.constant 0 : index
      %226 = vector.load %arg13[%c1_189, %c0_190, %c0_191] : memref<4x8x8xbf16, #tpu.memory_space<vmem>>, vector<1x8x8xbf16>
      %227 = vector.shape_cast %226 : vector<1x8x8xbf16> to vector<8x8xbf16>
      %228 = vector.shape_cast %225 : vector<8x8xbf16> to vector<1x8x8xbf16>
      tpu.vector_store %arg13[%c1_189, %c0_190, %c0_191], %228 {strides = array<i32>} : memref<4x8x8xbf16, #tpu.memory_space<vmem>>, vector<1x8x8xbf16>,
      %c0_192 = arith.constant 0 : index
      %c0_193 = arith.constant 0 : index
      %c2_194 = arith.constant 2 : index
      %c0_195 = arith.constant 0 : index
      %229 = vector.load %arg4[%c0_192, %c0_193, %c2_194, %c0_195] : memref<1x8x4x8xf32, #tpu.memory_space<vmem>>, vector<1x8x1x8xf32>
      %230 = vector.shape_cast %229 : vector<1x8x1x8xf32> to vector<8x8xf32>
      %231 = arith.truncf %230 : vector<8x8xf32> to vector<8x8xbf16>
      %c0_196 = arith.constant 0 : index
      %c0_197 = arith.constant 0 : index
      %232 = vector.load %arg7[%c0_196, %c0_197] : memref<8x8xbf16, #tpu.memory_space<vmem>>, vector<8x8xbf16>
      %cst_198 = arith.constant dense<0.000000e+00> : vector<8x8xf32>
      %233 = tpu.matmul %231, %232, %cst_198 {dimension_numbers = #tpu.dot_dimension_numbers<[1], [0], [0], [1], [0, 0, 1, 1], [], []>} : vector<8x8xbf16>, vector<8x8xbf16>, vector<8x8xf32> -> vector<8x8xf32>
      %cst_199 = arith.constant 0.176776692 : f32
      %234 = vector.broadcast %cst_199 : f32 to vector<8x8xf32>
      %235 = arith.mulf %233, %234 : vector<8x8xf32>
      %236 = arith.truncf %235 : vector<8x8xf32> to vector<8x8xbf16>
      %c2_200 = arith.constant 2 : index
      %c0_201 = arith.constant 0 : index
      %c0_202 = arith.constant 0 : index
      %237 = vector.load %arg13[%c2_200, %c0_201, %c0_202] : memref<4x8x8xbf16, #tpu.memory_space<vmem>>, vector<1x8x8xbf16>
      %238 = vector.shape_cast %237 : vector<1x8x8xbf16> to vector<8x8xbf16>
      %239 = vector.shape_cast %236 : vector<8x8xbf16> to vector<1x8x8xbf16>
      tpu.vector_store %arg13[%c2_200, %c0_201, %c0_202], %239 {strides = array<i32>} : memref<4x8x8xbf16, #tpu.memory_space<vmem>>, vector<1x8x8xbf16>,
      %c0_203 = arith.constant 0 : index
      %c0_204 = arith.constant 0 : index
      %c3_205 = arith.constant 3 : index
      %c0_206 = arith.constant 0 : index
      %240 = vector.load %arg4[%c0_203, %c0_204, %c3_205, %c0_206] : memref<1x8x4x8xf32, #tpu.memory_space<vmem>>, vector<1x8x1x8xf32>
      %241 = vector.shape_cast %240 : vector<1x8x1x8xf32> to vector<8x8xf32>
      %242 = arith.truncf %241 : vector<8x8xf32> to vector<8x8xbf16>
      %c0_207 = arith.constant 0 : index
      %c0_208 = arith.constant 0 : index
      %243 = vector.load %arg7[%c0_207, %c0_208] : memref<8x8xbf16, #tpu.memory_space<vmem>>, vector<8x8xbf16>
      %cst_209 = arith.constant dense<0.000000e+00> : vector<8x8xf32>
      %244 = tpu.matmul %242, %243, %cst_209 {dimension_numbers = #tpu.dot_dimension_numbers<[1], [0], [0], [1], [0, 0, 1, 1], [], []>} : vector<8x8xbf16>, vector<8x8xbf16>, vector<8x8xf32> -> vector<8x8xf32>
      %cst_210 = arith.constant 0.176776692 : f32
      %245 = vector.broadcast %cst_210 : f32 to vector<8x8xf32>
      %246 = arith.mulf %244, %245 : vector<8x8xf32>
      %247 = arith.truncf %246 : vector<8x8xf32> to vector<8x8xbf16>
      %c3_211 = arith.constant 3 : index
      %c0_212 = arith.constant 0 : index
      %c0_213 = arith.constant 0 : index
      %248 = vector.load %arg13[%c3_211, %c0_212, %c0_213] : memref<4x8x8xbf16, #tpu.memory_space<vmem>>, vector<1x8x8xbf16>
      %249 = vector.shape_cast %248 : vector<1x8x8xbf16> to vector<8x8xbf16>
      %250 = vector.shape_cast %247 : vector<8x8xbf16> to vector<1x8x8xbf16>
      tpu.vector_store %arg13[%c3_211, %c0_212, %c0_213], %250 {strides = array<i32>} : memref<4x8x8xbf16, #tpu.memory_space<vmem>>, vector<1x8x8xbf16>,
    } else {
    }
    %c0 = arith.constant 0 : index
    %c0_1 = arith.constant 0 : index
    %c0_2 = arith.constant 0 : index
    %c0_3 = arith.constant 0 : index
    %3 = vector.load %arg3[%c0, %c0_1, %c0_2, %c0_3] : memref<1x1x8x8xbf16, #tpu.memory_space<vmem>>, vector<1x1x8x8xbf16>
    %4 = vector.shape_cast %3 : vector<1x1x8x8xbf16> to vector<8x8xbf16>
    %5 = arith.extf %4 : vector<8x8xbf16> to vector<8x8xf32>
    %c0_4 = arith.constant 0 : index
    %c0_5 = arith.constant 0 : index
    %c0_6 = arith.constant 0 : index
    %c0_7 = arith.constant 0 : index
    %6 = vector.load %arg5[%c0_4, %c0_5, %c0_6, %c0_7] : memref<1x8x4x8xf32, #tpu.memory_space<vmem>>, vector<1x8x1x8xf32>
    %7 = vector.shape_cast %6 : vector<1x8x1x8xf32> to vector<8x8xf32>
    %8 = arith.truncf %7 : vector<8x8xf32> to vector<8x8xbf16>
    %c0_8 = arith.constant 0 : index
    %c0_9 = arith.constant 0 : index
    %c0_10 = arith.constant 0 : index
    %c0_11 = arith.constant 0 : index
    %9 = vector.load %arg6[%c0_8, %c0_9, %c0_10, %c0_11] : memref<1x8x4x8xf32, #tpu.memory_space<vmem>>, vector<1x8x1x8xf32>
    %10 = vector.shape_cast %9 : vector<1x8x1x8xf32> to vector<8x8xf32>
    %11 = arith.truncf %10 : vector<8x8xf32> to vector<8x8xbf16>
    %c0_12 = arith.constant 0 : index
    %c0_13 = arith.constant 0 : index
    %12 = vector.load %arg8[%c0_12, %c0_13] : memref<8x8xbf16, #tpu.memory_space<vmem>>, vector<8x8xbf16>
    %cst = arith.constant dense<0.000000e+00> : vector<8x8xf32>
    %13 = tpu.matmul %8, %12, %cst {dimension_numbers = #tpu.dot_dimension_numbers<[1], [0], [0], [1], [0, 0, 1, 1], [], []>} : vector<8x8xbf16>, vector<8x8xbf16>, vector<8x8xf32> -> vector<8x8xf32>
    %14 = arith.truncf %13 : vector<8x8xf32> to vector<8x8xbf16>
    %c0_14 = arith.constant 0 : index
    %c0_15 = arith.constant 0 : index
    %15 = vector.load %arg9[%c0_14, %c0_15] : memref<8x8xbf16, #tpu.memory_space<vmem>>, vector<8x8xbf16>
    %cst_16 = arith.constant dense<0.000000e+00> : vector<8x8xf32>
    %16 = tpu.matmul %11, %15, %cst_16 {dimension_numbers = #tpu.dot_dimension_numbers<[1], [0], [0], [1], [0, 0, 1, 1], [], []>} : vector<8x8xbf16>, vector<8x8xbf16>, vector<8x8xf32> -> vector<8x8xf32>
    %17 = arith.truncf %16 : vector<8x8xf32> to vector<8x8xbf16>
    %c0_17 = arith.constant 0 : index
    %c0_18 = arith.constant 0 : index
    %c0_19 = arith.constant 0 : index
    %18 = vector.load %arg13[%c0_17, %c0_18, %c0_19] : memref<4x8x8xbf16, #tpu.memory_space<vmem>>, vector<1x8x8xbf16>
    %19 = vector.shape_cast %18 : vector<1x8x8xbf16> to vector<8x8xbf16>
    %cst_20 = arith.constant dense<0.000000e+00> : vector<8x8xf32>
    %20 = tpu.matmul %19, %14, %cst_20 {dimension_numbers = #tpu.dot_dimension_numbers<[1], [1], [0], [0], [0, 0, 1, 0], [], []>} : vector<8x8xbf16>, vector<8x8xbf16>, vector<8x8xf32> -> vector<8x8xf32>
    %21 = arith.addf %20, %5 : vector<8x8xf32>
    %c0_21 = arith.constant 0 : index
    %c0_22 = arith.constant 0 : index
    %c0_23 = arith.constant 0 : index
    %22 = vector.load %arg14[%c0_21, %c0_22, %c0_23] : memref<4x8x1xf32, #tpu.memory_space<vmem>>, vector<1x8x1xf32>
    %23 = vector.shape_cast %22 : vector<1x8x1xf32> to vector<8x1xf32>
    %cst_24 = arith.constant dense<0xFF800000> : vector<8xf32>
    %24 = vector.multi_reduction <maximumf>, %21, %cst_24 [1] : vector<8x8xf32> to vector<8xf32>
    %25 = vector.shape_cast %24 : vector<8xf32> to vector<8x1xf32>
    %26 = arith.maximumf %23, %25 : vector<8x1xf32>
    %27 = arith.subf %23, %26 : vector<8x1xf32>
    %28 = math.exp %27 : vector<8x1xf32>
    %29 = vector.broadcast %26 : vector<8x1xf32> to vector<8x8xf32>
    %30 = arith.subf %21, %29 : vector<8x8xf32>
    %31 = math.exp %30 : vector<8x8xf32>
    %c0_25 = arith.constant 0 : index
    %c0_26 = arith.constant 0 : index
    %c0_27 = arith.constant 0 : index
    %32 = vector.load %arg15[%c0_25, %c0_26, %c0_27] : memref<4x8x1xf32, #tpu.memory_space<vmem>>, vector<1x8x1xf32>
    %33 = vector.shape_cast %32 : vector<1x8x1xf32> to vector<8x1xf32>
    %34 = arith.mulf %28, %33 : vector<8x1xf32>
    %cst_28 = arith.constant dense<0.000000e+00> : vector<8xf32>
    %35 = vector.multi_reduction <add>, %31, %cst_28 [1] : vector<8x8xf32> to vector<8xf32>
    %36 = vector.shape_cast %35 : vector<8xf32> to vector<8x1xf32>
    %37 = arith.addf %34, %36 : vector<8x1xf32>
    %c0_29 = arith.constant 0 : index
    %c0_30 = arith.constant 0 : index
    %c0_31 = arith.constant 0 : index
    %38 = vector.load %arg15[%c0_29, %c0_30, %c0_31] : memref<4x8x1xf32, #tpu.memory_space<vmem>>, vector<1x8x1xf32>
    %39 = vector.shape_cast %38 : vector<1x8x1xf32> to vector<8x1xf32>
    %40 = vector.shape_cast %37 : vector<8x1xf32> to vector<1x8x1xf32>
    tpu.vector_store %arg15[%c0_29, %c0_30, %c0_31], %40 {strides = array<i32>} : memref<4x8x1xf32, #tpu.memory_space<vmem>>, vector<1x8x1xf32>,
    %c0_32 = arith.constant 0 : index
    %c0_33 = arith.constant 0 : index
    %c0_34 = arith.constant 0 : index
    %41 = vector.load %arg16[%c0_32, %c0_33, %c0_34] : memref<4x8x8xf32, #tpu.memory_space<vmem>>, vector<1x8x8xf32>
    %42 = vector.shape_cast %41 : vector<1x8x8xf32> to vector<8x8xf32>
    %43 = vector.broadcast %28 : vector<8x1xf32> to vector<8x8xf32>
    %44 = arith.mulf %43, %42 : vector<8x8xf32>
    %45 = arith.truncf %31 : vector<8x8xf32> to vector<8x8xbf16>
    %cst_35 = arith.constant dense<0.000000e+00> : vector<8x8xf32>
    %46 = tpu.matmul %45, %17, %cst_35 {dimension_numbers = #tpu.dot_dimension_numbers<[1], [0], [0], [1], [0, 0, 1, 1], [], []>} : vector<8x8xbf16>, vector<8x8xbf16>, vector<8x8xf32> -> vector<8x8xf32>
    %47 = arith.addf %44, %46 : vector<8x8xf32>
    %c0_36 = arith.constant 0 : index
    %c0_37 = arith.constant 0 : index
    %c0_38 = arith.constant 0 : index
    %48 = vector.load %arg16[%c0_36, %c0_37, %c0_38] : memref<4x8x8xf32, #tpu.memory_space<vmem>>, vector<1x8x8xf32>
    %49 = vector.shape_cast %48 : vector<1x8x8xf32> to vector<8x8xf32>
    %50 = vector.shape_cast %47 : vector<8x8xf32> to vector<1x8x8xf32>
    tpu.vector_store %arg16[%c0_36, %c0_37, %c0_38], %50 {strides = array<i32>} : memref<4x8x8xf32, #tpu.memory_space<vmem>>, vector<1x8x8xf32>,
    %c0_39 = arith.constant 0 : index
    %c0_40 = arith.constant 0 : index
    %c0_41 = arith.constant 0 : index
    %51 = vector.load %arg14[%c0_39, %c0_40, %c0_41] : memref<4x8x1xf32, #tpu.memory_space<vmem>>, vector<1x8x1xf32>
    %52 = vector.shape_cast %51 : vector<1x8x1xf32> to vector<8x1xf32>
    %53 = vector.shape_cast %26 : vector<8x1xf32> to vector<1x8x1xf32>
    tpu.vector_store %arg14[%c0_39, %c0_40, %c0_41], %53 {strides = array<i32>} : memref<4x8x1xf32, #tpu.memory_space<vmem>>, vector<1x8x1xf32>,
    %c0_42 = arith.constant 0 : index
    %c0_43 = arith.constant 0 : index
    %c1 = arith.constant 1 : index
    %c0_44 = arith.constant 0 : index
    %54 = vector.load %arg5[%c0_42, %c0_43, %c1, %c0_44] : memref<1x8x4x8xf32, #tpu.memory_space<vmem>>, vector<1x8x1x8xf32>
    %55 = vector.shape_cast %54 : vector<1x8x1x8xf32> to vector<8x8xf32>
    %56 = arith.truncf %55 : vector<8x8xf32> to vector<8x8xbf16>
    %c0_45 = arith.constant 0 : index
    %c0_46 = arith.constant 0 : index
    %c1_47 = arith.constant 1 : index
    %c0_48 = arith.constant 0 : index
    %57 = vector.load %arg6[%c0_45, %c0_46, %c1_47, %c0_48] : memref<1x8x4x8xf32, #tpu.memory_space<vmem>>, vector<1x8x1x8xf32>
    %58 = vector.shape_cast %57 : vector<1x8x1x8xf32> to vector<8x8xf32>
    %59 = arith.truncf %58 : vector<8x8xf32> to vector<8x8xbf16>
    %c0_49 = arith.constant 0 : index
    %c0_50 = arith.constant 0 : index
    %60 = vector.load %arg8[%c0_49, %c0_50] : memref<8x8xbf16, #tpu.memory_space<vmem>>, vector<8x8xbf16>
    %cst_51 = arith.constant dense<0.000000e+00> : vector<8x8xf32>
    %61 = tpu.matmul %56, %60, %cst_51 {dimension_numbers = #tpu.dot_dimension_numbers<[1], [0], [0], [1], [0, 0, 1, 1], [], []>} : vector<8x8xbf16>, vector<8x8xbf16>, vector<8x8xf32> -> vector<8x8xf32>
    %62 = arith.truncf %61 : vector<8x8xf32> to vector<8x8xbf16>
    %c0_52 = arith.constant 0 : index
    %c0_53 = arith.constant 0 : index
    %63 = vector.load %arg9[%c0_52, %c0_53] : memref<8x8xbf16, #tpu.memory_space<vmem>>, vector<8x8xbf16>
    %cst_54 = arith.constant dense<0.000000e+00> : vector<8x8xf32>
    %64 = tpu.matmul %59, %63, %cst_54 {dimension_numbers = #tpu.dot_dimension_numbers<[1], [0], [0], [1], [0, 0, 1, 1], [], []>} : vector<8x8xbf16>, vector<8x8xbf16>, vector<8x8xf32> -> vector<8x8xf32>
    %65 = arith.truncf %64 : vector<8x8xf32> to vector<8x8xbf16>
    %c1_55 = arith.constant 1 : index
    %c0_56 = arith.constant 0 : index
    %c0_57 = arith.constant 0 : index
    %66 = vector.load %arg13[%c1_55, %c0_56, %c0_57] : memref<4x8x8xbf16, #tpu.memory_space<vmem>>, vector<1x8x8xbf16>
    %67 = vector.shape_cast %66 : vector<1x8x8xbf16> to vector<8x8xbf16>
    %cst_58 = arith.constant dense<0.000000e+00> : vector<8x8xf32>
    %68 = tpu.matmul %67, %62, %cst_58 {dimension_numbers = #tpu.dot_dimension_numbers<[1], [1], [0], [0], [0, 0, 1, 0], [], []>} : vector<8x8xbf16>, vector<8x8xbf16>, vector<8x8xf32> -> vector<8x8xf32>
    %69 = arith.addf %68, %5 : vector<8x8xf32>
    %c1_59 = arith.constant 1 : index
    %c0_60 = arith.constant 0 : index
    %c0_61 = arith.constant 0 : index
    %70 = vector.load %arg14[%c1_59, %c0_60, %c0_61] : memref<4x8x1xf32, #tpu.memory_space<vmem>>, vector<1x8x1xf32>
    %71 = vector.shape_cast %70 : vector<1x8x1xf32> to vector<8x1xf32>
    %cst_62 = arith.constant dense<0xFF800000> : vector<8xf32>
    %72 = vector.multi_reduction <maximumf>, %69, %cst_62 [1] : vector<8x8xf32> to vector<8xf32>
    %73 = vector.shape_cast %72 : vector<8xf32> to vector<8x1xf32>
    %74 = arith.maximumf %71, %73 : vector<8x1xf32>
    %75 = arith.subf %71, %74 : vector<8x1xf32>
    %76 = math.exp %75 : vector<8x1xf32>
    %77 = vector.broadcast %74 : vector<8x1xf32> to vector<8x8xf32>
    %78 = arith.subf %69, %77 : vector<8x8xf32>
    %79 = math.exp %78 : vector<8x8xf32>
    %c1_63 = arith.constant 1 : index
    %c0_64 = arith.constant 0 : index
    %c0_65 = arith.constant 0 : index
    %80 = vector.load %arg15[%c1_63, %c0_64, %c0_65] : memref<4x8x1xf32, #tpu.memory_space<vmem>>, vector<1x8x1xf32>
    %81 = vector.shape_cast %80 : vector<1x8x1xf32> to vector<8x1xf32>
    %82 = arith.mulf %76, %81 : vector<8x1xf32>
    %cst_66 = arith.constant dense<0.000000e+00> : vector<8xf32>
    %83 = vector.multi_reduction <add>, %79, %cst_66 [1] : vector<8x8xf32> to vector<8xf32>
    %84 = vector.shape_cast %83 : vector<8xf32> to vector<8x1xf32>
    %85 = arith.addf %82, %84 : vector<8x1xf32>
    %c1_67 = arith.constant 1 : index
    %c0_68 = arith.constant 0 : index
    %c0_69 = arith.constant 0 : index
    %86 = vector.load %arg15[%c1_67, %c0_68, %c0_69] : memref<4x8x1xf32, #tpu.memory_space<vmem>>, vector<1x8x1xf32>
    %87 = vector.shape_cast %86 : vector<1x8x1xf32> to vector<8x1xf32>
    %88 = vector.shape_cast %85 : vector<8x1xf32> to vector<1x8x1xf32>
    tpu.vector_store %arg15[%c1_67, %c0_68, %c0_69], %88 {strides = array<i32>} : memref<4x8x1xf32, #tpu.memory_space<vmem>>, vector<1x8x1xf32>,
    %c1_70 = arith.constant 1 : index
    %c0_71 = arith.constant 0 : index
    %c0_72 = arith.constant 0 : index
    %89 = vector.load %arg16[%c1_70, %c0_71, %c0_72] : memref<4x8x8xf32, #tpu.memory_space<vmem>>, vector<1x8x8xf32>
    %90 = vector.shape_cast %89 : vector<1x8x8xf32> to vector<8x8xf32>
    %91 = vector.broadcast %76 : vector<8x1xf32> to vector<8x8xf32>
    %92 = arith.mulf %91, %90 : vector<8x8xf32>
    %93 = arith.truncf %79 : vector<8x8xf32> to vector<8x8xbf16>
    %cst_73 = arith.constant dense<0.000000e+00> : vector<8x8xf32>
    %94 = tpu.matmul %93, %65, %cst_73 {dimension_numbers = #tpu.dot_dimension_numbers<[1], [0], [0], [1], [0, 0, 1, 1], [], []>} : vector<8x8xbf16>, vector<8x8xbf16>, vector<8x8xf32> -> vector<8x8xf32>
    %95 = arith.addf %92, %94 : vector<8x8xf32>
    %c1_74 = arith.constant 1 : index
    %c0_75 = arith.constant 0 : index
    %c0_76 = arith.constant 0 : index
    %96 = vector.load %arg16[%c1_74, %c0_75, %c0_76] : memref<4x8x8xf32, #tpu.memory_space<vmem>>, vector<1x8x8xf32>
    %97 = vector.shape_cast %96 : vector<1x8x8xf32> to vector<8x8xf32>
    %98 = vector.shape_cast %95 : vector<8x8xf32> to vector<1x8x8xf32>
    tpu.vector_store %arg16[%c1_74, %c0_75, %c0_76], %98 {strides = array<i32>} : memref<4x8x8xf32, #tpu.memory_space<vmem>>, vector<1x8x8xf32>,
    %c1_77 = arith.constant 1 : index
    %c0_78 = arith.constant 0 : index
    %c0_79 = arith.constant 0 : index
    %99 = vector.load %arg14[%c1_77, %c0_78, %c0_79] : memref<4x8x1xf32, #tpu.memory_space<vmem>>, vector<1x8x1xf32>
    %100 = vector.shape_cast %99 : vector<1x8x1xf32> to vector<8x1xf32>
    %101 = vector.shape_cast %74 : vector<8x1xf32> to vector<1x8x1xf32>
    tpu.vector_store %arg14[%c1_77, %c0_78, %c0_79], %101 {strides = array<i32>} : memref<4x8x1xf32, #tpu.memory_space<vmem>>, vector<1x8x1xf32>,
    %c0_80 = arith.constant 0 : index
    %c0_81 = arith.constant 0 : index
    %c2 = arith.constant 2 : index
    %c0_82 = arith.constant 0 : index
    %102 = vector.load %arg5[%c0_80, %c0_81, %c2, %c0_82] : memref<1x8x4x8xf32, #tpu.memory_space<vmem>>, vector<1x8x1x8xf32>
    %103 = vector.shape_cast %102 : vector<1x8x1x8xf32> to vector<8x8xf32>
    %104 = arith.truncf %103 : vector<8x8xf32> to vector<8x8xbf16>
    %c0_83 = arith.constant 0 : index
    %c0_84 = arith.constant 0 : index
    %c2_85 = arith.constant 2 : index
    %c0_86 = arith.constant 0 : index
    %105 = vector.load %arg6[%c0_83, %c0_84, %c2_85, %c0_86] : memref<1x8x4x8xf32, #tpu.memory_space<vmem>>, vector<1x8x1x8xf32>
    %106 = vector.shape_cast %105 : vector<1x8x1x8xf32> to vector<8x8xf32>
    %107 = arith.truncf %106 : vector<8x8xf32> to vector<8x8xbf16>
    %c0_87 = arith.constant 0 : index
    %c0_88 = arith.constant 0 : index
    %108 = vector.load %arg8[%c0_87, %c0_88] : memref<8x8xbf16, #tpu.memory_space<vmem>>, vector<8x8xbf16>
    %cst_89 = arith.constant dense<0.000000e+00> : vector<8x8xf32>
    %109 = tpu.matmul %104, %108, %cst_89 {dimension_numbers = #tpu.dot_dimension_numbers<[1], [0], [0], [1], [0, 0, 1, 1], [], []>} : vector<8x8xbf16>, vector<8x8xbf16>, vector<8x8xf32> -> vector<8x8xf32>
    %110 = arith.truncf %109 : vector<8x8xf32> to vector<8x8xbf16>
    %c0_90 = arith.constant 0 : index
    %c0_91 = arith.constant 0 : index
    %111 = vector.load %arg9[%c0_90, %c0_91] : memref<8x8xbf16, #tpu.memory_space<vmem>>, vector<8x8xbf16>
    %cst_92 = arith.constant dense<0.000000e+00> : vector<8x8xf32>
    %112 = tpu.matmul %107, %111, %cst_92 {dimension_numbers = #tpu.dot_dimension_numbers<[1], [0], [0], [1], [0, 0, 1, 1], [], []>} : vector<8x8xbf16>, vector<8x8xbf16>, vector<8x8xf32> -> vector<8x8xf32>
    %113 = arith.truncf %112 : vector<8x8xf32> to vector<8x8xbf16>
    %c2_93 = arith.constant 2 : index
    %c0_94 = arith.constant 0 : index
    %c0_95 = arith.constant 0 : index
    %114 = vector.load %arg13[%c2_93, %c0_94, %c0_95] : memref<4x8x8xbf16, #tpu.memory_space<vmem>>, vector<1x8x8xbf16>
    %115 = vector.shape_cast %114 : vector<1x8x8xbf16> to vector<8x8xbf16>
    %cst_96 = arith.constant dense<0.000000e+00> : vector<8x8xf32>
    %116 = tpu.matmul %115, %110, %cst_96 {dimension_numbers = #tpu.dot_dimension_numbers<[1], [1], [0], [0], [0, 0, 1, 0], [], []>} : vector<8x8xbf16>, vector<8x8xbf16>, vector<8x8xf32> -> vector<8x8xf32>
    %117 = arith.addf %116, %5 : vector<8x8xf32>
    %c2_97 = arith.constant 2 : index
    %c0_98 = arith.constant 0 : index
    %c0_99 = arith.constant 0 : index
    %118 = vector.load %arg14[%c2_97, %c0_98, %c0_99] : memref<4x8x1xf32, #tpu.memory_space<vmem>>, vector<1x8x1xf32>
    %119 = vector.shape_cast %118 : vector<1x8x1xf32> to vector<8x1xf32>
    %cst_100 = arith.constant dense<0xFF800000> : vector<8xf32>
    %120 = vector.multi_reduction <maximumf>, %117, %cst_100 [1] : vector<8x8xf32> to vector<8xf32>
    %121 = vector.shape_cast %120 : vector<8xf32> to vector<8x1xf32>
    %122 = arith.maximumf %119, %121 : vector<8x1xf32>
    %123 = arith.subf %119, %122 : vector<8x1xf32>
    %124 = math.exp %123 : vector<8x1xf32>
    %125 = vector.broadcast %122 : vector<8x1xf32> to vector<8x8xf32>
    %126 = arith.subf %117, %125 : vector<8x8xf32>
    %127 = math.exp %126 : vector<8x8xf32>
    %c2_101 = arith.constant 2 : index
    %c0_102 = arith.constant 0 : index
    %c0_103 = arith.constant 0 : index
    %128 = vector.load %arg15[%c2_101, %c0_102, %c0_103] : memref<4x8x1xf32, #tpu.memory_space<vmem>>, vector<1x8x1xf32>
    %129 = vector.shape_cast %128 : vector<1x8x1xf32> to vector<8x1xf32>
    %130 = arith.mulf %124, %129 : vector<8x1xf32>
    %cst_104 = arith.constant dense<0.000000e+00> : vector<8xf32>
    %131 = vector.multi_reduction <add>, %127, %cst_104 [1] : vector<8x8xf32> to vector<8xf32>
    %132 = vector.shape_cast %131 : vector<8xf32> to vector<8x1xf32>
    %133 = arith.addf %130, %132 : vector<8x1xf32>
    %c2_105 = arith.constant 2 : index
    %c0_106 = arith.constant 0 : index
    %c0_107 = arith.constant 0 : index
    %134 = vector.load %arg15[%c2_105, %c0_106, %c0_107] : memref<4x8x1xf32, #tpu.memory_space<vmem>>, vector<1x8x1xf32>
    %135 = vector.shape_cast %134 : vector<1x8x1xf32> to vector<8x1xf32>
    %136 = vector.shape_cast %133 : vector<8x1xf32> to vector<1x8x1xf32>
    tpu.vector_store %arg15[%c2_105, %c0_106, %c0_107], %136 {strides = array<i32>} : memref<4x8x1xf32, #tpu.memory_space<vmem>>, vector<1x8x1xf32>,
    %c2_108 = arith.constant 2 : index
    %c0_109 = arith.constant 0 : index
    %c0_110 = arith.constant 0 : index
    %137 = vector.load %arg16[%c2_108, %c0_109, %c0_110] : memref<4x8x8xf32, #tpu.memory_space<vmem>>, vector<1x8x8xf32>
    %138 = vector.shape_cast %137 : vector<1x8x8xf32> to vector<8x8xf32>
    %139 = vector.broadcast %124 : vector<8x1xf32> to vector<8x8xf32>
    %140 = arith.mulf %139, %138 : vector<8x8xf32>
    %141 = arith.truncf %127 : vector<8x8xf32> to vector<8x8xbf16>
    %cst_111 = arith.constant dense<0.000000e+00> : vector<8x8xf32>
    %142 = tpu.matmul %141, %113, %cst_111 {dimension_numbers = #tpu.dot_dimension_numbers<[1], [0], [0], [1], [0, 0, 1, 1], [], []>} : vector<8x8xbf16>, vector<8x8xbf16>, vector<8x8xf32> -> vector<8x8xf32>
    %143 = arith.addf %140, %142 : vector<8x8xf32>
    %c2_112 = arith.constant 2 : index
    %c0_113 = arith.constant 0 : index
    %c0_114 = arith.constant 0 : index
    %144 = vector.load %arg16[%c2_112, %c0_113, %c0_114] : memref<4x8x8xf32, #tpu.memory_space<vmem>>, vector<1x8x8xf32>
    %145 = vector.shape_cast %144 : vector<1x8x8xf32> to vector<8x8xf32>
    %146 = vector.shape_cast %143 : vector<8x8xf32> to vector<1x8x8xf32>
    tpu.vector_store %arg16[%c2_112, %c0_113, %c0_114], %146 {strides = array<i32>} : memref<4x8x8xf32, #tpu.memory_space<vmem>>, vector<1x8x8xf32>,
    %c2_115 = arith.constant 2 : index
    %c0_116 = arith.constant 0 : index
    %c0_117 = arith.constant 0 : index
    %147 = vector.load %arg14[%c2_115, %c0_116, %c0_117] : memref<4x8x1xf32, #tpu.memory_space<vmem>>, vector<1x8x1xf32>
    %148 = vector.shape_cast %147 : vector<1x8x1xf32> to vector<8x1xf32>
    %149 = vector.shape_cast %122 : vector<8x1xf32> to vector<1x8x1xf32>
    tpu.vector_store %arg14[%c2_115, %c0_116, %c0_117], %149 {strides = array<i32>} : memref<4x8x1xf32, #tpu.memory_space<vmem>>, vector<1x8x1xf32>,
    %c0_118 = arith.constant 0 : index
    %c0_119 = arith.constant 0 : index
    %c3 = arith.constant 3 : index
    %c0_120 = arith.constant 0 : index
    %150 = vector.load %arg5[%c0_118, %c0_119, %c3, %c0_120] : memref<1x8x4x8xf32, #tpu.memory_space<vmem>>, vector<1x8x1x8xf32>
    %151 = vector.shape_cast %150 : vector<1x8x1x8xf32> to vector<8x8xf32>
    %152 = arith.truncf %151 : vector<8x8xf32> to vector<8x8xbf16>
    %c0_121 = arith.constant 0 : index
    %c0_122 = arith.constant 0 : index
    %c3_123 = arith.constant 3 : index
    %c0_124 = arith.constant 0 : index
    %153 = vector.load %arg6[%c0_121, %c0_122, %c3_123, %c0_124] : memref<1x8x4x8xf32, #tpu.memory_space<vmem>>, vector<1x8x1x8xf32>
    %154 = vector.shape_cast %153 : vector<1x8x1x8xf32> to vector<8x8xf32>
    %155 = arith.truncf %154 : vector<8x8xf32> to vector<8x8xbf16>
    %c0_125 = arith.constant 0 : index
    %c0_126 = arith.constant 0 : index
    %156 = vector.load %arg8[%c0_125, %c0_126] : memref<8x8xbf16, #tpu.memory_space<vmem>>, vector<8x8xbf16>
    %cst_127 = arith.constant dense<0.000000e+00> : vector<8x8xf32>
    %157 = tpu.matmul %152, %156, %cst_127 {dimension_numbers = #tpu.dot_dimension_numbers<[1], [0], [0], [1], [0, 0, 1, 1], [], []>} : vector<8x8xbf16>, vector<8x8xbf16>, vector<8x8xf32> -> vector<8x8xf32>
    %158 = arith.truncf %157 : vector<8x8xf32> to vector<8x8xbf16>
    %c0_128 = arith.constant 0 : index
    %c0_129 = arith.constant 0 : index
    %159 = vector.load %arg9[%c0_128, %c0_129] : memref<8x8xbf16, #tpu.memory_space<vmem>>, vector<8x8xbf16>
    %cst_130 = arith.constant dense<0.000000e+00> : vector<8x8xf32>
    %160 = tpu.matmul %155, %159, %cst_130 {dimension_numbers = #tpu.dot_dimension_numbers<[1], [0], [0], [1], [0, 0, 1, 1], [], []>} : vector<8x8xbf16>, vector<8x8xbf16>, vector<8x8xf32> -> vector<8x8xf32>
    %161 = arith.truncf %160 : vector<8x8xf32> to vector<8x8xbf16>
    %c3_131 = arith.constant 3 : index
    %c0_132 = arith.constant 0 : index
    %c0_133 = arith.constant 0 : index
    %162 = vector.load %arg13[%c3_131, %c0_132, %c0_133] : memref<4x8x8xbf16, #tpu.memory_space<vmem>>, vector<1x8x8xbf16>
    %163 = vector.shape_cast %162 : vector<1x8x8xbf16> to vector<8x8xbf16>
    %cst_134 = arith.constant dense<0.000000e+00> : vector<8x8xf32>
    %164 = tpu.matmul %163, %158, %cst_134 {dimension_numbers = #tpu.dot_dimension_numbers<[1], [1], [0], [0], [0, 0, 1, 0], [], []>} : vector<8x8xbf16>, vector<8x8xbf16>, vector<8x8xf32> -> vector<8x8xf32>
    %165 = arith.addf %164, %5 : vector<8x8xf32>
    %c3_135 = arith.constant 3 : index
    %c0_136 = arith.constant 0 : index
    %c0_137 = arith.constant 0 : index
    %166 = vector.load %arg14[%c3_135, %c0_136, %c0_137] : memref<4x8x1xf32, #tpu.memory_space<vmem>>, vector<1x8x1xf32>
    %167 = vector.shape_cast %166 : vector<1x8x1xf32> to vector<8x1xf32>
    %cst_138 = arith.constant dense<0xFF800000> : vector<8xf32>
    %168 = vector.multi_reduction <maximumf>, %165, %cst_138 [1] : vector<8x8xf32> to vector<8xf32>
    %169 = vector.shape_cast %168 : vector<8xf32> to vector<8x1xf32>
    %170 = arith.maximumf %167, %169 : vector<8x1xf32>
    %171 = arith.subf %167, %170 : vector<8x1xf32>
    %172 = math.exp %171 : vector<8x1xf32>
    %173 = vector.broadcast %170 : vector<8x1xf32> to vector<8x8xf32>
    %174 = arith.subf %165, %173 : vector<8x8xf32>
    %175 = math.exp %174 : vector<8x8xf32>
    %c3_139 = arith.constant 3 : index
    %c0_140 = arith.constant 0 : index
    %c0_141 = arith.constant 0 : index
    %176 = vector.load %arg15[%c3_139, %c0_140, %c0_141] : memref<4x8x1xf32, #tpu.memory_space<vmem>>, vector<1x8x1xf32>
    %177 = vector.shape_cast %176 : vector<1x8x1xf32> to vector<8x1xf32>
    %178 = arith.mulf %172, %177 : vector<8x1xf32>
    %cst_142 = arith.constant dense<0.000000e+00> : vector<8xf32>
    %179 = vector.multi_reduction <add>, %175, %cst_142 [1] : vector<8x8xf32> to vector<8xf32>
    %180 = vector.shape_cast %179 : vector<8xf32> to vector<8x1xf32>
    %181 = arith.addf %178, %180 : vector<8x1xf32>
    %c3_143 = arith.constant 3 : index
    %c0_144 = arith.constant 0 : index
    %c0_145 = arith.constant 0 : index
    %182 = vector.load %arg15[%c3_143, %c0_144, %c0_145] : memref<4x8x1xf32, #tpu.memory_space<vmem>>, vector<1x8x1xf32>
    %183 = vector.shape_cast %182 : vector<1x8x1xf32> to vector<8x1xf32>
    %184 = vector.shape_cast %181 : vector<8x1xf32> to vector<1x8x1xf32>
    tpu.vector_store %arg15[%c3_143, %c0_144, %c0_145], %184 {strides = array<i32>} : memref<4x8x1xf32, #tpu.memory_space<vmem>>, vector<1x8x1xf32>,
    %c3_146 = arith.constant 3 : index
    %c0_147 = arith.constant 0 : index
    %c0_148 = arith.constant 0 : index
    %185 = vector.load %arg16[%c3_146, %c0_147, %c0_148] : memref<4x8x8xf32, #tpu.memory_space<vmem>>, vector<1x8x8xf32>
    %186 = vector.shape_cast %185 : vector<1x8x8xf32> to vector<8x8xf32>
    %187 = vector.broadcast %172 : vector<8x1xf32> to vector<8x8xf32>
    %188 = arith.mulf %187, %186 : vector<8x8xf32>
    %189 = arith.truncf %175 : vector<8x8xf32> to vector<8x8xbf16>
    %cst_149 = arith.constant dense<0.000000e+00> : vector<8x8xf32>
    %190 = tpu.matmul %189, %161, %cst_149 {dimension_numbers = #tpu.dot_dimension_numbers<[1], [0], [0], [1], [0, 0, 1, 1], [], []>} : vector<8x8xbf16>, vector<8x8xbf16>, vector<8x8xf32> -> vector<8x8xf32>
    %191 = arith.addf %188, %190 : vector<8x8xf32>
    %c3_150 = arith.constant 3 : index
    %c0_151 = arith.constant 0 : index
    %c0_152 = arith.constant 0 : index
    %192 = vector.load %arg16[%c3_150, %c0_151, %c0_152] : memref<4x8x8xf32, #tpu.memory_space<vmem>>, vector<1x8x8xf32>
    %193 = vector.shape_cast %192 : vector<1x8x8xf32> to vector<8x8xf32>
    %194 = vector.shape_cast %191 : vector<8x8xf32> to vector<1x8x8xf32>
    tpu.vector_store %arg16[%c3_150, %c0_151, %c0_152], %194 {strides = array<i32>} : memref<4x8x8xf32, #tpu.memory_space<vmem>>, vector<1x8x8xf32>,
    %c3_153 = arith.constant 3 : index
    %c0_154 = arith.constant 0 : index
    %c0_155 = arith.constant 0 : index
    %195 = vector.load %arg14[%c3_153, %c0_154, %c0_155] : memref<4x8x1xf32, #tpu.memory_space<vmem>>, vector<1x8x1xf32>
    %196 = vector.shape_cast %195 : vector<1x8x1xf32> to vector<8x1xf32>
    %197 = vector.shape_cast %170 : vector<8x1xf32> to vector<1x8x1xf32>
    tpu.vector_store %arg14[%c3_153, %c0_154, %c0_155], %197 {strides = array<i32>} : memref<4x8x1xf32, #tpu.memory_space<vmem>>, vector<1x8x1xf32>,
    %c0_i32_156 = arith.constant 0 : i32
    %198 = arith.cmpi eq, %arg2, %c0_i32_156 : i32
    %199 = arith.extui %198 : i1 to i32
    %c0_i32_157 = arith.constant 0 : i32
    %200 = arith.cmpi ne, %199, %c0_i32_157 : i32
    scf.if %200 {
      %cst_158 = arith.constant 0.000000e+00 : f32
      %201 = vector.broadcast %cst_158 : f32 to vector<8x32xf32>
      %c0_159 = arith.constant 0 : index
      %c0_160 = arith.constant 0 : index
      %c0_161 = arith.constant 0 : index
      %202 = vector.load %arg16[%c0_159, %c0_160, %c0_161] : memref<4x8x8xf32, #tpu.memory_space<vmem>>, vector<1x8x8xf32>
      %203 = vector.shape_cast %202 : vector<1x8x8xf32> to vector<8x8xf32>
      %c0_162 = arith.constant 0 : index
      %c0_163 = arith.constant 0 : index
      %c0_164 = arith.constant 0 : index
      %204 = vector.load %arg15[%c0_162, %c0_163, %c0_164] : memref<4x8x1xf32, #tpu.memory_space<vmem>>, vector<1x8x1xf32>
      %205 = vector.shape_cast %204 : vector<1x8x1xf32> to vector<8x1xf32>
      %206 = vector.broadcast %205 : vector<8x1xf32> to vector<8x8xf32>
      %207 = arith.divf %203, %206 : vector<8x8xf32>
      %208 = arith.truncf %207 : vector<8x8xf32> to vector<8x8xbf16>
      %c0_165 = arith.constant 0 : index
      %c0_166 = arith.constant 0 : index
      %c0_167 = arith.constant 0 : index
      %209 = vector.load %arg10[%c0_165, %c0_166, %c0_167] : memref<4x8x32xbf16, #tpu.memory_space<vmem>>, vector<1x8x32xbf16>
      %210 = vector.shape_cast %209 : vector<1x8x32xbf16> to vector<8x32xbf16>
      %cst_168 = arith.constant dense<0.000000e+00> : vector<8x32xf32>
      %211 = tpu.matmul %208, %210, %cst_168 {dimension_numbers = #tpu.dot_dimension_numbers<[1], [0], [0], [1], [0, 0, 1, 1], [], []>} : vector<8x8xbf16>, vector<8x32xbf16>, vector<8x32xf32> -> vector<8x32xf32>
      %212 = arith.addf %201, %211 : vector<8x32xf32>
      %c1_169 = arith.constant 1 : index
      %c0_170 = arith.constant 0 : index
      %c0_171 = arith.constant 0 : index
      %213 = vector.load %arg16[%c1_169, %c0_170, %c0_171] : memref<4x8x8xf32, #tpu.memory_space<vmem>>, vector<1x8x8xf32>
      %214 = vector.shape_cast %213 : vector<1x8x8xf32> to vector<8x8xf32>
      %c1_172 = arith.constant 1 : index
      %c0_173 = arith.constant 0 : index
      %c0_174 = arith.constant 0 : index
      %215 = vector.load %arg15[%c1_172, %c0_173, %c0_174] : memref<4x8x1xf32, #tpu.memory_space<vmem>>, vector<1x8x1xf32>
      %216 = vector.shape_cast %215 : vector<1x8x1xf32> to vector<8x1xf32>
      %217 = vector.broadcast %216 : vector<8x1xf32> to vector<8x8xf32>
      %218 = arith.divf %214, %217 : vector<8x8xf32>
      %219 = arith.truncf %218 : vector<8x8xf32> to vector<8x8xbf16>
      %c1_175 = arith.constant 1 : index
      %c0_176 = arith.constant 0 : index
      %c0_177 = arith.constant 0 : index
      %220 = vector.load %arg10[%c1_175, %c0_176, %c0_177] : memref<4x8x32xbf16, #tpu.memory_space<vmem>>, vector<1x8x32xbf16>
      %221 = vector.shape_cast %220 : vector<1x8x32xbf16> to vector<8x32xbf16>
      %cst_178 = arith.constant dense<0.000000e+00> : vector<8x32xf32>
      %222 = tpu.matmul %219, %221, %cst_178 {dimension_numbers = #tpu.dot_dimension_numbers<[1], [0], [0], [1], [0, 0, 1, 1], [], []>} : vector<8x8xbf16>, vector<8x32xbf16>, vector<8x32xf32> -> vector<8x32xf32>
      %223 = arith.addf %212, %222 : vector<8x32xf32>
      %c2_179 = arith.constant 2 : index
      %c0_180 = arith.constant 0 : index
      %c0_181 = arith.constant 0 : index
      %224 = vector.load %arg16[%c2_179, %c0_180, %c0_181] : memref<4x8x8xf32, #tpu.memory_space<vmem>>, vector<1x8x8xf32>
      %225 = vector.shape_cast %224 : vector<1x8x8xf32> to vector<8x8xf32>
      %c2_182 = arith.constant 2 : index
      %c0_183 = arith.constant 0 : index
      %c0_184 = arith.constant 0 : index
      %226 = vector.load %arg15[%c2_182, %c0_183, %c0_184] : memref<4x8x1xf32, #tpu.memory_space<vmem>>, vector<1x8x1xf32>
      %227 = vector.shape_cast %226 : vector<1x8x1xf32> to vector<8x1xf32>
      %228 = vector.broadcast %227 : vector<8x1xf32> to vector<8x8xf32>
      %229 = arith.divf %225, %228 : vector<8x8xf32>
      %230 = arith.truncf %229 : vector<8x8xf32> to vector<8x8xbf16>
      %c2_185 = arith.constant 2 : index
      %c0_186 = arith.constant 0 : index
      %c0_187 = arith.constant 0 : index
      %231 = vector.load %arg10[%c2_185, %c0_186, %c0_187] : memref<4x8x32xbf16, #tpu.memory_space<vmem>>, vector<1x8x32xbf16>
      %232 = vector.shape_cast %231 : vector<1x8x32xbf16> to vector<8x32xbf16>
      %cst_188 = arith.constant dense<0.000000e+00> : vector<8x32xf32>
      %233 = tpu.matmul %230, %232, %cst_188 {dimension_numbers = #tpu.dot_dimension_numbers<[1], [0], [0], [1], [0, 0, 1, 1], [], []>} : vector<8x8xbf16>, vector<8x32xbf16>, vector<8x32xf32> -> vector<8x32xf32>
      %234 = arith.addf %223, %233 : vector<8x32xf32>
      %c3_189 = arith.constant 3 : index
      %c0_190 = arith.constant 0 : index
      %c0_191 = arith.constant 0 : index
      %235 = vector.load %arg16[%c3_189, %c0_190, %c0_191] : memref<4x8x8xf32, #tpu.memory_space<vmem>>, vector<1x8x8xf32>
      %236 = vector.shape_cast %235 : vector<1x8x8xf32> to vector<8x8xf32>
      %c3_192 = arith.constant 3 : index
      %c0_193 = arith.constant 0 : index
      %c0_194 = arith.constant 0 : index
      %237 = vector.load %arg15[%c3_192, %c0_193, %c0_194] : memref<4x8x1xf32, #tpu.memory_space<vmem>>, vector<1x8x1xf32>
      %238 = vector.shape_cast %237 : vector<1x8x1xf32> to vector<8x1xf32>
      %239 = vector.broadcast %238 : vector<8x1xf32> to vector<8x8xf32>
      %240 = arith.divf %236, %239 : vector<8x8xf32>
      %241 = arith.truncf %240 : vector<8x8xf32> to vector<8x8xbf16>
      %c3_195 = arith.constant 3 : index
      %c0_196 = arith.constant 0 : index
      %c0_197 = arith.constant 0 : index
      %242 = vector.load %arg10[%c3_195, %c0_196, %c0_197] : memref<4x8x32xbf16, #tpu.memory_space<vmem>>, vector<1x8x32xbf16>
      %243 = vector.shape_cast %242 : vector<1x8x32xbf16> to vector<8x32xbf16>
      %cst_198 = arith.constant dense<0.000000e+00> : vector<8x32xf32>
      %244 = tpu.matmul %241, %243, %cst_198 {dimension_numbers = #tpu.dot_dimension_numbers<[1], [0], [0], [1], [0, 0, 1, 1], [], []>} : vector<8x8xbf16>, vector<8x32xbf16>, vector<8x32xf32> -> vector<8x32xf32>
      %245 = arith.addf %234, %244 : vector<8x32xf32>
      %c0_199 = arith.constant 0 : index
      %c0_200 = arith.constant 0 : index
      %246 = vector.load %arg11[%c0_199, %c0_200] : memref<1x32xf32, #tpu.memory_space<vmem>>, vector<1x32xf32>
      %247 = vector.broadcast %246 : vector<1x32xf32> to vector<8x32xf32>
      %248 = arith.addf %245, %247 : vector<8x32xf32>
      %c0_201 = arith.constant 0 : index
      %c0_202 = arith.constant 0 : index
      %c0_203 = arith.constant 0 : index
      %249 = vector.load %arg12[%c0_201, %c0_202, %c0_203] : memref<1x8x32xf32, #tpu.memory_space<vmem>>, vector<1x8x32xf32>
      %250 = vector.shape_cast %249 : vector<1x8x32xf32> to vector<8x32xf32>
      %251 = vector.shape_cast %248 : vector<8x32xf32> to vector<1x8x32xf32>
      tpu.vector_store %arg12[%c0_201, %c0_202, %c0_203], %251 {strides = array<i32>} : memref<1x8x32xf32, #tpu.memory_space<vmem>>, vector<1x8x32xf32>,
    } else {
    }
    return
  }
  func.func @transform_0(%arg0: i32, %arg1: i32, %arg2: i32) -> (i32, i32, i32, i32) {
    %c0_i32 = arith.constant 0 : i32
    %c0_i32_0 = arith.constant 0 : i32
    return %arg0, %c0_i32, %arg1, %arg2 : i32, i32, i32, i32
  }
  func.func @transform_1(%arg0: i32, %arg1: i32, %arg2: i32) -> (i32, i32, i32, i32) {
    %c0_i32 = arith.constant 0 : i32
    %c0_i32_0 = arith.constant 0 : i32
    %c0_i32_1 = arith.constant 0 : i32
    return %arg0, %arg1, %c0_i32, %c0_i32_0 : i32, i32, i32, i32
  }
  func.func @transform_2(%arg0: i32, %arg1: i32, %arg2: i32) -> (i32, i32, i32, i32) {
    %c0_i32 = arith.constant 0 : i32
    %c0_i32_0 = arith.constant 0 : i32
    %c0_i32_1 = arith.constant 0 : i32
    return %arg0, %arg2, %c0_i32, %c0_i32_0 : i32, i32, i32, i32
  }
  func.func @transform_3(%arg0: i32, %arg1: i32, %arg2: i32) -> (i32, i32, i32, i32) {
    %c0_i32 = arith.constant 0 : i32
    %c0_i32_0 = arith.constant 0 : i32
    %c0_i32_1 = arith.constant 0 : i32
    return %arg0, %arg2, %c0_i32, %c0_i32_0 : i32, i32, i32, i32
  }
  func.func @transform_4(%arg0: i32, %arg1: i32, %arg2: i32) -> (i32, i32) {
    %c0_i32 = arith.constant 0 : i32
    %c0_i32_0 = arith.constant 0 : i32
    %c0_i32_1 = arith.constant 0 : i32
    return %c0_i32, %c0_i32_0 : i32, i32
  }
  func.func @transform_5(%arg0: i32, %arg1: i32, %arg2: i32) -> (i32, i32) {
    %c0_i32 = arith.constant 0 : i32
    %c0_i32_0 = arith.constant 0 : i32
    %c0_i32_1 = arith.constant 0 : i32
    return %c0_i32, %c0_i32_0 : i32, i32
  }
  func.func @transform_6(%arg0: i32, %arg1: i32, %arg2: i32) -> (i32, i32) {
    %c0_i32 = arith.constant 0 : i32
    %c0_i32_0 = arith.constant 0 : i32
    %c0_i32_1 = arith.constant 0 : i32
    return %c0_i32, %c0_i32_0 : i32, i32
  }
  func.func @transform_7(%arg0: i32, %arg1: i32, %arg2: i32) -> (i32, i32, i32) {
    %c0_i32 = arith.constant 0 : i32
    %c0_i32_0 = arith.constant 0 : i32
    %c0_i32_1 = arith.constant 0 : i32
    %c0_i32_2 = arith.constant 0 : i32
    return %c0_i32, %c0_i32_0, %c0_i32_1 : i32, i32, i32
  }
  func.func @transform_8(%arg0: i32, %arg1: i32, %arg2: i32) -> (i32, i32) {
    %c0_i32 = arith.constant 0 : i32
    %c0_i32_0 = arith.constant 0 : i32
    %c0_i32_1 = arith.constant 0 : i32
    return %c0_i32, %c0_i32_0 : i32, i32
  }
  func.func @transform_9(%arg0: i32, %arg1: i32, %arg2: i32) -> (i32, i32, i32) {
    %c0_i32 = arith.constant 0 : i32
    %c0_i32_0 = arith.constant 0 : i32
    return %arg0, %arg1, %c0_i32 : i32, i32, i32
  }
}

</mosaic_0001>

<llo_original>
// kernel: self_attention_forward.1
$region0: #{self_attention_forward.1}
  #allocation0 [shape = 'u32[]', space=smem, size = 0x4, offset = 0x4, fixed_abs, tag = 'smem constant byte address 0x4 - core index']
  #allocation1 [shape = 'u32[144,128]{1,0:T(1,128)}', space=vmem, size = 0x12000, scoped, tag = 'internal scratch']
  #allocation2 [shape = 'bf16[4,8,8]{2,1,0:T(8,128)(2,1)}', space=vmem, size = 0x2000, scoped, tag = 'scratch operand']
  #allocation3 [shape = 'f32[4,8,1]{2,1,0:T(8,128)}', space=vmem, size = 0x4000, scoped, tag = 'scratch operand']
  #allocation4 [shape = 'f32[4,8,1]{2,1,0:T(8,128)}', space=vmem, size = 0x4000, scoped, tag = 'scratch operand']
  #allocation5 [shape = 'f32[4,8,8]{2,1,0:T(8,128)}', space=vmem, size = 0x4000, scoped, tag = 'scratch operand']
  %s0 = inlined_call_operand.vmem [shape: bf16[2,1,8,8], index: 0, kind: input, shape index: {}]
  %s1 = inlined_call_operand.vmem [shape: f32[2,8,4,8], index: 1, kind: input, shape index: {}]
  %s2 = inlined_call_operand.vmem [shape: f32[2,8,4,8], index: 2, kind: input, shape index: {}]
  %s3 = inlined_call_operand.vmem [shape: f32[2,8,4,8], index: 3, kind: input, shape index: {}]
  %s4 = inlined_call_operand.vmem [shape: bf16[8,8], index: 4, kind: input, shape index: {}]
  %s5 = inlined_call_operand.vmem [shape: bf16[8,8], index: 5, kind: input, shape index: {}]
  %s6 = inlined_call_operand.vmem [shape: bf16[8,8], index: 6, kind: input, shape index: {}]
  %s7 = inlined_call_operand.vmem [shape: bf16[4,8,32], index: 7, kind: input, shape index: {}]
  %s8 = inlined_call_operand.vmem [shape: f32[1,32], index: 8, kind: input, shape index: {}]
  %s9 = inlined_call_operand.hbm [shape: f32[2,8,32], index: 9, kind: output, shape index: {}]
  %s10 = sld [smem:[#allocation0]]
  $region77: #{self_attention_forward.1} parent=0
    _
  %s12 = ssub.s32 1, %s10
  %s13 = scalar_select 0, %s12, %s10
  $region1: #{self_attention_forward.1} parent=0
    #allocation6 [shape = 'u8[8192]{0}', space=vmem, size = 0x2000, scoped, tag = 'output window, operand 0']
    #allocation7 [shape = 's32[2]{0}', space=sflag, size = 0x8, scoped, tag = 'scoped memory for self_attention_forward.1']
    %14 = vsyncpa [#allocation7], 0
    %s15 = scalar_lea.sflag [#allocation7], 1
    %16 = vsyncpa %s15, 0
    loop: start=0, step=1, limit=4
    $region2: #{self_attention_forward.1} parent=1 // loop_pre_header
      _
    $region3: #{self_attention_forward.1} parent=1 // loop_header
      %s18 = sphi 0, %s22
      %p19 = scmp.ge.s32.totalorder %s18, 4
      %s25 = sphi 0, %s44
      %s26 = sphi 0, %s40
      %s27 = sphi 0, %s36
      %s28 = sphi 0, %s25
      %s29 = sphi 0, %s26
      %s30 = sphi 0, %s27
      %s31 = sphi 0, %s28
      %s32 = sphi 0, %s29
      %s33 = sphi 0, %s30
      %s51 = sphi 0, %s53
      %s54 = sphi 0, %s51
      %s55 = sphi 0, %s54
      %s71 = sphi 0, %s55
      %s79 = sphi 0, %s81
      %s82 = sphi 0, %s79
      %s83 = sphi 0, %s82
      %s99 = sphi 0, %s83
      %s107 = sphi 0, %s109
      %s110 = sphi 0, %s107
      %s111 = sphi 0, %s110
      %s127 = sphi 0, %s111
      %s135 = sphi 0, %s137
      %s138 = sphi 0, %s135
      %s139 = sphi 0, %s138
      %s155 = sphi 0, %s139
      %s159 = sphi 0, %s159
      %s161 = sphi 0, %s159
      %s162 = sphi 0, %s161
      %s176 = sphi 0, %s162
      %s180 = sphi 0, %s180
      %s182 = sphi 0, %s180
      %s183 = sphi 0, %s182
      %s197 = sphi 0, %s183
      %s201 = sphi 0, %s201
      %s203 = sphi 0, %s201
      %s204 = sphi 0, %s203
      %s218 = sphi 0, %s204
      %s222 = sphi 0, %s222
      %s224 = sphi 0, %s222
      %s225 = sphi 0, %s224
      %s239 = sphi 0, %s225
      %s243 = sphi 0, %s243
      %s245 = sphi 0, %s243
      %s246 = sphi 0, %s245
      %s260 = sphi 0, %s246
      %s268 = sphi 0, %s270
      %s271 = sphi 0, %s268
      %s272 = sphi 0, %s271
      %s288 = sphi 0, %s272
    $region4: #{self_attention_forward.1} parent=1 // loop_header_branch
      %21 = sbr.rel (%p19) target = $region8
    $region5: #{self_attention_forward.1} parent=1 // loop_body
      %s23 = ssub.s32 %s18, 1
      %s24 = ssub.s32 %s18, 2
      %s34 = sadd.s32 1, %s27
      %p35 = scmp.ge.s32.totalorder %s34, 1
      %s36 = scalar_select %p35, 0, %s34
      %s37 = sadd.s32 1, %s26
      %s38 = scalar_select %p35, %s37, %s26
      %p39 = scmp.ge.s32.totalorder %s38, 1
      %s40 = scalar_select %p39, 0, %s38
      %s41 = sadd.s32 1, %s25
      %s42 = scalar_select %p39, %s41, %s25
      %p43 = scmp.ge.s32.totalorder %s42, 2
      %s44 = scalar_select %p43, 0, %s42
      %s45 = ssub.s32 %s25, %s44
      %s46 = ssub.s32 %s26, %s40
      %s47 = sor.u32 %s45, %s46
      %s48 = ssub.s32 %s27, %s36
      %s49 = sor.u32 %s47, %s48
      %p50 = scmp.eq.s32.totalorder %s49, 0
      %s52 = sadd.s32 %s51, 1
      %s53 = scalar_select %p50, %s51, %s52
      %p56 = pneg %p50
      %p57 = scmp.eq.s32.totalorder %s18, 1
      %p58 = por %p56, %p57
      %p59 = scmp.ne.s32.totalorder %s51, %s54
      %p60 = scmp.eq.s32.totalorder %s18, 0
      %p61 = por %p59, %p60
      %p62 = scmp.ne.s32.totalorder %s51, %s54
      %p63 = scmp.eq.s32.totalorder %s23, 1
      %p64 = por %p62, %p63
      %p65 = scmp.ne.s32.totalorder %s54, %s55
      %p66 = scmp.eq.s32.totalorder %s23, 0
      %p67 = por %p65, %p66
      %p68 = scmp.ne.s32.totalorder %s54, %s55
      %p69 = scmp.eq.s32.totalorder %s24, 1
      %p70 = por %p68, %p69
      %p72 = scmp.ne.s32.totalorder %s55, %s71
      %p73 = scmp.eq.s32.totalorder %s24, 0
      %p74 = por %p72, %p73
      %s75 = ssub.s32 %s25, %s44
      %s76 = ssub.s32 %s26, %s40
      %s77 = sor.u32 %s75, %s76
      %p78 = scmp.eq.s32.totalorder %s77, 0
      %s80 = sadd.s32 %s79, 1
      %s81 = scalar_select %p78, %s79, %s80
      %p84 = pneg %p78
      %p85 = scmp.eq.s32.totalorder %s18, 1
      %p86 = por %p84, %p85
      %p87 = scmp.ne.s32.totalorder %s79, %s82
      %p88 = scmp.eq.s32.totalorder %s18, 0
      %p89 = por %p87, %p88
      %p90 = scmp.ne.s32.totalorder %s79, %s82
      %p91 = scmp.eq.s32.totalorder %s23, 1
      %p92 = por %p90, %p91
      %p93 = scmp.ne.s32.totalorder %s82, %s83
      %p94 = scmp.eq.s32.totalorder %s23, 0
      %p95 = por %p93, %p94
      %p96 = scmp.ne.s32.totalorder %s82, %s83
      %p97 = scmp.eq.s32.totalorder %s24, 1
      %p98 = por %p96, %p97
      %p100 = scmp.ne.s32.totalorder %s83, %s99
      %p101 = scmp.eq.s32.totalorder %s24, 0
      %p102 = por %p100, %p101
      %s103 = ssub.s32 %s25, %s44
      %s104 = ssub.s32 %s27, %s36
      %s105 = sor.u32 %s103, %s104
      %p106 = scmp.eq.s32.totalorder %s105, 0
      %s108 = sadd.s32 %s107, 1
      %s109 = scalar_select %p106, %s107, %s108
      %p112 = pneg %p106
      %p113 = scmp.eq.s32.totalorder %s18, 1
      %p114 = por %p112, %p113
      %p115 = scmp.ne.s32.totalorder %s107, %s110
      %p116 = scmp.eq.s32.totalorder %s18, 0
      %p117 = por %p115, %p116
      %p118 = scmp.ne.s32.totalorder %s107, %s110
      %p119 = scmp.eq.s32.totalorder %s23, 1
      %p120 = por %p118, %p119
      %p121 = scmp.ne.s32.totalorder %s110, %s111
      %p122 = scmp.eq.s32.totalorder %s23, 0
      %p123 = por %p121, %p122
      %p124 = scmp.ne.s32.totalorder %s110, %s111
      %p125 = scmp.eq.s32.totalorder %s24, 1
      %p126 = por %p124, %p125
      %p128 = scmp.ne.s32.totalorder %s111, %s127
      %p129 = scmp.eq.s32.totalorder %s24, 0
      %p130 = por %p128, %p129
      %s131 = ssub.s32 %s25, %s44
      %s132 = ssub.s32 %s27, %s36
      %s133 = sor.u32 %s131, %s132
      %p134 = scmp.eq.s32.totalorder %s133, 0
      %s136 = sadd.s32 %s135, 1
      %s137 = scalar_select %p134, %s135, %s136
      %p140 = pneg %p134
      %p141 = scmp.eq.s32.totalorder %s18, 1
      %p142 = por %p140, %p141
      %p143 = scmp.ne.s32.totalorder %s135, %s138
      %p144 = scmp.eq.s32.totalorder %s18, 0
      %p145 = por %p143, %p144
      %p146 = scmp.ne.s32.totalorder %s135, %s138
      %p147 = scmp.eq.s32.totalorder %s23, 1
      %p148 = por %p146, %p147
      %p149 = scmp.ne.s32.totalorder %s138, %s139
      %p150 = scmp.eq.s32.totalorder %s23, 0
      %p151 = por %p149, %p150
      %p152 = scmp.ne.s32.totalorder %s138, %s139
      %p153 = scmp.eq.s32.totalorder %s24, 1
      %p154 = por %p152, %p153
      %p156 = scmp.ne.s32.totalorder %s139, %s155
      %p157 = scmp.eq.s32.totalorder %s24, 0
      %p158 = por %p156, %p157
      %s160 = sadd.s32 %s159, 1
      %p163 = scmp.eq.s32.totalorder %s18, 1
      %p164 = scmp.ne.s32.totalorder %s159, %s161
      %p165 = scmp.eq.s32.totalorder %s18, 0
      %p166 = por %p164, %p165
      %p167 = scmp.ne.s32.totalorder %s159, %s161
      %p168 = scmp.eq.s32.totalorder %s23, 1
      %p169 = por %p167, %p168
      %p170 = scmp.ne.s32.totalorder %s161, %s162
      %p171 = scmp.eq.s32.totalorder %s23, 0
      %p172 = por %p170, %p171
      %p173 = scmp.ne.s32.totalorder %s161, %s162
      %p174 = scmp.eq.s32.totalorder %s24, 1
      %p175 = por %p173, %p174
      %p177 = scmp.ne.s32.totalorder %s162, %s176
      %p178 = scmp.eq.s32.totalorder %s24, 0
      %p179 = por %p177, %p178
      %s181 = sadd.s32 %s180, 1
      %p184 = scmp.eq.s32.totalorder %s18, 1
      %p185 = scmp.ne.s32.totalorder %s180, %s182
      %p186 = scmp.eq.s32.totalorder %s18, 0
      %p187 = por %p185, %p186
      %p188 = scmp.ne.s32.totalorder %s180, %s182
      %p189 = scmp.eq.s32.totalorder %s23, 1
      %p190 = por %p188, %p189
      %p191 = scmp.ne.s32.totalorder %s182, %s183
      %p192 = scmp.eq.s32.totalorder %s23, 0
      %p193 = por %p191, %p192
      %p194 = scmp.ne.s32.totalorder %s182, %s183
      %p195 = scmp.eq.s32.totalorder %s24, 1
      %p196 = por %p194, %p195
      %p198 = scmp.ne.s32.totalorder %s183, %s197
      %p199 = scmp.eq.s32.totalorder %s24, 0
      %p200 = por %p198, %p199
      %s202 = sadd.s32 %s201, 1
      %p205 = scmp.eq.s32.totalorder %s18, 1
      %p206 = scmp.ne.s32.totalorder %s201, %s203
      %p207 = scmp.eq.s32.totalorder %s18, 0
      %p208 = por %p206, %p207
      %p209 = scmp.ne.s32.totalorder %s201, %s203
      %p210 = scmp.eq.s32.totalorder %s23, 1
      %p211 = por %p209, %p210
      %p212 = scmp.ne.s32.totalorder %s203, %s204
      %p213 = scmp.eq.s32.totalorder %s23, 0
      %p214 = por %p212, %p213
      %p215 = scmp.ne.s32.totalorder %s203, %s204
      %p216 = scmp.eq.s32.totalorder %s24, 1
      %p217 = por %p215, %p216
      %p219 = scmp.ne.s32.totalorder %s204, %s218
      %p220 = scmp.eq.s32.totalorder %s24, 0
      %p221 = por %p219, %p220
      %s223 = sadd.s32 %s222, 1
      %p226 = scmp.eq.s32.totalorder %s18, 1
      %p227 = scmp.ne.s32.totalorder %s222, %s224
      %p228 = scmp.eq.s32.totalorder %s18, 0
      %p229 = por %p227, %p228
      %p230 = scmp.ne.s32.totalorder %s222, %s224
      %p231 = scmp.eq.s32.totalorder %s23, 1
      %p232 = por %p230, %p231
      %p233 = scmp.ne.s32.totalorder %s224, %s225
      %p234 = scmp.eq.s32.totalorder %s23, 0
      %p235 = por %p233, %p234
      %p236 = scmp.ne.s32.totalorder %s224, %s225
      %p237 = scmp.eq.s32.totalorder %s24, 1
      %p238 = por %p236, %p237
      %p240 = scmp.ne.s32.totalorder %s225, %s239
      %p241 = scmp.eq.s32.totalorder %s24, 0
      %p242 = por %p240, %p241
      %s244 = sadd.s32 %s243, 1
      %p247 = scmp.eq.s32.totalorder %s18, 1
      %p248 = scmp.ne.s32.totalorder %s243, %s245
      %p249 = scmp.eq.s32.totalorder %s18, 0
      %p250 = por %p248, %p249
      %p251 = scmp.ne.s32.totalorder %s243, %s245
      %p252 = scmp.eq.s32.totalorder %s23, 1
      %p253 = por %p251, %p252
      %p254 = scmp.ne.s32.totalorder %s245, %s246
      %p255 = scmp.eq.s32.totalorder %s23, 0
      %p256 = por %p254, %p255
      %p257 = scmp.ne.s32.totalorder %s245, %s246
      %p258 = scmp.eq.s32.totalorder %s24, 1
      %p259 = por %p257, %p258
      %p261 = scmp.ne.s32.totalorder %s246, %s260
      %p262 = scmp.eq.s32.totalorder %s24, 0
      %p263 = por %p261, %p262
      %s264 = ssub.s32 %s25, %s44
      %s265 = ssub.s32 %s26, %s40
      %s266 = sor.u32 %s264, %s265
      %p267 = scmp.eq.s32.totalorder %s266, 0
      %s269 = sadd.s32 %s268, 1
      %s270 = scalar_select %p267, %s268, %s269
      %p273 = pneg %p267
      %p274 = scmp.eq.s32.totalorder %s18, 1
      %p275 = por %p273, %p274
      %p276 = scmp.ne.s32.totalorder %s268, %s271
      %p277 = scmp.eq.s32.totalorder %s18, 0
      %p278 = por %p276, %p277
      %p279 = scmp.ne.s32.totalorder %s268, %s271
      %p280 = scmp.eq.s32.totalorder %s23, 1
      %p281 = por %p279, %p280
      %p282 = scmp.ne.s32.totalorder %s271, %s272
      %p283 = scmp.eq.s32.totalorder %s23, 0
      %p284 = por %p282, %p283
      %p285 = scmp.ne.s32.totalorder %s271, %s272
      %p286 = scmp.eq.s32.totalorder %s24, 1
      %p287 = por %p285, %p286
      %p289 = scmp.ne.s32.totalorder %s272, %s288
      %p290 = scmp.eq.s32.totalorder %s24, 0
      %p291 = por %p289, %p290
      %p292 = scmp.le.s32.totalorder 1, %s18
      %p293 = scmp.lt.s32.totalorder %s18, 3
      %p294 = pnand %p292, %p293
      %p295 = pneg %p294
      // Predicated region
      $region9: #{self_attention_forward.1} parent=5 // pred_check
        _
      $region10: #{self_attention_forward.1} parent=5 // pred_check_branch
        %297 = sbr.rel (%p294) target = $region12
      $region11: #{self_attention_forward.1} parent=5 // pred_region
        %s298 = ssub.s32 %s18, 1
        // Predicated region
        $region13: #{self_attention_forward.1} parent=11 // pred_check
          %p299 = pneg %p172
        $region14: #{self_attention_forward.1} parent=11 // pred_check_branch
          %301 = sbr.rel (%p299) target = $region16
        $region15: #{self_attention_forward.1} parent=11 // pred_region
          _
        $region16: #{self_attention_forward.1} parent=11 // pred_fallthru
          _
        // Predicated region
        $region17: #{self_attention_forward.1} parent=11 // pred_check
          %p302 = pneg %p193
        $region18: #{self_attention_forward.1} parent=11 // pred_check_branch
          %304 = sbr.rel (%p302) target = $region20
        $region19: #{self_attention_forward.1} parent=11 // pred_region
          _
        $region20: #{self_attention_forward.1} parent=11 // pred_fallthru
          _
        // Predicated region
        $region21: #{self_attention_forward.1} parent=11 // pred_check
          %p305 = pneg %p214
        $region22: #{self_attention_forward.1} parent=11 // pred_check_branch
          %307 = sbr.rel (%p305) target = $region24
        $region23: #{self_attention_forward.1} parent=11 // pred_region
          _
        $region24: #{self_attention_forward.1} parent=11 // pred_fallthru
          _
        // Predicated region
        $region25: #{self_attention_forward.1} parent=11 // pred_check
          %p308 = pneg %p235
        $region26: #{self_attention_forward.1} parent=11 // pred_check_branch
          %310 = sbr.rel (%p308) target = $region28
        $region27: #{self_attention_forward.1} parent=11 // pred_region
          _
        $region28: #{self_attention_forward.1} parent=11 // pred_fallthru
          _
        // Predicated region
        $region29: #{self_attention_forward.1} parent=11 // pred_check
          %p311 = pneg %p256
        $region30: #{self_attention_forward.1} parent=11 // pred_check_branch
          %313 = sbr.rel (%p311) target = $region32
        $region31: #{self_attention_forward.1} parent=11 // pred_region
          _
        $region32: #{self_attention_forward.1} parent=11 // pred_fallthru
          _
      $region12: #{self_attention_forward.1} parent=5 // pred_fallthru
        _
      %p314 = scmp.lt.s32.totalorder %s18, 2
      // Predicated region
      $region33: #{self_attention_forward.1} parent=5 // pred_check
        %p315 = pneg %p314
      $region34: #{self_attention_forward.1} parent=5 // pred_check_branch
        %317 = sbr.rel (%p315) target = $region36
      $region35: #{self_attention_forward.1} parent=5 // pred_region
        // Predicated region
        $region37: #{self_attention_forward.1} parent=35 // pred_check
          %p318 = pneg %p61
        $region38: #{self_attention_forward.1} parent=35 // pred_check_branch
          %320 = sbr.rel (%p318) target = $region40
        $region39: #{self_attention_forward.1} parent=35 // pred_region
          %p321 = scmp.lt.s32.totalorder %s25, 1
          %s322 = scalar_select %p321, %s25, 1
          %p323 = scmp.lt.s32.totalorder %s26, 0
          %s324 = scalar_select %p323, %s26, 0
          %p325 = scmp.lt.s32.totalorder %s27, 0
          %s326 = scalar_select %p325, %s27, 0
          %s327 = sadd.s32 %s326, %s324
          %s328 = sadd.s32 %s327, %s322
          %s329 = smul.addr %s328, 4
          %s330 = scalar_lea.vmem %s0, %s329
        $region40: #{self_attention_forward.1} parent=35 // pred_fallthru
          _
        // Predicated region
        $region41: #{self_attention_forward.1} parent=35 // pred_check
          %p331 = pneg %p89
        $region42: #{self_attention_forward.1} parent=35 // pred_check_branch
          %333 = sbr.rel (%p331) target = $region44
        $region43: #{self_attention_forward.1} parent=35 // pred_region
          %s334 = smul.u32 8, %s26
          %p335 = scmp.lt.s32.totalorder %s25, 1
          %s336 = scalar_select %p335, %s25, 1
          %p337 = scmp.lt.s32.totalorder %s334, 7
          %s338 = scalar_select %p337, %s334, 7
          %s339 = smul.addr %s336, 8
          %s340 = sadd.s32 %s338, %s339
          %s341 = smul.addr %s340, 4
          %s342 = scalar_lea.vmem %s1, %s341
          %s343 = smul.u32 8, %s26
        $region44: #{self_attention_forward.1} parent=35 // pred_fallthru
          _
        // Predicated region
        $region45: #{self_attention_forward.1} parent=35 // pred_check
          %p344 = pneg %p117
        $region46: #{self_attention_forward.1} parent=35 // pred_check_branch
          %346 = sbr.rel (%p344) target = $region48
        $region47: #{self_attention_forward.1} parent=35 // pred_region
          %s347 = smul.u32 8, %s27
          %p348 = scmp.lt.s32.totalorder %s25, 1
          %s349 = scalar_select %p348, %s25, 1
          %p350 = scmp.lt.s32.totalorder %s347, 7
          %s351 = scalar_select %p350, %s347, 7
          %s352 = smul.addr %s349, 8
          %s353 = sadd.s32 %s351, %s352
          %s354 = smul.addr %s353, 4
          %s355 = scalar_lea.vmem %s2, %s354
          %s356 = smul.u32 8, %s27
        $region48: #{self_attention_forward.1} parent=35 // pred_fallthru
          _
        // Predicated region
        $region49: #{self_attention_forward.1} parent=35 // pred_check
          %p357 = pneg %p145
        $region50: #{self_attention_forward.1} parent=35 // pred_check_branch
          %359 = sbr.rel (%p357) target = $region52
        $region51: #{self_attention_forward.1} parent=35 // pred_region
          %s360 = smul.u32 8, %s27
          %p361 = scmp.lt.s32.totalorder %s25, 1
          %s362 = scalar_select %p361, %s25, 1
          %p363 = scmp.lt.s32.totalorder %s360, 7
          %s364 = scalar_select %p363, %s360, 7
          %s365 = smul.addr %s362, 8
          %s366 = sadd.s32 %s364, %s365
          %s367 = smul.addr %s366, 4
          %s368 = scalar_lea.vmem %s3, %s367
          %s369 = smul.u32 8, %s27
        $region52: #{self_attention_forward.1} parent=35 // pred_fallthru
          _
      $region36: #{self_attention_forward.1} parent=5 // pred_fallthru
        _
      %p370 = scmp.le.s32.totalorder 1, %s18
      %p371 = scmp.lt.s32.totalorder %s18, 3
      %p372 = pnand %p370, %p371
      %p373 = pneg %p372
      // Predicated region
      $region53: #{self_attention_forward.1} parent=5 // pred_check
        _
      $region54: #{self_attention_forward.1} parent=5 // pred_check_branch
        %375 = sbr.rel (%p372) target = $region56
      $region55: #{self_attention_forward.1} parent=5 // pred_region
        %s376 = ssub.s32 %s18, 1
        %p377 = scmp.lt.s32.totalorder %s28, 1
        %s378 = scalar_select %p377, %s28, 1
        %p379 = scmp.lt.s32.totalorder %s29, 0
        %s380 = scalar_select %p379, %s29, 0
        %p381 = scmp.lt.s32.totalorder %s30, 0
        %s382 = scalar_select %p381, %s30, 0
        %s383 = sadd.s32 %s382, %s380
        %s384 = sadd.s32 %s383, %s378
        %s385 = smul.addr %s384, 4
        %s386 = scalar_lea.vmem %s0, %s385
        %p387 = pneg %p67
        %p388 = pneg %p64
        %s389 = smul.u32 8, %s29
        %p390 = scmp.lt.s32.totalorder %s28, 1
        %s391 = scalar_select %p390, %s28, 1
        %p392 = scmp.lt.s32.totalorder %s389, 7
        %s393 = scalar_select %p392, %s389, 7
        %s394 = smul.addr %s391, 8
        %s395 = sadd.s32 %s393, %s394
        %s396 = smul.addr %s395, 4
        %s397 = scalar_lea.vmem %s1, %s396
        %p398 = pneg %p95
        %p399 = pneg %p92
        %s400 = smul.u32 8, %s30
        %p401 = scmp.lt.s32.totalorder %s28, 1
        %s402 = scalar_select %p401, %s28, 1
        %p403 = scmp.lt.s32.totalorder %s400, 7
        %s404 = scalar_select %p403, %s400, 7
        %s405 = smul.addr %s402, 8
        %s406 = sadd.s32 %s404, %s405
        %s407 = smul.addr %s406, 4
        %s408 = scalar_lea.vmem %s2, %s407
        %p409 = pneg %p123
        %p410 = pneg %p120
        %s411 = smul.u32 8, %s30
        %p412 = scmp.lt.s32.totalorder %s28, 1
        %s413 = scalar_select %p412, %s28, 1
        %p414 = scmp.lt.s32.totalorder %s411, 7
        %s415 = scalar_select %p414, %s411, 7
        %s416 = smul.addr %s413, 8
        %s417 = sadd.s32 %s415, %s416
        %s418 = smul.addr %s417, 4
        %s419 = scalar_lea.vmem %s3, %s418
        %p420 = pneg %p151
        %p421 = pneg %p148
        %p422 = pneg %p172
        %p423 = pneg %p169
        %p424 = pneg %p193
        %p425 = pneg %p190
        %p426 = pneg %p214
        %p427 = pneg %p211
        %p428 = pneg %p235
        %p429 = pneg %p232
        %p430 = pneg %p256
        %p431 = pneg %p253
        %p432 = pneg %p284
        %p433 = pneg %p281
        %s434 = sand.u32 %s271, 1
        %s435 = scalar_lea.sflag [#allocation7], %s434
        %s436 = sand.u32 %s271, 1
        %s437 = smul.addr %s436, 8
        %s438 = scalar_lea.vmem [#allocation6], %s437
        %p439 = scmp.lt.s32.totalorder %s28, 1
        %s440 = scalar_select %p439, %s28, 1
        %p441 = scmp.lt.s32.totalorder %s29, 0
        %s442 = scalar_select %p441, %s29, 0
        %p443 = scmp.lt.s32.totalorder %s30, 0
        %s444 = scalar_select %p443, %s30, 0
        %s445 = sadd.s32 %s444, %s442
        %s446 = sadd.s32 %s445, %s440
        %s447 = smul.addr %s446, 4
        %s448 = scalar_lea.vmem %s0, %s447
        %s449 = smul.u32 8, %s29
        %p450 = scmp.lt.s32.totalorder %s28, 1
        %s451 = scalar_select %p450, %s28, 1
        %p452 = scmp.lt.s32.totalorder %s449, 7
        %s453 = scalar_select %p452, %s449, 7
        %s454 = smul.addr %s451, 8
        %s455 = sadd.s32 %s453, %s454
        %s456 = smul.addr %s455, 4
        %s457 = scalar_lea.vmem %s1, %s456
        %s458 = smul.u32 8, %s29
        %s459 = smul.u32 8, %s30
        %p460 = scmp.lt.s32.totalorder %s28, 1
        %s461 = scalar_select %p460, %s28, 1
        %p462 = scmp.lt.s32.totalorder %s459, 7
        %s463 = scalar_select %p462, %s459, 7
        %s464 = smul.addr %s461, 8
        %s465 = sadd.s32 %s463, %s464
        %s466 = smul.addr %s465, 4
        %s467 = scalar_lea.vmem %s2, %s466
        %s468 = smul.u32 8, %s30
        %s469 = smul.u32 8, %s30
        %p470 = scmp.lt.s32.totalorder %s28, 1
        %s471 = scalar_select %p470, %s28, 1
        %p472 = scmp.lt.s32.totalorder %s469, 7
        %s473 = scalar_select %p472, %s469, 7
        %s474 = smul.addr %s471, 8
        %s475 = sadd.s32 %s473, %s474
        %s476 = smul.addr %s475, 4
        %s477 = scalar_lea.vmem %s3, %s476
        %s478 = smul.u32 8, %s30
        %p480 = scmp.eq.s32.totalorder %s30, 0
        // Predicated region
        $region57: #{self_attention_forward.1} parent=55 // pred_check
          %p481 = pneg %p480
        $region58: #{self_attention_forward.1} parent=55 // pred_check_branch
          %483 = sbr.rel (%p481) target = $region60
        $region59: #{self_attention_forward.1} parent=55 // pred_region
          %vm484 = vcmask 7168
          %485 = vst.msk [vmem:[#allocation3] sm:$0xff] %vm484, -inf
          %486 = vst.msk [vmem:[#allocation3 + $0x8] sm:$0xff] %vm484, -inf
          %487 = vst.msk [vmem:[#allocation3 + $0x10] sm:$0xff] %vm484, -inf
          %488 = vst.msk [vmem:[#allocation3 + $0x18] sm:$0xff] %vm484, -inf
          %489 = vst.msk [vmem:[#allocation4] sm:$0xff] %vm484, 0.0
          %490 = vst.msk [vmem:[#allocation4 + $0x8] sm:$0xff] %vm484, 0.0
          %491 = vst.msk [vmem:[#allocation4 + $0x10] sm:$0xff] %vm484, 0.0
          %492 = vst.msk [vmem:[#allocation4 + $0x18] sm:$0xff] %vm484, 0.0
          %vm493 = vcmask 64512
          %494 = vst.msk [vmem:[#allocation5] sm:$0xff] %vm493, 0.0
          %495 = vst.msk [vmem:[#allocation5 + $0x8] sm:$0xff] %vm493, 0.0
          %496 = vst.msk [vmem:[#allocation5 + $0x10] sm:$0xff] %vm493, 0.0
          %497 = vst.msk [vmem:[#allocation5 + $0x18] sm:$0xff] %vm493, 0.0
          %v498 = vld [vmem:[%s457] sm:$0x1]
          %v499 = vld [vmem:[%s457 + $0x4] sm:$0x1]
          %v500 = vld [vmem:[%s457 + $0x8] sm:$0x1]
          %v501 = vld [vmem:[%s457 + $0xc] sm:$0x1]
          %v502 = vld [vmem:[%s457 + $0x10] sm:$0x1]
          %v503 = vld [vmem:[%s457 + $0x14] sm:$0x1]
          %v504 = vld [vmem:[%s457 + $0x18] sm:$0x1]
          %v505 = vld [vmem:[%s457 + $0x1c] sm:$0x1]
          %v506 = vpack.c.bf16 %v498, %v498
          %v507 = vpack.c.bf16 %v499, %v499
          %v508 = vpack.c.bf16 %v500, %v500
          %v509 = vpack.c.bf16 %v501, %v501
          %v510 = vpack.c.bf16 %v502, %v502
          %v511 = vpack.c.bf16 %v503, %v503
          %v512 = vpack.c.bf16 %v504, %v504
          %v513 = vpack.c.bf16 %v505, %v505
          %v514 = vld [vmem:[%s4] sm:$0xf]
          %v523 = vunpack.c.l.b16 %v506
          %v524 = vunpack.c.l.b16 %v507
          %v525 = vunpack.c.l.b16 %v508
          %v526 = vunpack.c.l.b16 %v509
          %v527 = vunpack.c.l.b16 %v510
          %v528 = vunpack.c.l.b16 %v511
          %v529 = vunpack.c.l.b16 %v512
          %v530 = vunpack.c.l.b16 %v513
          %v531 = vrot.slane %v524, 7
          %vm532 = vcmask 1041409
          %v533 = vsel %vm532, %v531, %v523
          %v534 = vrot.slane %v525, 6
          %vm535 = vcmask 1042434
          %v536 = vsel %vm535, %v534, %v533
          %v537 = vrot.slane %v526, 5
          %vm538 = vcmask 1043459
          %v539 = vsel %vm538, %v537, %v536
          %v540 = vrot.slane %v527, 4
          %vm541 = vcmask 1044484
          %v542 = vsel %vm541, %v540, %v539
          %v543 = vrot.slane %v528, 3
          %vm544 = vcmask 1045509
          %v545 = vsel %vm544, %v543, %v542
          %v546 = vrot.slane %v529, 2
          %vm547 = vcmask 1046534
          %v548 = vsel %vm547, %v546, %v545
          %v549 = vrot.slane %v530, 1
          %vm550 = vcmask 1047559
          %v551 = vsel %vm550, %v549, %v548
          %v552 = vpack.c.b16 %v551, %v551
          %v554 = vsel %vm493, %v552, 0
          %vm556 = vcmask 1043456
          %v558 = vsel %vm556, %v514, 0
          %560 = vmatprep.subr.bf16.mxu0 0
          %561 = vmatpush1.bf16.msra.mxu0 %v558
          %562 = vmatprep.subr.bf16.mxu0 0
          %563 = vmatpush1.bf16.msra.mxu0 0
          %564 = vmatprep.subr.bf16.mxu0 0
          %565 = vmatpush1.bf16.msra.mxu0 0
          %566 = vmatprep.subr.bf16.mxu0 0
          %567 = vmatpush1.bf16.msra.mxu0 0
          %568 = vmatprep.subr.bf16.mxu0 0
          %569 = vmatpush1.bf16.msra.mxu0 0
          %570 = vmatprep.subr.bf16.mxu0 0
          %571 = vmatpush1.bf16.msra.mxu0 0
          %572 = vmatprep.subr.bf16.mxu0 0
          %573 = vmatpush1.bf16.msra.mxu0 0
          %574 = vmatprep.subr.bf16.mxu0 0
          %575 = vmatpush1.bf16.msra.mxu0 0
          %576 = vmatprep.subr.bf16.mxu0 0
          %577 = vmatpush1.bf16.msra.mxu0 0
          %578 = vmatprep.subr.bf16.mxu0 0
          %579 = vmatpush1.bf16.msra.mxu0 0
          %580 = vmatprep.subr.bf16.mxu0 0
          %581 = vmatpush1.bf16.msra.mxu0 0
          %582 = vmatprep.subr.bf16.mxu0 0
          %583 = vmatpush1.bf16.msra.mxu0 0
          %584 = vmatprep.subr.bf16.mxu0 0
          %585 = vmatpush1.bf16.msra.mxu0 0
          %586 = vmatprep.subr.bf16.mxu0 0
          %587 = vmatpush1.bf16.msra.mxu0 0
          %588 = vmatprep.subr.bf16.mxu0 0
          %589 = vmatpush1.bf16.msra.mxu0 0
          %590 = vmatprep.subr.bf16.mxu0 0
          %591 = vmatpush1.bf16.msra.mxu0 0
          %592 = vmatprep.mubr.bf16.mxu0 0
          %593 = vmatmul.mubr.bf16.gmra.mrb[0].mxu0 %v554
          %v594 = vpop.f32.mrb[0].mxu0
          %v595 = vadd.f32 0.0, %v594
          %v596 = vpop.f32.mrb[0].mxu0
          %v597 = vpop.f32.mrb[0].mxu0
          %v598 = vpop.f32.mrb[0].mxu0
          %599 = vdwg.mxu0
          %v600 = vmul.f32 %v595, 0.17677669
          %v601 = vpack.c.bf16 %v600, %v600
          %vm602 = vcmask 60416
          %603 = vst.msk [vmem:[#allocation2] sm:$0xf] %vm602, %v601
          %v604 = vld [vmem:[%s457 + $0x1] sm:$0x1]
          %v605 = vld [vmem:[%s457 + $0x5] sm:$0x1]
          %v606 = vld [vmem:[%s457 + $0x9] sm:$0x1]
          %v607 = vld [vmem:[%s457 + $0xd] sm:$0x1]
          %v608 = vld [vmem:[%s457 + $0x11] sm:$0x1]
          %v609 = vld [vmem:[%s457 + $0x15] sm:$0x1]
          %v610 = vld [vmem:[%s457 + $0x19] sm:$0x1]
          %v611 = vld [vmem:[%s457 + $0x1d] sm:$0x1]
          %v612 = vpack.c.bf16 %v604, %v604
          %v613 = vpack.c.bf16 %v605, %v605
          %v614 = vpack.c.bf16 %v606, %v606
          %v615 = vpack.c.bf16 %v607, %v607
          %v616 = vpack.c.bf16 %v608, %v608
          %v617 = vpack.c.bf16 %v609, %v609
          %v618 = vpack.c.bf16 %v610, %v610
          %v619 = vpack.c.bf16 %v611, %v611
          %v620 = vld [vmem:[%s4] sm:$0xf]
          %v629 = vunpack.c.l.b16 %v612
          %v630 = vunpack.c.l.b16 %v613
          %v631 = vunpack.c.l.b16 %v614
          %v632 = vunpack.c.l.b16 %v615
          %v633 = vunpack.c.l.b16 %v616
          %v634 = vunpack.c.l.b16 %v617
          %v635 = vunpack.c.l.b16 %v618
          %v636 = vunpack.c.l.b16 %v619
          %v637 = vrot.slane %v630, 7
          %v638 = vsel %vm532, %v637, %v629
          %v639 = vrot.slane %v631, 6
          %v640 = vsel %vm535, %v639, %v638
          %v641 = vrot.slane %v632, 5
          %v642 = vsel %vm538, %v641, %v640
          %v643 = vrot.slane %v633, 4
          %v644 = vsel %vm541, %v643, %v642
          %v645 = vrot.slane %v634, 3
          %v646 = vsel %vm544, %v645, %v644
          %v647 = vrot.slane %v635, 2
          %v648 = vsel %vm547, %v647, %v646
          %v649 = vrot.slane %v636, 1
          %v650 = vsel %vm550, %v649, %v648
          %v651 = vpack.c.b16 %v650, %v650
          %v653 = vsel %vm493, %v651, 0
          %v656 = vsel %vm556, %v620, 0
          %658 = vmatprep.subr.bf16.mxu0 0
          %659 = vmatpush1.bf16.msra.mxu0 %v656
          %660 = vmatprep.subr.bf16.mxu0 0
          %661 = vmatpush1.bf16.msra.mxu0 0
          %662 = vmatprep.subr.bf16.mxu0 0
          %663 = vmatpush1.bf16.msra.mxu0 0
          %664 = vmatprep.subr.bf16.mxu0 0
          %665 = vmatpush1.bf16.msra.mxu0 0
          %666 = vmatprep.subr.bf16.mxu0 0
          %667 = vmatpush1.bf16.msra.mxu0 0
          %668 = vmatprep.subr.bf16.mxu0 0
          %669 = vmatpush1.bf16.msra.mxu0 0
          %670 = vmatprep.subr.bf16.mxu0 0
          %671 = vmatpush1.bf16.msra.mxu0 0
          %672 = vmatprep.subr.bf16.mxu0 0
          %673 = vmatpush1.bf16.msra.mxu0 0
          %674 = vmatprep.subr.bf16.mxu0 0
          %675 = vmatpush1.bf16.msra.mxu0 0
          %676 = vmatprep.subr.bf16.mxu0 0
          %677 = vmatpush1.bf16.msra.mxu0 0
          %678 = vmatprep.subr.bf16.mxu0 0
          %679 = vmatpush1.bf16.msra.mxu0 0
          %680 = vmatprep.subr.bf16.mxu0 0
          %681 = vmatpush1.bf16.msra.mxu0 0
          %682 = vmatprep.subr.bf16.mxu0 0
          %683 = vmatpush1.bf16.msra.mxu0 0
          %684 = vmatprep.subr.bf16.mxu0 0
          %685 = vmatpush1.bf16.msra.mxu0 0
          %686 = vmatprep.subr.bf16.mxu0 0
          %687 = vmatpush1.bf16.msra.mxu0 0
          %688 = vmatprep.subr.bf16.mxu0 0
          %689 = vmatpush1.bf16.msra.mxu0 0
          %690 = vmatprep.mubr.bf16.mxu0 0
          %691 = vmatmul.mubr.bf16.gmra.mrb[0].mxu0 %v653
          %v692 = vpop.f32.mrb[0].mxu0
          %v693 = vadd.f32 0.0, %v692
          %v694 = vpop.f32.mrb[0].mxu0
          %v695 = vpop.f32.mrb[0].mxu0
          %v696 = vpop.f32.mrb[0].mxu0
          %697 = vdwg.mxu0
          %v698 = vmul.f32 %v693, 0.17677669
          %v699 = vpack.c.bf16 %v698, %v698
          %s700 = scalar_lea.vmem [#allocation2], 4
          %701 = vst.msk [vmem:[%s700] sm:$0xf] %vm602, %v699
          %v702 = vld [vmem:[%s457 + $0x2] sm:$0x1]
          %v703 = vld [vmem:[%s457 + $0x6] sm:$0x1]
          %v704 = vld [vmem:[%s457 + $0xa] sm:$0x1]
          %v705 = vld [vmem:[%s457 + $0xe] sm:$0x1]
          %v706 = vld [vmem:[%s457 + $0x12] sm:$0x1]
          %v707 = vld [vmem:[%s457 + $0x16] sm:$0x1]
          %v708 = vld [vmem:[%s457 + $0x1a] sm:$0x1]
          %v709 = vld [vmem:[%s457 + $0x1e] sm:$0x1]
          %v710 = vpack.c.bf16 %v702, %v702
          %v711 = vpack.c.bf16 %v703, %v703
          %v712 = vpack.c.bf16 %v704, %v704
          %v713 = vpack.c.bf16 %v705, %v705
          %v714 = vpack.c.bf16 %v706, %v706
          %v715 = vpack.c.bf16 %v707, %v707
          %v716 = vpack.c.bf16 %v708, %v708
          %v717 = vpack.c.bf16 %v709, %v709
          %v718 = vld [vmem:[%s4] sm:$0xf]
          %v727 = vunpack.c.l.b16 %v710
          %v728 = vunpack.c.l.b16 %v711
          %v729 = vunpack.c.l.b16 %v712
          %v730 = vunpack.c.l.b16 %v713
          %v731 = vunpack.c.l.b16 %v714
          %v732 = vunpack.c.l.b16 %v715
          %v733 = vunpack.c.l.b16 %v716
          %v734 = vunpack.c.l.b16 %v717
          %v735 = vrot.slane %v728, 7
          %v736 = vsel %vm532, %v735, %v727
          %v737 = vrot.slane %v729, 6
          %v738 = vsel %vm535, %v737, %v736
          %v739 = vrot.slane %v730, 5
          %v740 = vsel %vm538, %v739, %v738
          %v741 = vrot.slane %v731, 4
          %v742 = vsel %vm541, %v741, %v740
          %v743 = vrot.slane %v732, 3
          %v744 = vsel %vm544, %v743, %v742
          %v745 = vrot.slane %v733, 2
          %v746 = vsel %vm547, %v745, %v744
          %v747 = vrot.slane %v734, 1
          %v748 = vsel %vm550, %v747, %v746
          %v749 = vpack.c.b16 %v748, %v748
          %v751 = vsel %vm493, %v749, 0
          %v754 = vsel %vm556, %v718, 0
          %756 = vmatprep.subr.bf16.mxu0 0
          %757 = vmatpush1.bf16.msra.mxu0 %v754
          %758 = vmatprep.subr.bf16.mxu0 0
          %759 = vmatpush1.bf16.msra.mxu0 0
          %760 = vmatprep.subr.bf16.mxu0 0
          %761 = vmatpush1.bf16.msra.mxu0 0
          %762 = vmatprep.subr.bf16.mxu0 0
          %763 = vmatpush1.bf16.msra.mxu0 0
          %764 = vmatprep.subr.bf16.mxu0 0
          %765 = vmatpush1.bf16.msra.mxu0 0
          %766 = vmatprep.subr.bf16.mxu0 0
          %767 = vmatpush1.bf16.msra.mxu0 0
          %768 = vmatprep.subr.bf16.mxu0 0
          %769 = vmatpush1.bf16.msra.mxu0 0
          %770 = vmatprep.subr.bf16.mxu0 0
          %771 = vmatpush1.bf16.msra.mxu0 0
          %772 = vmatprep.subr.bf16.mxu0 0
          %773 = vmatpush1.bf16.msra.mxu0 0
          %774 = vmatprep.subr.bf16.mxu0 0
          %775 = vmatpush1.bf16.msra.mxu0 0
          %776 = vmatprep.subr.bf16.mxu0 0
          %777 = vmatpush1.bf16.msra.mxu0 0
          %778 = vmatprep.subr.bf16.mxu0 0
          %779 = vmatpush1.bf16.msra.mxu0 0
          %780 = vmatprep.subr.bf16.mxu0 0
          %781 = vmatpush1.bf16.msra.mxu0 0
          %782 = vmatprep.subr.bf16.mxu0 0
          %783 = vmatpush1.bf16.msra.mxu0 0
          %784 = vmatprep.subr.bf16.mxu0 0
          %785 = vmatpush1.bf16.msra.mxu0 0
          %786 = vmatprep.subr.bf16.mxu0 0
          %787 = vmatpush1.bf16.msra.mxu0 0
          %788 = vmatprep.mubr.bf16.mxu0 0
          %789 = vmatmul.mubr.bf16.gmra.mrb[0].mxu0 %v751
          %v790 = vpop.f32.mrb[0].mxu0
          %v791 = vadd.f32 0.0, %v790
          %v792 = vpop.f32.mrb[0].mxu0
          %v793 = vpop.f32.mrb[0].mxu0
          %v794 = vpop.f32.mrb[0].mxu0
          %795 = vdwg.mxu0
          %v796 = vmul.f32 %v791, 0.17677669
          %v797 = vpack.c.bf16 %v796, %v796
          %s798 = scalar_lea.vmem [#allocation2], 8
          %799 = vst.msk [vmem:[%s798] sm:$0xf] %vm602, %v797
          %v800 = vld [vmem:[%s457 + $0x3] sm:$0x1]
          %v801 = vld [vmem:[%s457 + $0x7] sm:$0x1]
          %v802 = vld [vmem:[%s457 + $0xb] sm:$0x1]
          %v803 = vld [vmem:[%s457 + $0xf] sm:$0x1]
          %v804 = vld [vmem:[%s457 + $0x13] sm:$0x1]
          %v805 = vld [vmem:[%s457 + $0x17] sm:$0x1]
          %v806 = vld [vmem:[%s457 + $0x1b] sm:$0x1]
          %v807 = vld [vmem:[%s457 + $0x1f] sm:$0x1]
          %v808 = vpack.c.bf16 %v800, %v800
          %v809 = vpack.c.bf16 %v801, %v801
          %v810 = vpack.c.bf16 %v802, %v802
          %v811 = vpack.c.bf16 %v803, %v803
          %v812 = vpack.c.bf16 %v804, %v804
          %v813 = vpack.c.bf16 %v805, %v805
          %v814 = vpack.c.bf16 %v806, %v806
          %v815 = vpack.c.bf16 %v807, %v807
          %v816 = vld [vmem:[%s4] sm:$0xf]
          %v825 = vunpack.c.l.b16 %v808
          %v826 = vunpack.c.l.b16 %v809
          %v827 = vunpack.c.l.b16 %v810
          %v828 = vunpack.c.l.b16 %v811
          %v829 = vunpack.c.l.b16 %v812
          %v830 = vunpack.c.l.b16 %v813
          %v831 = vunpack.c.l.b16 %v814
          %v832 = vunpack.c.l.b16 %v815
          %v833 = vrot.slane %v826, 7
          %v834 = vsel %vm532, %v833, %v825
          %v835 = vrot.slane %v827, 6
          %v836 = vsel %vm535, %v835, %v834
          %v837 = vrot.slane %v828, 5
          %v838 = vsel %vm538, %v837, %v836
          %v839 = vrot.slane %v829, 4
          %v840 = vsel %vm541, %v839, %v838
          %v841 = vrot.slane %v830, 3
          %v842 = vsel %vm544, %v841, %v840
          %v843 = vrot.slane %v831, 2
          %v844 = vsel %vm547, %v843, %v842
          %v845 = vrot.slane %v832, 1
          %v846 = vsel %vm550, %v845, %v844
          %v847 = vpack.c.b16 %v846, %v846
          %v849 = vsel %vm493, %v847, 0
          %v852 = vsel %vm556, %v816, 0
          %854 = vmatprep.subr.bf16.mxu0 0
          %855 = vmatpush1.bf16.msra.mxu0 %v852
          %856 = vmatprep.subr.bf16.mxu0 0
          %857 = vmatpush1.bf16.msra.mxu0 0
          %858 = vmatprep.subr.bf16.mxu0 0
          %859 = vmatpush1.bf16.msra.mxu0 0
          %860 = vmatprep.subr.bf16.mxu0 0
          %861 = vmatpush1.bf16.msra.mxu0 0
          %862 = vmatprep.subr.bf16.mxu0 0
          %863 = vmatpush1.bf16.msra.mxu0 0
          %864 = vmatprep.subr.bf16.mxu0 0
          %865 = vmatpush1.bf16.msra.mxu0 0
          %866 = vmatprep.subr.bf16.mxu0 0
          %867 = vmatpush1.bf16.msra.mxu0 0
          %868 = vmatprep.subr.bf16.mxu0 0
          %869 = vmatpush1.bf16.msra.mxu0 0
          %870 = vmatprep.subr.bf16.mxu0 0
          %871 = vmatpush1.bf16.msra.mxu0 0
          %872 = vmatprep.subr.bf16.mxu0 0
          %873 = vmatpush1.bf16.msra.mxu0 0
          %874 = vmatprep.subr.bf16.mxu0 0
          %875 = vmatpush1.bf16.msra.mxu0 0
          %876 = vmatprep.subr.bf16.mxu0 0
          %877 = vmatpush1.bf16.msra.mxu0 0
          %878 = vmatprep.subr.bf16.mxu0 0
          %879 = vmatpush1.bf16.msra.mxu0 0
          %880 = vmatprep.subr.bf16.mxu0 0
          %881 = vmatpush1.bf16.msra.mxu0 0
          %882 = vmatprep.subr.bf16.mxu0 0
          %883 = vmatpush1.bf16.msra.mxu0 0
          %884 = vmatprep.subr.bf16.mxu0 0
          %885 = vmatpush1.bf16.msra.mxu0 0
          %886 = vmatprep.mubr.bf16.mxu0 0
          %887 = vmatmul.mubr.bf16.gmra.mrb[0].mxu0 %v849
          %v888 = vpop.f32.mrb[0].mxu0
          %v889 = vadd.f32 0.0, %v888
          %v890 = vpop.f32.mrb[0].mxu0
          %v891 = vpop.f32.mrb[0].mxu0
          %v892 = vpop.f32.mrb[0].mxu0
          %893 = vdwg.mxu0
          %v894 = vmul.f32 %v889, 0.17677669
          %v895 = vpack.c.bf16 %v894, %v894
          %s896 = scalar_lea.vmem [#allocation2], 12
          %897 = vst.msk [vmem:[%s896] sm:$0xf] %vm602, %v895
        $region60: #{self_attention_forward.1} parent=55 // pred_fallthru
          _
        %v898 = vld [vmem:[%s448] sm:$0xf]
        %v899 = vunpack.c.l.bf16 %v898
        %v900 = vld [vmem:[%s467] sm:$0x1]
        %v901 = vld [vmem:[%s467 + $0x4] sm:$0x1]
        %v902 = vld [vmem:[%s467 + $0x8] sm:$0x1]
        %v903 = vld [vmem:[%s467 + $0xc] sm:$0x1]
        %v904 = vld [vmem:[%s467 + $0x10] sm:$0x1]
        %v905 = vld [vmem:[%s467 + $0x14] sm:$0x1]
        %v906 = vld [vmem:[%s467 + $0x18] sm:$0x1]
        %v907 = vld [vmem:[%s467 + $0x1c] sm:$0x1]
        %v908 = vpack.c.bf16 %v900, %v900
        %v909 = vpack.c.bf16 %v901, %v901
        %v910 = vpack.c.bf16 %v902, %v902
        %v911 = vpack.c.bf16 %v903, %v903
        %v912 = vpack.c.bf16 %v904, %v904
        %v913 = vpack.c.bf16 %v905, %v905
        %v914 = vpack.c.bf16 %v906, %v906
        %v915 = vpack.c.bf16 %v907, %v907
        %v916 = vld [vmem:[%s477] sm:$0x1]
        %v917 = vld [vmem:[%s477 + $0x4] sm:$0x1]
        %v918 = vld [vmem:[%s477 + $0x8] sm:$0x1]
        %v919 = vld [vmem:[%s477 + $0xc] sm:$0x1]
        %v920 = vld [vmem:[%s477 + $0x10] sm:$0x1]
        %v921 = vld [vmem:[%s477 + $0x14] sm:$0x1]
        %v922 = vld [vmem:[%s477 + $0x18] sm:$0x1]
        %v923 = vld [vmem:[%s477 + $0x1c] sm:$0x1]
        %v924 = vpack.c.bf16 %v916, %v916
        %v925 = vpack.c.bf16 %v917, %v917
        %v926 = vpack.c.bf16 %v918, %v918
        %v927 = vpack.c.bf16 %v919, %v919
        %v928 = vpack.c.bf16 %v920, %v920
        %v929 = vpack.c.bf16 %v921, %v921
        %v930 = vpack.c.bf16 %v922, %v922
        %v931 = vpack.c.bf16 %v923, %v923
        %v932 = vld [vmem:[%s5] sm:$0xf]
        %v941 = vunpack.c.l.b16 %v908
        %v942 = vunpack.c.l.b16 %v909
        %v943 = vunpack.c.l.b16 %v910
        %v944 = vunpack.c.l.b16 %v911
        %v945 = vunpack.c.l.b16 %v912
        %v946 = vunpack.c.l.b16 %v913
        %v947 = vunpack.c.l.b16 %v914
        %v948 = vunpack.c.l.b16 %v915
        %v949 = vrot.slane %v942, 7
        %vm950 = vcmask 1041409
        %v951 = vsel %vm950, %v949, %v941
        %v952 = vrot.slane %v943, 6
        %vm953 = vcmask 1042434
        %v954 = vsel %vm953, %v952, %v951
        %v955 = vrot.slane %v944, 5
        %vm956 = vcmask 1043459
        %v957 = vsel %vm956, %v955, %v954
        %v958 = vrot.slane %v945, 4
        %vm959 = vcmask 1044484
        %v960 = vsel %vm959, %v958, %v957
        %v961 = vrot.slane %v946, 3
        %vm962 = vcmask 1045509
        %v963 = vsel %vm962, %v961, %v960
        %v964 = vrot.slane %v947, 2
        %vm965 = vcmask 1046534
        %v966 = vsel %vm965, %v964, %v963
        %v967 = vrot.slane %v948, 1
        %vm968 = vcmask 1047559
        %v969 = vsel %vm968, %v967, %v966
        %v970 = vpack.c.b16 %v969, %v969
        %vm971 = vcmask 64512
        %v973 = vsel %vm971, %v970, 0
        %vm975 = vcmask 1043456
        %v977 = vsel %vm975, %v932, 0
        %979 = vmatprep.subr.bf16.mxu0 0
        %980 = vmatpush1.bf16.msra.mxu0 %v977
        %981 = vmatprep.subr.bf16.mxu0 0
        %982 = vmatpush1.bf16.msra.mxu0 0
        %983 = vmatprep.subr.bf16.mxu0 0
        %984 = vmatpush1.bf16.msra.mxu0 0
        %985 = vmatprep.subr.bf16.mxu0 0
        %986 = vmatpush1.bf16.msra.mxu0 0
        %987 = vmatprep.subr.bf16.mxu0 0
        %988 = vmatpush1.bf16.msra.mxu0 0
        %989 = vmatprep.subr.bf16.mxu0 0
        %990 = vmatpush1.bf16.msra.mxu0 0
        %991 = vmatprep.subr.bf16.mxu0 0
        %992 = vmatpush1.bf16.msra.mxu0 0
        %993 = vmatprep.subr.bf16.mxu0 0
        %994 = vmatpush1.bf16.msra.mxu0 0
        %995 = vmatprep.subr.bf16.mxu0 0
        %996 = vmatpush1.bf16.msra.mxu0 0
        %997 = vmatprep.subr.bf16.mxu0 0
        %998 = vmatpush1.bf16.msra.mxu0 0
        %999 = vmatprep.subr.bf16.mxu0 0
        %1000 = vmatpush1.bf16.msra.mxu0 0
        %1001 = vmatprep.subr.bf16.mxu0 0
        %1002 = vmatpush1.bf16.msra.mxu0 0
        %1003 = vmatprep.subr.bf16.mxu0 0
        %1004 = vmatpush1.bf16.msra.mxu0 0
        %1005 = vmatprep.subr.bf16.mxu0 0
        %1006 = vmatpush1.bf16.msra.mxu0 0
        %1007 = vmatprep.subr.bf16.mxu0 0
        %1008 = vmatpush1.bf16.msra.mxu0 0
        %1009 = vmatprep.subr.bf16.mxu0 0
        %1010 = vmatpush1.bf16.msra.mxu0 0
        %1011 = vmatprep.mubr.bf16.mxu0 0
        %1012 = vmatmul.mubr.bf16.gmra.mrb[0].mxu0 %v973
        %v1013 = vpop.f32.mrb[0].mxu0
        %v1014 = vadd.f32 0.0, %v1013
        %v1015 = vpop.f32.mrb[0].mxu0
        %v1016 = vpop.f32.mrb[0].mxu0
        %v1017 = vpop.f32.mrb[0].mxu0
        %1018 = vdwg.mxu0
        %v1019 = vpack.c.bf16 %v1014, %v1014
        %v1020 = vld [vmem:[%s6] sm:$0xf]
        %v1029 = vunpack.c.l.b16 %v924
        %v1030 = vunpack.c.l.b16 %v925
        %v1031 = vunpack.c.l.b16 %v926
        %v1032 = vunpack.c.l.b16 %v927
        %v1033 = vunpack.c.l.b16 %v928
        %v1034 = vunpack.c.l.b16 %v929
        %v1035 = vunpack.c.l.b16 %v930
        %v1036 = vunpack.c.l.b16 %v931
        %v1037 = vrot.slane %v1030, 7
        %v1038 = vsel %vm950, %v1037, %v1029
        %v1039 = vrot.slane %v1031, 6
        %v1040 = vsel %vm953, %v1039, %v1038
        %v1041 = vrot.slane %v1032, 5
        %v1042 = vsel %vm956, %v1041, %v1040
        %v1043 = vrot.slane %v1033, 4
        %v1044 = vsel %vm959, %v1043, %v1042
        %v1045 = vrot.slane %v1034, 3
        %v1046 = vsel %vm962, %v1045, %v1044
        %v1047 = vrot.slane %v1035, 2
        %v1048 = vsel %vm965, %v1047, %v1046
        %v1049 = vrot.slane %v1036, 1
        %v1050 = vsel %vm968, %v1049, %v1048
        %v1051 = vpack.c.b16 %v1050, %v1050
        %v1053 = vsel %vm971, %v1051, 0
        %v1056 = vsel %vm975, %v1020, 0
        %1058 = vmatprep.subr.bf16.mxu0 0
        %1059 = vmatpush1.bf16.msra.mxu0 %v1056
        %1060 = vmatprep.subr.bf16.mxu0 0
        %1061 = vmatpush1.bf16.msra.mxu0 0
        %1062 = vmatprep.subr.bf16.mxu0 0
        %1063 = vmatpush1.bf16.msra.mxu0 0
        %1064 = vmatprep.subr.bf16.mxu0 0
        %1065 = vmatpush1.bf16.msra.mxu0 0
        %1066 = vmatprep.subr.bf16.mxu0 0
        %1067 = vmatpush1.bf16.msra.mxu0 0
        %1068 = vmatprep.subr.bf16.mxu0 0
        %1069 = vmatpush1.bf16.msra.mxu0 0
        %1070 = vmatprep.subr.bf16.mxu0 0
        %1071 = vmatpush1.bf16.msra.mxu0 0
        %1072 = vmatprep.subr.bf16.mxu0 0
        %1073 = vmatpush1.bf16.msra.mxu0 0
        %1074 = vmatprep.subr.bf16.mxu0 0
        %1075 = vmatpush1.bf16.msra.mxu0 0
        %1076 = vmatprep.subr.bf16.mxu0 0
        %1077 = vmatpush1.bf16.msra.mxu0 0
        %1078 = vmatprep.subr.bf16.mxu0 0
        %1079 = vmatpush1.bf16.msra.mxu0 0
        %1080 = vmatprep.subr.bf16.mxu0 0
        %1081 = vmatpush1.bf16.msra.mxu0 0
        %1082 = vmatprep.subr.bf16.mxu0 0
        %1083 = vmatpush1.bf16.msra.mxu0 0
        %1084 = vmatprep.subr.bf16.mxu0 0
        %1085 = vmatpush1.bf16.msra.mxu0 0
        %1086 = vmatprep.subr.bf16.mxu0 0
        %1087 = vmatpush1.bf16.msra.mxu0 0
        %1088 = vmatprep.subr.bf16.mxu0 0
        %1089 = vmatpush1.bf16.msra.mxu0 0
        %1090 = vmatprep.mubr.bf16.mxu0 0
        %1091 = vmatmul.mubr.bf16.gmra.mrb[0].mxu0 %v1053
        %v1092 = vpop.f32.mrb[0].mxu0
        %v1093 = vadd.f32 0.0, %v1092
        %v1094 = vpop.f32.mrb[0].mxu0
        %v1095 = vpop.f32.mrb[0].mxu0
        %v1096 = vpop.f32.mrb[0].mxu0
        %1097 = vdwg.mxu0
        %v1098 = vpack.c.bf16 %v1093, %v1093
        %v1099 = vld [vmem:[#allocation2] sm:$0xf]
        %v1101 = vsel %vm971, %v1099, 0
        %v1104 = vsel %vm971, %v1019, 0
        %1106 = vmatprep.subr.bf16.mxu0 0
        %1107 = vmatpush1.bf16.xpose.msra.mxu0 %v1104
        %1108 = vmatprep.subr.bf16.mxu0 0
        %1109 = vmatpush1.bf16.xpose.msra.mxu0 0
        %1110 = vmatprep.subr.bf16.mxu0 0
        %1111 = vmatpush1.bf16.xpose.msra.mxu0 0
        %1112 = vmatprep.subr.bf16.mxu0 0
        %1113 = vmatpush1.bf16.xpose.msra.mxu0 0
        %1114 = vmatprep.subr.bf16.mxu0 0
        %1115 = vmatpush1.bf16.xpose.msra.mxu0 0
        %1116 = vmatprep.subr.bf16.mxu0 0
        %1117 = vmatpush1.bf16.xpose.msra.mxu0 0
        %1118 = vmatprep.subr.bf16.mxu0 0
        %1119 = vmatpush1.bf16.xpose.msra.mxu0 0
        %1120 = vmatprep.subr.bf16.mxu0 0
        %1121 = vmatpush1.bf16.xpose.msra.mxu0 0
        %1122 = vmatprep.subr.bf16.mxu0 0
        %1123 = vmatpush1.bf16.xpose.msra.mxu0 0
        %1124 = vmatprep.subr.bf16.mxu0 0
        %1125 = vmatpush1.bf16.xpose.msra.mxu0 0
        %1126 = vmatprep.subr.bf16.mxu0 0
        %1127 = vmatpush1.bf16.xpose.msra.mxu0 0
        %1128 = vmatprep.subr.bf16.mxu0 0
        %1129 = vmatpush1.bf16.xpose.msra.mxu0 0
        %1130 = vmatprep.subr.bf16.mxu0 0
        %1131 = vmatpush1.bf16.xpose.msra.mxu0 0
        %1132 = vmatprep.subr.bf16.mxu0 0
        %1133 = vmatpush1.bf16.xpose.msra.mxu0 0
        %1134 = vmatprep.subr.bf16.mxu0 0
        %1135 = vmatpush1.bf16.xpose.msra.mxu0 0
        %1136 = vmatprep.subr.bf16.mxu0 0
        %1137 = vmatpush1.bf16.xpose.msra.mxu0 0
        %1138 = vmatprep.mubr.bf16.mxu0 0
        %1139 = vmatmul.mubr.bf16.gmra.mrb[0].mxu0 %v1101
        %v1140 = vpop.f32.mrb[0].mxu0
        %v1141 = vadd.f32 %v899, %v1140
        %v1142 = vpop.f32.mrb[0].mxu0
        %v1143 = vpop.f32.mrb[0].mxu0
        %v1144 = vpop.f32.mrb[0].mxu0
        %1145 = vdwg.mxu0
        %v1146 = vld [vmem:[#allocation3] sm:$0xff]
        %v1147 = vsel %vm971, %v1141, -inf
        %1148 = vmax.xlane.f32.xlu0 %v1147
        %v1149 = vpop.xlane.xlu0 %1148
        %v1150 = vmax.f32 %v1146, %v1149
        %v1151 = vsub.f32 %v1146, %v1150
        %v1152 = vmul.f32 %v1151, 1.442695
        %v1153 = vpow.pop %v1152
        %1155 = vset.pattern.permute.xlu0 0
        %1156 = vperm.xlu0 %1155, %v1150
        %v1157 = vpop.permute.xlu0 %1156
        %v1159 = vsub.f32 %v1141, %v1157
        %v1160 = vmul.f32 %v1159, 1.442695
        %v1161 = vpow.pop %v1160
        %v1162 = vld [vmem:[#allocation4] sm:$0xff]
        %v1163 = vmul.f32 %v1153, %v1162
        %v1164 = vsel %vm971, %v1161, 0.0
        %1165 = vadd.xlane.f32.xlu0 %v1164
        %v1166 = vpop.xlane.xlu0 %1165
        %v1167 = vadd.f32 %v1163, %v1166
        %vm1168 = vcmask 7168
        %1169 = vst.msk [vmem:[#allocation4] sm:$0xff] %vm1168, %v1167
        %v1170 = vld [vmem:[#allocation5] sm:$0xff]
        %1172 = vset.pattern.permute.xlu0 0
        %1173 = vperm.xlu0 %1172, %v1153
        %v1174 = vpop.permute.xlu0 %1173
        %v1176 = vmul.f32 %v1174, %v1170
        %v1177 = vpack.c.bf16 %v1161, %v1161
        %v1179 = vsel %vm971, %v1177, 0
        %v1182 = vsel %vm975, %v1098, 0
        %1184 = vmatprep.subr.bf16.mxu0 0
        %1185 = vmatpush1.bf16.msra.mxu0 %v1182
        %1186 = vmatprep.subr.bf16.mxu0 0
        %1187 = vmatpush1.bf16.msra.mxu0 0
        %1188 = vmatprep.subr.bf16.mxu0 0
        %1189 = vmatpush1.bf16.msra.mxu0 0
        %1190 = vmatprep.subr.bf16.mxu0 0
        %1191 = vmatpush1.bf16.msra.mxu0 0
        %1192 = vmatprep.subr.bf16.mxu0 0
        %1193 = vmatpush1.bf16.msra.mxu0 0
        %1194 = vmatprep.subr.bf16.mxu0 0
        %1195 = vmatpush1.bf16.msra.mxu0 0
        %1196 = vmatprep.subr.bf16.mxu0 0
        %1197 = vmatpush1.bf16.msra.mxu0 0
        %1198 = vmatprep.subr.bf16.mxu0 0
        %1199 = vmatpush1.bf16.msra.mxu0 0
        %1200 = vmatprep.subr.bf16.mxu0 0
        %1201 = vmatpush1.bf16.msra.mxu0 0
        %1202 = vmatprep.subr.bf16.mxu0 0
        %1203 = vmatpush1.bf16.msra.mxu0 0
        %1204 = vmatprep.subr.bf16.mxu0 0
        %1205 = vmatpush1.bf16.msra.mxu0 0
        %1206 = vmatprep.subr.bf16.mxu0 0
        %1207 = vmatpush1.bf16.msra.mxu0 0
        %1208 = vmatprep.subr.bf16.mxu0 0
        %1209 = vmatpush1.bf16.msra.mxu0 0
        %1210 = vmatprep.subr.bf16.mxu0 0
        %1211 = vmatpush1.bf16.msra.mxu0 0
        %1212 = vmatprep.subr.bf16.mxu0 0
        %1213 = vmatpush1.bf16.msra.mxu0 0
        %1214 = vmatprep.subr.bf16.mxu0 0
        %1215 = vmatpush1.bf16.msra.mxu0 0
        %1216 = vmatprep.mubr.bf16.mxu0 0
        %1217 = vmatmul.mubr.bf16.gmra.mrb[0].mxu0 %v1179
        %v1218 = vpop.f32.mrb[0].mxu0
        %v1219 = vadd.f32 0.0, %v1218
        %v1220 = vpop.f32.mrb[0].mxu0
        %v1221 = vpop.f32.mrb[0].mxu0
        %v1222 = vpop.f32.mrb[0].mxu0
        %1223 = vdwg.mxu0
        %v1224 = vadd.f32 %v1176, %v1219
        %1225 = vst.msk [vmem:[#allocation5] sm:$0xff] %vm971, %v1224
        %1226 = vst.msk [vmem:[#allocation3] sm:$0xff] %vm1168, %v1150
        %v1227 = vld [vmem:[%s467 + $0x1] sm:$0x1]
        %v1228 = vld [vmem:[%s467 + $0x5] sm:$0x1]
        %v1229 = vld [vmem:[%s467 + $0x9] sm:$0x1]
        %v1230 = vld [vmem:[%s467 + $0xd] sm:$0x1]
        %v1231 = vld [vmem:[%s467 + $0x11] sm:$0x1]
        %v1232 = vld [vmem:[%s467 + $0x15] sm:$0x1]
        %v1233 = vld [vmem:[%s467 + $0x19] sm:$0x1]
        %v1234 = vld [vmem:[%s467 + $0x1d] sm:$0x1]
        %v1235 = vpack.c.bf16 %v1227, %v1227
        %v1236 = vpack.c.bf16 %v1228, %v1228
        %v1237 = vpack.c.bf16 %v1229, %v1229
        %v1238 = vpack.c.bf16 %v1230, %v1230
        %v1239 = vpack.c.bf16 %v1231, %v1231
        %v1240 = vpack.c.bf16 %v1232, %v1232
        %v1241 = vpack.c.bf16 %v1233, %v1233
        %v1242 = vpack.c.bf16 %v1234, %v1234
        %v1243 = vld [vmem:[%s477 + $0x1] sm:$0x1]
        %v1244 = vld [vmem:[%s477 + $0x5] sm:$0x1]
        %v1245 = vld [vmem:[%s477 + $0x9] sm:$0x1]
        %v1246 = vld [vmem:[%s477 + $0xd] sm:$0x1]
        %v1247 = vld [vmem:[%s477 + $0x11] sm:$0x1]
        %v1248 = vld [vmem:[%s477 + $0x15] sm:$0x1]
        %v1249 = vld [vmem:[%s477 + $0x19] sm:$0x1]
        %v1250 = vld [vmem:[%s477 + $0x1d] sm:$0x1]
        %v1251 = vpack.c.bf16 %v1243, %v1243
        %v1252 = vpack.c.bf16 %v1244, %v1244
        %v1253 = vpack.c.bf16 %v1245, %v1245
        %v1254 = vpack.c.bf16 %v1246, %v1246
        %v1255 = vpack.c.bf16 %v1247, %v1247
        %v1256 = vpack.c.bf16 %v1248, %v1248
        %v1257 = vpack.c.bf16 %v1249, %v1249
        %v1258 = vpack.c.bf16 %v1250, %v1250
        %v1259 = vld [vmem:[%s5] sm:$0xf]
        %v1268 = vunpack.c.l.b16 %v1235
        %v1269 = vunpack.c.l.b16 %v1236
        %v1270 = vunpack.c.l.b16 %v1237
        %v1271 = vunpack.c.l.b16 %v1238
        %v1272 = vunpack.c.l.b16 %v1239
        %v1273 = vunpack.c.l.b16 %v1240
        %v1274 = vunpack.c.l.b16 %v1241
        %v1275 = vunpack.c.l.b16 %v1242
        %v1276 = vrot.slane %v1269, 7
        %v1277 = vsel %vm950, %v1276, %v1268
        %v1278 = vrot.slane %v1270, 6
        %v1279 = vsel %vm953, %v1278, %v1277
        %v1280 = vrot.slane %v1271, 5
        %v1281 = vsel %vm956, %v1280, %v1279
        %v1282 = vrot.slane %v1272, 4
        %v1283 = vsel %vm959, %v1282, %v1281
        %v1284 = vrot.slane %v1273, 3
        %v1285 = vsel %vm962, %v1284, %v1283
        %v1286 = vrot.slane %v1274, 2
        %v1287 = vsel %vm965, %v1286, %v1285
        %v1288 = vrot.slane %v1275, 1
        %v1289 = vsel %vm968, %v1288, %v1287
        %v1290 = vpack.c.b16 %v1289, %v1289
        %v1292 = vsel %vm971, %v1290, 0
        %v1295 = vsel %vm975, %v1259, 0
        %1297 = vmatprep.subr.bf16.mxu0 0
        %1298 = vmatpush1.bf16.msra.mxu0 %v1295
        %1299 = vmatprep.subr.bf16.mxu0 0
        %1300 = vmatpush1.bf16.msra.mxu0 0
        %1301 = vmatprep.subr.bf16.mxu0 0
        %1302 = vmatpush1.bf16.msra.mxu0 0
        %1303 = vmatprep.subr.bf16.mxu0 0
        %1304 = vmatpush1.bf16.msra.mxu0 0
        %1305 = vmatprep.subr.bf16.mxu0 0
        %1306 = vmatpush1.bf16.msra.mxu0 0
        %1307 = vmatprep.subr.bf16.mxu0 0
        %1308 = vmatpush1.bf16.msra.mxu0 0
        %1309 = vmatprep.subr.bf16.mxu0 0
        %1310 = vmatpush1.bf16.msra.mxu0 0
        %1311 = vmatprep.subr.bf16.mxu0 0
        %1312 = vmatpush1.bf16.msra.mxu0 0
        %1313 = vmatprep.subr.bf16.mxu0 0
        %1314 = vmatpush1.bf16.msra.mxu0 0
        %1315 = vmatprep.subr.bf16.mxu0 0
        %1316 = vmatpush1.bf16.msra.mxu0 0
        %1317 = vmatprep.subr.bf16.mxu0 0
        %1318 = vmatpush1.bf16.msra.mxu0 0
        %1319 = vmatprep.subr.bf16.mxu0 0
        %1320 = vmatpush1.bf16.msra.mxu0 0
        %1321 = vmatprep.subr.bf16.mxu0 0
        %1322 = vmatpush1.bf16.msra.mxu0 0
        %1323 = vmatprep.subr.bf16.mxu0 0
        %1324 = vmatpush1.bf16.msra.mxu0 0
        %1325 = vmatprep.subr.bf16.mxu0 0
        %1326 = vmatpush1.bf16.msra.mxu0 0
        %1327 = vmatprep.subr.bf16.mxu0 0
        %1328 = vmatpush1.bf16.msra.mxu0 0
        %1329 = vmatprep.mubr.bf16.mxu0 0
        %1330 = vmatmul.mubr.bf16.gmra.mrb[0].mxu0 %v1292
        %v1331 = vpop.f32.mrb[0].mxu0
        %v1332 = vadd.f32 0.0, %v1331
        %v1333 = vpop.f32.mrb[0].mxu0
        %v1334 = vpop.f32.mrb[0].mxu0
        %v1335 = vpop.f32.mrb[0].mxu0
        %1336 = vdwg.mxu0
        %v1337 = vpack.c.bf16 %v1332, %v1332
        %v1338 = vld [vmem:[%s6] sm:$0xf]
        %v1347 = vunpack.c.l.b16 %v1251
        %v1348 = vunpack.c.l.b16 %v1252
        %v1349 = vunpack.c.l.b16 %v1253
        %v1350 = vunpack.c.l.b16 %v1254
        %v1351 = vunpack.c.l.b16 %v1255
        %v1352 = vunpack.c.l.b16 %v1256
        %v1353 = vunpack.c.l.b16 %v1257
        %v1354 = vunpack.c.l.b16 %v1258
        %v1355 = vrot.slane %v1348, 7
        %v1356 = vsel %vm950, %v1355, %v1347
        %v1357 = vrot.slane %v1349, 6
        %v1358 = vsel %vm953, %v1357, %v1356
        %v1359 = vrot.slane %v1350, 5
        %v1360 = vsel %vm956, %v1359, %v1358
        %v1361 = vrot.slane %v1351, 4
        %v1362 = vsel %vm959, %v1361, %v1360
        %v1363 = vrot.slane %v1352, 3
        %v1364 = vsel %vm962, %v1363, %v1362
        %v1365 = vrot.slane %v1353, 2
        %v1366 = vsel %vm965, %v1365, %v1364
        %v1367 = vrot.slane %v1354, 1
        %v1368 = vsel %vm968, %v1367, %v1366
        %v1369 = vpack.c.b16 %v1368, %v1368
        %v1371 = vsel %vm971, %v1369, 0
        %v1374 = vsel %vm975, %v1338, 0
        %1376 = vmatprep.subr.bf16.mxu0 0
        %1377 = vmatpush1.bf16.msra.mxu0 %v1374
        %1378 = vmatprep.subr.bf16.mxu0 0
        %1379 = vmatpush1.bf16.msra.mxu0 0
        %1380 = vmatprep.subr.bf16.mxu0 0
        %1381 = vmatpush1.bf16.msra.mxu0 0
        %1382 = vmatprep.subr.bf16.mxu0 0
        %1383 = vmatpush1.bf16.msra.mxu0 0
        %1384 = vmatprep.subr.bf16.mxu0 0
        %1385 = vmatpush1.bf16.msra.mxu0 0
        %1386 = vmatprep.subr.bf16.mxu0 0
        %1387 = vmatpush1.bf16.msra.mxu0 0
        %1388 = vmatprep.subr.bf16.mxu0 0
        %1389 = vmatpush1.bf16.msra.mxu0 0
        %1390 = vmatprep.subr.bf16.mxu0 0
        %1391 = vmatpush1.bf16.msra.mxu0 0
        %1392 = vmatprep.subr.bf16.mxu0 0
        %1393 = vmatpush1.bf16.msra.mxu0 0
        %1394 = vmatprep.subr.bf16.mxu0 0
        %1395 = vmatpush1.bf16.msra.mxu0 0
        %1396 = vmatprep.subr.bf16.mxu0 0
        %1397 = vmatpush1.bf16.msra.mxu0 0
        %1398 = vmatprep.subr.bf16.mxu0 0
        %1399 = vmatpush1.bf16.msra.mxu0 0
        %1400 = vmatprep.subr.bf16.mxu0 0
        %1401 = vmatpush1.bf16.msra.mxu0 0
        %1402 = vmatprep.subr.bf16.mxu0 0
        %1403 = vmatpush1.bf16.msra.mxu0 0
        %1404 = vmatprep.subr.bf16.mxu0 0
        %1405 = vmatpush1.bf16.msra.mxu0 0
        %1406 = vmatprep.subr.bf16.mxu0 0
        %1407 = vmatpush1.bf16.msra.mxu0 0
        %1408 = vmatprep.mubr.bf16.mxu0 0
        %1409 = vmatmul.mubr.bf16.gmra.mrb[0].mxu0 %v1371
        %v1410 = vpop.f32.mrb[0].mxu0
        %v1411 = vadd.f32 0.0, %v1410
        %v1412 = vpop.f32.mrb[0].mxu0
        %v1413 = vpop.f32.mrb[0].mxu0
        %v1414 = vpop.f32.mrb[0].mxu0
        %1415 = vdwg.mxu0
        %v1416 = vpack.c.bf16 %v1411, %v1411
        %s1417 = scalar_lea.vmem [#allocation2], 4
        %v1418 = vld [vmem:[%s1417] sm:$0xf]
        %v1420 = vsel %vm971, %v1418, 0
        %v1423 = vsel %vm971, %v1337, 0
        %1425 = vmatprep.subr.bf16.mxu0 0
        %1426 = vmatpush1.bf16.xpose.msra.mxu0 %v1423
        %1427 = vmatprep.subr.bf16.mxu0 0
        %1428 = vmatpush1.bf16.xpose.msra.mxu0 0
        %1429 = vmatprep.subr.bf16.mxu0 0
        %1430 = vmatpush1.bf16.xpose.msra.mxu0 0
        %1431 = vmatprep.subr.bf16.mxu0 0
        %1432 = vmatpush1.bf16.xpose.msra.mxu0 0
        %1433 = vmatprep.subr.bf16.mxu0 0
        %1434 = vmatpush1.bf16.xpose.msra.mxu0 0
        %1435 = vmatprep.subr.bf16.mxu0 0
        %1436 = vmatpush1.bf16.xpose.msra.mxu0 0
        %1437 = vmatprep.subr.bf16.mxu0 0
        %1438 = vmatpush1.bf16.xpose.msra.mxu0 0
        %1439 = vmatprep.subr.bf16.mxu0 0
        %1440 = vmatpush1.bf16.xpose.msra.mxu0 0
        %1441 = vmatprep.subr.bf16.mxu0 0
        %1442 = vmatpush1.bf16.xpose.msra.mxu0 0
        %1443 = vmatprep.subr.bf16.mxu0 0
        %1444 = vmatpush1.bf16.xpose.msra.mxu0 0
        %1445 = vmatprep.subr.bf16.mxu0 0
        %1446 = vmatpush1.bf16.xpose.msra.mxu0 0
        %1447 = vmatprep.subr.bf16.mxu0 0
        %1448 = vmatpush1.bf16.xpose.msra.mxu0 0
        %1449 = vmatprep.subr.bf16.mxu0 0
        %1450 = vmatpush1.bf16.xpose.msra.mxu0 0
        %1451 = vmatprep.subr.bf16.mxu0 0
        %1452 = vmatpush1.bf16.xpose.msra.mxu0 0
        %1453 = vmatprep.subr.bf16.mxu0 0
        %1454 = vmatpush1.bf16.xpose.msra.mxu0 0
        %1455 = vmatprep.subr.bf16.mxu0 0
        %1456 = vmatpush1.bf16.xpose.msra.mxu0 0
        %1457 = vmatprep.mubr.bf16.mxu0 0
        %1458 = vmatmul.mubr.bf16.gmra.mrb[0].mxu0 %v1420
        %v1459 = vpop.f32.mrb[0].mxu0
        %v1460 = vadd.f32 %v899, %v1459
        %v1461 = vpop.f32.mrb[0].mxu0
        %v1462 = vpop.f32.mrb[0].mxu0
        %v1463 = vpop.f32.mrb[0].mxu0
        %1464 = vdwg.mxu0
        %s1465 = scalar_lea.vmem [#allocation3], 8
        %v1466 = vld [vmem:[%s1465] sm:$0xff]
        %v1467 = vsel %vm971, %v1460, -inf
        %1468 = vmax.xlane.f32.xlu0 %v1467
        %v1469 = vpop.xlane.xlu0 %1468
        %v1470 = vmax.f32 %v1466, %v1469
        %v1471 = vsub.f32 %v1466, %v1470
        %v1472 = vmul.f32 %v1471, 1.442695
        %v1473 = vpow.pop %v1472
        %1475 = vset.pattern.permute.xlu0 0
        %1476 = vperm.xlu0 %1475, %v1470
        %v1477 = vpop.permute.xlu0 %1476
        %v1479 = vsub.f32 %v1460, %v1477
        %v1480 = vmul.f32 %v1479, 1.442695
        %v1481 = vpow.pop %v1480
        %s1482 = scalar_lea.vmem [#allocation4], 8
        %v1483 = vld [vmem:[%s1482] sm:$0xff]
        %v1484 = vmul.f32 %v1473, %v1483
        %v1485 = vsel %vm971, %v1481, 0.0
        %1486 = vadd.xlane.f32.xlu0 %v1485
        %v1487 = vpop.xlane.xlu0 %1486
        %v1488 = vadd.f32 %v1484, %v1487
        %1489 = vst.msk [vmem:[%s1482] sm:$0xff] %vm1168, %v1488
        %s1490 = scalar_lea.vmem [#allocation5], 8
        %v1491 = vld [vmem:[%s1490] sm:$0xff]
        %1493 = vset.pattern.permute.xlu0 0
        %1494 = vperm.xlu0 %1493, %v1473
        %v1495 = vpop.permute.xlu0 %1494
        %v1497 = vmul.f32 %v1495, %v1491
        %v1498 = vpack.c.bf16 %v1481, %v1481
        %v1500 = vsel %vm971, %v1498, 0
        %v1503 = vsel %vm975, %v1416, 0
        %1505 = vmatprep.subr.bf16.mxu0 0
        %1506 = vmatpush1.bf16.msra.mxu0 %v1503
        %1507 = vmatprep.subr.bf16.mxu0 0
        %1508 = vmatpush1.bf16.msra.mxu0 0
        %1509 = vmatprep.subr.bf16.mxu0 0
        %1510 = vmatpush1.bf16.msra.mxu0 0
        %1511 = vmatprep.subr.bf16.mxu0 0
        %1512 = vmatpush1.bf16.msra.mxu0 0
        %1513 = vmatprep.subr.bf16.mxu0 0
        %1514 = vmatpush1.bf16.msra.mxu0 0
        %1515 = vmatprep.subr.bf16.mxu0 0
        %1516 = vmatpush1.bf16.msra.mxu0 0
        %1517 = vmatprep.subr.bf16.mxu0 0
        %1518 = vmatpush1.bf16.msra.mxu0 0
        %1519 = vmatprep.subr.bf16.mxu0 0
        %1520 = vmatpush1.bf16.msra.mxu0 0
        %1521 = vmatprep.subr.bf16.mxu0 0
        %1522 = vmatpush1.bf16.msra.mxu0 0
        %1523 = vmatprep.subr.bf16.mxu0 0
        %1524 = vmatpush1.bf16.msra.mxu0 0
        %1525 = vmatprep.subr.bf16.mxu0 0
        %1526 = vmatpush1.bf16.msra.mxu0 0
        %1527 = vmatprep.subr.bf16.mxu0 0
        %1528 = vmatpush1.bf16.msra.mxu0 0
        %1529 = vmatprep.subr.bf16.mxu0 0
        %1530 = vmatpush1.bf16.msra.mxu0 0
        %1531 = vmatprep.subr.bf16.mxu0 0
        %1532 = vmatpush1.bf16.msra.mxu0 0
        %1533 = vmatprep.subr.bf16.mxu0 0
        %1534 = vmatpush1.bf16.msra.mxu0 0
        %1535 = vmatprep.subr.bf16.mxu0 0
        %1536 = vmatpush1.bf16.msra.mxu0 0
        %1537 = vmatprep.mubr.bf16.mxu0 0
        %1538 = vmatmul.mubr.bf16.gmra.mrb[0].mxu0 %v1500
        %v1539 = vpop.f32.mrb[0].mxu0
        %v1540 = vadd.f32 0.0, %v1539
        %v1541 = vpop.f32.mrb[0].mxu0
        %v1542 = vpop.f32.mrb[0].mxu0
        %v1543 = vpop.f32.mrb[0].mxu0
        %1544 = vdwg.mxu0
        %v1545 = vadd.f32 %v1497, %v1540
        %1546 = vst.msk [vmem:[%s1490] sm:$0xff] %vm971, %v1545
        %1547 = vst.msk [vmem:[%s1465] sm:$0xff] %vm1168, %v1470
        %v1548 = vld [vmem:[%s467 + $0x2] sm:$0x1]
        %v1549 = vld [vmem:[%s467 + $0x6] sm:$0x1]
        %v1550 = vld [vmem:[%s467 + $0xa] sm:$0x1]
        %v1551 = vld [vmem:[%s467 + $0xe] sm:$0x1]
        %v1552 = vld [vmem:[%s467 + $0x12] sm:$0x1]
        %v1553 = vld [vmem:[%s467 + $0x16] sm:$0x1]
        %v1554 = vld [vmem:[%s467 + $0x1a] sm:$0x1]
        %v1555 = vld [vmem:[%s467 + $0x1e] sm:$0x1]
        %v1556 = vpack.c.bf16 %v1548, %v1548
        %v1557 = vpack.c.bf16 %v1549, %v1549
        %v1558 = vpack.c.bf16 %v1550, %v1550
        %v1559 = vpack.c.bf16 %v1551, %v1551
        %v1560 = vpack.c.bf16 %v1552, %v1552
        %v1561 = vpack.c.bf16 %v1553, %v1553
        %v1562 = vpack.c.bf16 %v1554, %v1554
        %v1563 = vpack.c.bf16 %v1555, %v1555
        %v1564 = vld [vmem:[%s477 + $0x2] sm:$0x1]
        %v1565 = vld [vmem:[%s477 + $0x6] sm:$0x1]
        %v1566 = vld [vmem:[%s477 + $0xa] sm:$0x1]
        %v1567 = vld [vmem:[%s477 + $0xe] sm:$0x1]
        %v1568 = vld [vmem:[%s477 + $0x12] sm:$0x1]
        %v1569 = vld [vmem:[%s477 + $0x16] sm:$0x1]
        %v1570 = vld [vmem:[%s477 + $0x1a] sm:$0x1]
        %v1571 = vld [vmem:[%s477 + $0x1e] sm:$0x1]
        %v1572 = vpack.c.bf16 %v1564, %v1564
        %v1573 = vpack.c.bf16 %v1565, %v1565
        %v1574 = vpack.c.bf16 %v1566, %v1566
        %v1575 = vpack.c.bf16 %v1567, %v1567
        %v1576 = vpack.c.bf16 %v1568, %v1568
        %v1577 = vpack.c.bf16 %v1569, %v1569
        %v1578 = vpack.c.bf16 %v1570, %v1570
        %v1579 = vpack.c.bf16 %v1571, %v1571
        %v1580 = vld [vmem:[%s5] sm:$0xf]
        %v1589 = vunpack.c.l.b16 %v1556
        %v1590 = vunpack.c.l.b16 %v1557
        %v1591 = vunpack.c.l.b16 %v1558
        %v1592 = vunpack.c.l.b16 %v1559
        %v1593 = vunpack.c.l.b16 %v1560
        %v1594 = vunpack.c.l.b16 %v1561
        %v1595 = vunpack.c.l.b16 %v1562
        %v1596 = vunpack.c.l.b16 %v1563
        %v1597 = vrot.slane %v1590, 7
        %v1598 = vsel %vm950, %v1597, %v1589
        %v1599 = vrot.slane %v1591, 6
        %v1600 = vsel %vm953, %v1599, %v1598
        %v1601 = vrot.slane %v1592, 5
        %v1602 = vsel %vm956, %v1601, %v1600
        %v1603 = vrot.slane %v1593, 4
        %v1604 = vsel %vm959, %v1603, %v1602
        %v1605 = vrot.slane %v1594, 3
        %v1606 = vsel %vm962, %v1605, %v1604
        %v1607 = vrot.slane %v1595, 2
        %v1608 = vsel %vm965, %v1607, %v1606
        %v1609 = vrot.slane %v1596, 1
        %v1610 = vsel %vm968, %v1609, %v1608
        %v1611 = vpack.c.b16 %v1610, %v1610
        %v1613 = vsel %vm971, %v1611, 0
        %v1616 = vsel %vm975, %v1580, 0
        %1618 = vmatprep.subr.bf16.mxu0 0
        %1619 = vmatpush1.bf16.msra.mxu0 %v1616
        %1620 = vmatprep.subr.bf16.mxu0 0
        %1621 = vmatpush1.bf16.msra.mxu0 0
        %1622 = vmatprep.subr.bf16.mxu0 0
        %1623 = vmatpush1.bf16.msra.mxu0 0
        %1624 = vmatprep.subr.bf16.mxu0 0
        %1625 = vmatpush1.bf16.msra.mxu0 0
        %1626 = vmatprep.subr.bf16.mxu0 0
        %1627 = vmatpush1.bf16.msra.mxu0 0
        %1628 = vmatprep.subr.bf16.mxu0 0
        %1629 = vmatpush1.bf16.msra.mxu0 0
        %1630 = vmatprep.subr.bf16.mxu0 0
        %1631 = vmatpush1.bf16.msra.mxu0 0
        %1632 = vmatprep.subr.bf16.mxu0 0
        %1633 = vmatpush1.bf16.msra.mxu0 0
        %1634 = vmatprep.subr.bf16.mxu0 0
        %1635 = vmatpush1.bf16.msra.mxu0 0
        %1636 = vmatprep.subr.bf16.mxu0 0
        %1637 = vmatpush1.bf16.msra.mxu0 0
        %1638 = vmatprep.subr.bf16.mxu0 0
        %1639 = vmatpush1.bf16.msra.mxu0 0
        %1640 = vmatprep.subr.bf16.mxu0 0
        %1641 = vmatpush1.bf16.msra.mxu0 0
        %1642 = vmatprep.subr.bf16.mxu0 0
        %1643 = vmatpush1.bf16.msra.mxu0 0
        %1644 = vmatprep.subr.bf16.mxu0 0
        %1645 = vmatpush1.bf16.msra.mxu0 0
        %1646 = vmatprep.subr.bf16.mxu0 0
        %1647 = vmatpush1.bf16.msra.mxu0 0
        %1648 = vmatprep.subr.bf16.mxu0 0
        %1649 = vmatpush1.bf16.msra.mxu0 0
        %1650 = vmatprep.mubr.bf16.mxu0 0
        %1651 = vmatmul.mubr.bf16.gmra.mrb[0].mxu0 %v1613
        %v1652 = vpop.f32.mrb[0].mxu0
        %v1653 = vadd.f32 0.0, %v1652
        %v1654 = vpop.f32.mrb[0].mxu0
        %v1655 = vpop.f32.mrb[0].mxu0
        %v1656 = vpop.f32.mrb[0].mxu0
        %1657 = vdwg.mxu0
        %v1658 = vpack.c.bf16 %v1653, %v1653
        %v1659 = vld [vmem:[%s6] sm:$0xf]
        %v1668 = vunpack.c.l.b16 %v1572
        %v1669 = vunpack.c.l.b16 %v1573
        %v1670 = vunpack.c.l.b16 %v1574
        %v1671 = vunpack.c.l.b16 %v1575
        %v1672 = vunpack.c.l.b16 %v1576
        %v1673 = vunpack.c.l.b16 %v1577
        %v1674 = vunpack.c.l.b16 %v1578
        %v1675 = vunpack.c.l.b16 %v1579
        %v1676 = vrot.slane %v1669, 7
        %v1677 = vsel %vm950, %v1676, %v1668
        %v1678 = vrot.slane %v1670, 6
        %v1679 = vsel %vm953, %v1678, %v1677
        %v1680 = vrot.slane %v1671, 5
        %v1681 = vsel %vm956, %v1680, %v1679
        %v1682 = vrot.slane %v1672, 4
        %v1683 = vsel %vm959, %v1682, %v1681
        %v1684 = vrot.slane %v1673, 3
        %v1685 = vsel %vm962, %v1684, %v1683
        %v1686 = vrot.slane %v1674, 2
        %v1687 = vsel %vm965, %v1686, %v1685
        %v1688 = vrot.slane %v1675, 1
        %v1689 = vsel %vm968, %v1688, %v1687
        %v1690 = vpack.c.b16 %v1689, %v1689
        %v1692 = vsel %vm971, %v1690, 0
        %v1695 = vsel %vm975, %v1659, 0
        %1697 = vmatprep.subr.bf16.mxu0 0
        %1698 = vmatpush1.bf16.msra.mxu0 %v1695
        %1699 = vmatprep.subr.bf16.mxu0 0
        %1700 = vmatpush1.bf16.msra.mxu0 0
        %1701 = vmatprep.subr.bf16.mxu0 0
        %1702 = vmatpush1.bf16.msra.mxu0 0
        %1703 = vmatprep.subr.bf16.mxu0 0
        %1704 = vmatpush1.bf16.msra.mxu0 0
        %1705 = vmatprep.subr.bf16.mxu0 0
        %1706 = vmatpush1.bf16.msra.mxu0 0
        %1707 = vmatprep.subr.bf16.mxu0 0
        %1708 = vmatpush1.bf16.msra.mxu0 0
        %1709 = vmatprep.subr.bf16.mxu0 0
        %1710 = vmatpush1.bf16.msra.mxu0 0
        %1711 = vmatprep.subr.bf16.mxu0 0
        %1712 = vmatpush1.bf16.msra.mxu0 0
        %1713 = vmatprep.subr.bf16.mxu0 0
        %1714 = vmatpush1.bf16.msra.mxu0 0
        %1715 = vmatprep.subr.bf16.mxu0 0
        %1716 = vmatpush1.bf16.msra.mxu0 0
        %1717 = vmatprep.subr.bf16.mxu0 0
        %1718 = vmatpush1.bf16.msra.mxu0 0
        %1719 = vmatprep.subr.bf16.mxu0 0
        %1720 = vmatpush1.bf16.msra.mxu0 0
        %1721 = vmatprep.subr.bf16.mxu0 0
        %1722 = vmatpush1.bf16.msra.mxu0 0
        %1723 = vmatprep.subr.bf16.mxu0 0
        %1724 = vmatpush1.bf16.msra.mxu0 0
        %1725 = vmatprep.subr.bf16.mxu0 0
        %1726 = vmatpush1.bf16.msra.mxu0 0
        %1727 = vmatprep.subr.bf16.mxu0 0
        %1728 = vmatpush1.bf16.msra.mxu0 0
        %1729 = vmatprep.mubr.bf16.mxu0 0
        %1730 = vmatmul.mubr.bf16.gmra.mrb[0].mxu0 %v1692
        %v1731 = vpop.f32.mrb[0].mxu0
        %v1732 = vadd.f32 0.0, %v1731
        %v1733 = vpop.f32.mrb[0].mxu0
        %v1734 = vpop.f32.mrb[0].mxu0
        %v1735 = vpop.f32.mrb[0].mxu0
        %1736 = vdwg.mxu0
        %v1737 = vpack.c.bf16 %v1732, %v1732
        %s1738 = scalar_lea.vmem [#allocation2], 8
        %v1739 = vld [vmem:[%s1738] sm:$0xf]
        %v1741 = vsel %vm971, %v1739, 0
        %v1744 = vsel %vm971, %v1658, 0
        %1746 = vmatprep.subr.bf16.mxu0 0
        %1747 = vmatpush1.bf16.xpose.msra.mxu0 %v1744
        %1748 = vmatprep.subr.bf16.mxu0 0
        %1749 = vmatpush1.bf16.xpose.msra.mxu0 0
        %1750 = vmatprep.subr.bf16.mxu0 0
        %1751 = vmatpush1.bf16.xpose.msra.mxu0 0
        %1752 = vmatprep.subr.bf16.mxu0 0
        %1753 = vmatpush1.bf16.xpose.msra.mxu0 0
        %1754 = vmatprep.subr.bf16.mxu0 0
        %1755 = vmatpush1.bf16.xpose.msra.mxu0 0
        %1756 = vmatprep.subr.bf16.mxu0 0
        %1757 = vmatpush1.bf16.xpose.msra.mxu0 0
        %1758 = vmatprep.subr.bf16.mxu0 0
        %1759 = vmatpush1.bf16.xpose.msra.mxu0 0
        %1760 = vmatprep.subr.bf16.mxu0 0
        %1761 = vmatpush1.bf16.xpose.msra.mxu0 0
        %1762 = vmatprep.subr.bf16.mxu0 0
        %1763 = vmatpush1.bf16.xpose.msra.mxu0 0
        %1764 = vmatprep.subr.bf16.mxu0 0
        %1765 = vmatpush1.bf16.xpose.msra.mxu0 0
        %1766 = vmatprep.subr.bf16.mxu0 0
        %1767 = vmatpush1.bf16.xpose.msra.mxu0 0
        %1768 = vmatprep.subr.bf16.mxu0 0
        %1769 = vmatpush1.bf16.xpose.msra.mxu0 0
        %1770 = vmatprep.subr.bf16.mxu0 0
        %1771 = vmatpush1.bf16.xpose.msra.mxu0 0
        %1772 = vmatprep.subr.bf16.mxu0 0
        %1773 = vmatpush1.bf16.xpose.msra.mxu0 0
        %1774 = vmatprep.subr.bf16.mxu0 0
        %1775 = vmatpush1.bf16.xpose.msra.mxu0 0
        %1776 = vmatprep.subr.bf16.mxu0 0
        %1777 = vmatpush1.bf16.xpose.msra.mxu0 0
        %1778 = vmatprep.mubr.bf16.mxu0 0
        %1779 = vmatmul.mubr.bf16.gmra.mrb[0].mxu0 %v1741
        %v1780 = vpop.f32.mrb[0].mxu0
        %v1781 = vadd.f32 %v899, %v1780
        %v1782 = vpop.f32.mrb[0].mxu0
        %v1783 = vpop.f32.mrb[0].mxu0
        %v1784 = vpop.f32.mrb[0].mxu0
        %1785 = vdwg.mxu0
        %s1786 = scalar_lea.vmem [#allocation3], 16
        %v1787 = vld [vmem:[%s1786] sm:$0xff]
        %v1788 = vsel %vm971, %v1781, -inf
        %1789 = vmax.xlane.f32.xlu0 %v1788
        %v1790 = vpop.xlane.xlu0 %1789
        %v1791 = vmax.f32 %v1787, %v1790
        %v1792 = vsub.f32 %v1787, %v1791
        %v1793 = vmul.f32 %v1792, 1.442695
        %v1794 = vpow.pop %v1793
        %1796 = vset.pattern.permute.xlu0 0
        %1797 = vperm.xlu0 %1796, %v1791
        %v1798 = vpop.permute.xlu0 %1797
        %v1800 = vsub.f32 %v1781, %v1798
        %v1801 = vmul.f32 %v1800, 1.442695
        %v1802 = vpow.pop %v1801
        %s1803 = scalar_lea.vmem [#allocation4], 16
        %v1804 = vld [vmem:[%s1803] sm:$0xff]
        %v1805 = vmul.f32 %v1794, %v1804
        %v1806 = vsel %vm971, %v1802, 0.0
        %1807 = vadd.xlane.f32.xlu0 %v1806
        %v1808 = vpop.xlane.xlu0 %1807
        %v1809 = vadd.f32 %v1805, %v1808
        %1810 = vst.msk [vmem:[%s1803] sm:$0xff] %vm1168, %v1809
        %s1811 = scalar_lea.vmem [#allocation5], 16
        %v1812 = vld [vmem:[%s1811] sm:$0xff]
        %1814 = vset.pattern.permute.xlu0 0
        %1815 = vperm.xlu0 %1814, %v1794
        %v1816 = vpop.permute.xlu0 %1815
        %v1818 = vmul.f32 %v1816, %v1812
        %v1819 = vpack.c.bf16 %v1802, %v1802
        %v1821 = vsel %vm971, %v1819, 0
        %v1824 = vsel %vm975, %v1737, 0
        %1826 = vmatprep.subr.bf16.mxu0 0
        %1827 = vmatpush1.bf16.msra.mxu0 %v1824
        %1828 = vmatprep.subr.bf16.mxu0 0
        %1829 = vmatpush1.bf16.msra.mxu0 0
        %1830 = vmatprep.subr.bf16.mxu0 0
        %1831 = vmatpush1.bf16.msra.mxu0 0
        %1832 = vmatprep.subr.bf16.mxu0 0
        %1833 = vmatpush1.bf16.msra.mxu0 0
        %1834 = vmatprep.subr.bf16.mxu0 0
        %1835 = vmatpush1.bf16.msra.mxu0 0
        %1836 = vmatprep.subr.bf16.mxu0 0
        %1837 = vmatpush1.bf16.msra.mxu0 0
        %1838 = vmatprep.subr.bf16.mxu0 0
        %1839 = vmatpush1.bf16.msra.mxu0 0
        %1840 = vmatprep.subr.bf16.mxu0 0
        %1841 = vmatpush1.bf16.msra.mxu0 0
        %1842 = vmatprep.subr.bf16.mxu0 0
        %1843 = vmatpush1.bf16.msra.mxu0 0
        %1844 = vmatprep.subr.bf16.mxu0 0
        %1845 = vmatpush1.bf16.msra.mxu0 0
        %1846 = vmatprep.subr.bf16.mxu0 0
        %1847 = vmatpush1.bf16.msra.mxu0 0
        %1848 = vmatprep.subr.bf16.mxu0 0
        %1849 = vmatpush1.bf16.msra.mxu0 0
        %1850 = vmatprep.subr.bf16.mxu0 0
        %1851 = vmatpush1.bf16.msra.mxu0 0
        %1852 = vmatprep.subr.bf16.mxu0 0
        %1853 = vmatpush1.bf16.msra.mxu0 0
        %1854 = vmatprep.subr.bf16.mxu0 0
        %1855 = vmatpush1.bf16.msra.mxu0 0
        %1856 = vmatprep.subr.bf16.mxu0 0
        %1857 = vmatpush1.bf16.msra.mxu0 0
        %1858 = vmatprep.mubr.bf16.mxu0 0
        %1859 = vmatmul.mubr.bf16.gmra.mrb[0].mxu0 %v1821
        %v1860 = vpop.f32.mrb[0].mxu0
        %v1861 = vadd.f32 0.0, %v1860
        %v1862 = vpop.f32.mrb[0].mxu0
        %v1863 = vpop.f32.mrb[0].mxu0
        %v1864 = vpop.f32.mrb[0].mxu0
        %1865 = vdwg.mxu0
        %v1866 = vadd.f32 %v1818, %v1861
        %1867 = vst.msk [vmem:[%s1811] sm:$0xff] %vm971, %v1866
        %1868 = vst.msk [vmem:[%s1786] sm:$0xff] %vm1168, %v1791
        %v1869 = vld [vmem:[%s467 + $0x3] sm:$0x1]
        %v1870 = vld [vmem:[%s467 + $0x7] sm:$0x1]
        %v1871 = vld [vmem:[%s467 + $0xb] sm:$0x1]
        %v1872 = vld [vmem:[%s467 + $0xf] sm:$0x1]
        %v1873 = vld [vmem:[%s467 + $0x13] sm:$0x1]
        %v1874 = vld [vmem:[%s467 + $0x17] sm:$0x1]
        %v1875 = vld [vmem:[%s467 + $0x1b] sm:$0x1]
        %v1876 = vld [vmem:[%s467 + $0x1f] sm:$0x1]
        %v1877 = vpack.c.bf16 %v1869, %v1869
        %v1878 = vpack.c.bf16 %v1870, %v1870
        %v1879 = vpack.c.bf16 %v1871, %v1871
        %v1880 = vpack.c.bf16 %v1872, %v1872
        %v1881 = vpack.c.bf16 %v1873, %v1873
        %v1882 = vpack.c.bf16 %v1874, %v1874
        %v1883 = vpack.c.bf16 %v1875, %v1875
        %v1884 = vpack.c.bf16 %v1876, %v1876
        %v1885 = vld [vmem:[%s477 + $0x3] sm:$0x1]
        %v1886 = vld [vmem:[%s477 + $0x7] sm:$0x1]
        %v1887 = vld [vmem:[%s477 + $0xb] sm:$0x1]
        %v1888 = vld [vmem:[%s477 + $0xf] sm:$0x1]
        %v1889 = vld [vmem:[%s477 + $0x13] sm:$0x1]
        %v1890 = vld [vmem:[%s477 + $0x17] sm:$0x1]
        %v1891 = vld [vmem:[%s477 + $0x1b] sm:$0x1]
        %v1892 = vld [vmem:[%s477 + $0x1f] sm:$0x1]
        %v1893 = vpack.c.bf16 %v1885, %v1885
        %v1894 = vpack.c.bf16 %v1886, %v1886
        %v1895 = vpack.c.bf16 %v1887, %v1887
        %v1896 = vpack.c.bf16 %v1888, %v1888
        %v1897 = vpack.c.bf16 %v1889, %v1889
        %v1898 = vpack.c.bf16 %v1890, %v1890
        %v1899 = vpack.c.bf16 %v1891, %v1891
        %v1900 = vpack.c.bf16 %v1892, %v1892
        %v1901 = vld [vmem:[%s5] sm:$0xf]
        %v1910 = vunpack.c.l.b16 %v1877
        %v1911 = vunpack.c.l.b16 %v1878
        %v1912 = vunpack.c.l.b16 %v1879
        %v1913 = vunpack.c.l.b16 %v1880
        %v1914 = vunpack.c.l.b16 %v1881
        %v1915 = vunpack.c.l.b16 %v1882
        %v1916 = vunpack.c.l.b16 %v1883
        %v1917 = vunpack.c.l.b16 %v1884
        %v1918 = vrot.slane %v1911, 7
        %v1919 = vsel %vm950, %v1918, %v1910
        %v1920 = vrot.slane %v1912, 6
        %v1921 = vsel %vm953, %v1920, %v1919
        %v1922 = vrot.slane %v1913, 5
        %v1923 = vsel %vm956, %v1922, %v1921
        %v1924 = vrot.slane %v1914, 4
        %v1925 = vsel %vm959, %v1924, %v1923
        %v1926 = vrot.slane %v1915, 3
        %v1927 = vsel %vm962, %v1926, %v1925
        %v1928 = vrot.slane %v1916, 2
        %v1929 = vsel %vm965, %v1928, %v1927
        %v1930 = vrot.slane %v1917, 1
        %v1931 = vsel %vm968, %v1930, %v1929
        %v1932 = vpack.c.b16 %v1931, %v1931
        %v1934 = vsel %vm971, %v1932, 0
        %v1937 = vsel %vm975, %v1901, 0
        %1939 = vmatprep.subr.bf16.mxu0 0
        %1940 = vmatpush1.bf16.msra.mxu0 %v1937
        %1941 = vmatprep.subr.bf16.mxu0 0
        %1942 = vmatpush1.bf16.msra.mxu0 0
        %1943 = vmatprep.subr.bf16.mxu0 0
        %1944 = vmatpush1.bf16.msra.mxu0 0
        %1945 = vmatprep.subr.bf16.mxu0 0
        %1946 = vmatpush1.bf16.msra.mxu0 0
        %1947 = vmatprep.subr.bf16.mxu0 0
        %1948 = vmatpush1.bf16.msra.mxu0 0
        %1949 = vmatprep.subr.bf16.mxu0 0
        %1950 = vmatpush1.bf16.msra.mxu0 0
        %1951 = vmatprep.subr.bf16.mxu0 0
        %1952 = vmatpush1.bf16.msra.mxu0 0
        %1953 = vmatprep.subr.bf16.mxu0 0
        %1954 = vmatpush1.bf16.msra.mxu0 0
        %1955 = vmatprep.subr.bf16.mxu0 0
        %1956 = vmatpush1.bf16.msra.mxu0 0
        %1957 = vmatprep.subr.bf16.mxu0 0
        %1958 = vmatpush1.bf16.msra.mxu0 0
        %1959 = vmatprep.subr.bf16.mxu0 0
        %1960 = vmatpush1.bf16.msra.mxu0 0
        %1961 = vmatprep.subr.bf16.mxu0 0
        %1962 = vmatpush1.bf16.msra.mxu0 0
        %1963 = vmatprep.subr.bf16.mxu0 0
        %1964 = vmatpush1.bf16.msra.mxu0 0
        %1965 = vmatprep.subr.bf16.mxu0 0
        %1966 = vmatpush1.bf16.msra.mxu0 0
        %1967 = vmatprep.subr.bf16.mxu0 0
        %1968 = vmatpush1.bf16.msra.mxu0 0
        %1969 = vmatprep.subr.bf16.mxu0 0
        %1970 = vmatpush1.bf16.msra.mxu0 0
        %1971 = vmatprep.mubr.bf16.mxu0 0
        %1972 = vmatmul.mubr.bf16.gmra.mrb[0].mxu0 %v1934
        %v1973 = vpop.f32.mrb[0].mxu0
        %v1974 = vadd.f32 0.0, %v1973
        %v1975 = vpop.f32.mrb[0].mxu0
        %v1976 = vpop.f32.mrb[0].mxu0
        %v1977 = vpop.f32.mrb[0].mxu0
        %1978 = vdwg.mxu0
        %v1979 = vpack.c.bf16 %v1974, %v1974
        %v1980 = vld [vmem:[%s6] sm:$0xf]
        %v1989 = vunpack.c.l.b16 %v1893
        %v1990 = vunpack.c.l.b16 %v1894
        %v1991 = vunpack.c.l.b16 %v1895
        %v1992 = vunpack.c.l.b16 %v1896
        %v1993 = vunpack.c.l.b16 %v1897
        %v1994 = vunpack.c.l.b16 %v1898
        %v1995 = vunpack.c.l.b16 %v1899
        %v1996 = vunpack.c.l.b16 %v1900
        %v1997 = vrot.slane %v1990, 7
        %v1998 = vsel %vm950, %v1997, %v1989
        %v1999 = vrot.slane %v1991, 6
        %v2000 = vsel %vm953, %v1999, %v1998
        %v2001 = vrot.slane %v1992, 5
        %v2002 = vsel %vm956, %v2001, %v2000
        %v2003 = vrot.slane %v1993, 4
        %v2004 = vsel %vm959, %v2003, %v2002
        %v2005 = vrot.slane %v1994, 3
        %v2006 = vsel %vm962, %v2005, %v2004
        %v2007 = vrot.slane %v1995, 2
        %v2008 = vsel %vm965, %v2007, %v2006
        %v2009 = vrot.slane %v1996, 1
        %v2010 = vsel %vm968, %v2009, %v2008
        %v2011 = vpack.c.b16 %v2010, %v2010
        %v2013 = vsel %vm971, %v2011, 0
        %v2016 = vsel %vm975, %v1980, 0
        %2018 = vmatprep.subr.bf16.mxu0 0
        %2019 = vmatpush1.bf16.msra.mxu0 %v2016
        %2020 = vmatprep.subr.bf16.mxu0 0
        %2021 = vmatpush1.bf16.msra.mxu0 0
        %2022 = vmatprep.subr.bf16.mxu0 0
        %2023 = vmatpush1.bf16.msra.mxu0 0
        %2024 = vmatprep.subr.bf16.mxu0 0
        %2025 = vmatpush1.bf16.msra.mxu0 0
        %2026 = vmatprep.subr.bf16.mxu0 0
        %2027 = vmatpush1.bf16.msra.mxu0 0
        %2028 = vmatprep.subr.bf16.mxu0 0
        %2029 = vmatpush1.bf16.msra.mxu0 0
        %2030 = vmatprep.subr.bf16.mxu0 0
        %2031 = vmatpush1.bf16.msra.mxu0 0
        %2032 = vmatprep.subr.bf16.mxu0 0
        %2033 = vmatpush1.bf16.msra.mxu0 0
        %2034 = vmatprep.subr.bf16.mxu0 0
        %2035 = vmatpush1.bf16.msra.mxu0 0
        %2036 = vmatprep.subr.bf16.mxu0 0
        %2037 = vmatpush1.bf16.msra.mxu0 0
        %2038 = vmatprep.subr.bf16.mxu0 0
        %2039 = vmatpush1.bf16.msra.mxu0 0
        %2040 = vmatprep.subr.bf16.mxu0 0
        %2041 = vmatpush1.bf16.msra.mxu0 0
        %2042 = vmatprep.subr.bf16.mxu0 0
        %2043 = vmatpush1.bf16.msra.mxu0 0
        %2044 = vmatprep.subr.bf16.mxu0 0
        %2045 = vmatpush1.bf16.msra.mxu0 0
        %2046 = vmatprep.subr.bf16.mxu0 0
        %2047 = vmatpush1.bf16.msra.mxu0 0
        %2048 = vmatprep.subr.bf16.mxu0 0
        %2049 = vmatpush1.bf16.msra.mxu0 0
        %2050 = vmatprep.mubr.bf16.mxu0 0
        %2051 = vmatmul.mubr.bf16.gmra.mrb[0].mxu0 %v2013
        %v2052 = vpop.f32.mrb[0].mxu0
        %v2053 = vadd.f32 0.0, %v2052
        %v2054 = vpop.f32.mrb[0].mxu0
        %v2055 = vpop.f32.mrb[0].mxu0
        %v2056 = vpop.f32.mrb[0].mxu0
        %2057 = vdwg.mxu0
        %v2058 = vpack.c.bf16 %v2053, %v2053
        %s2059 = scalar_lea.vmem [#allocation2], 12
        %v2060 = vld [vmem:[%s2059] sm:$0xf]
        %v2062 = vsel %vm971, %v2060, 0
        %v2065 = vsel %vm971, %v1979, 0
        %2067 = vmatprep.subr.bf16.mxu0 0
        %2068 = vmatpush1.bf16.xpose.msra.mxu0 %v2065
        %2069 = vmatprep.subr.bf16.mxu0 0
        %2070 = vmatpush1.bf16.xpose.msra.mxu0 0
        %2071 = vmatprep.subr.bf16.mxu0 0
        %2072 = vmatpush1.bf16.xpose.msra.mxu0 0
        %2073 = vmatprep.subr.bf16.mxu0 0
        %2074 = vmatpush1.bf16.xpose.msra.mxu0 0
        %2075 = vmatprep.subr.bf16.mxu0 0
        %2076 = vmatpush1.bf16.xpose.msra.mxu0 0
        %2077 = vmatprep.subr.bf16.mxu0 0
        %2078 = vmatpush1.bf16.xpose.msra.mxu0 0
        %2079 = vmatprep.subr.bf16.mxu0 0
        %2080 = vmatpush1.bf16.xpose.msra.mxu0 0
        %2081 = vmatprep.subr.bf16.mxu0 0
        %2082 = vmatpush1.bf16.xpose.msra.mxu0 0
        %2083 = vmatprep.subr.bf16.mxu0 0
        %2084 = vmatpush1.bf16.xpose.msra.mxu0 0
        %2085 = vmatprep.subr.bf16.mxu0 0
        %2086 = vmatpush1.bf16.xpose.msra.mxu0 0
        %2087 = vmatprep.subr.bf16.mxu0 0
        %2088 = vmatpush1.bf16.xpose.msra.mxu0 0
        %2089 = vmatprep.subr.bf16.mxu0 0
        %2090 = vmatpush1.bf16.xpose.msra.mxu0 0
        %2091 = vmatprep.subr.bf16.mxu0 0
        %2092 = vmatpush1.bf16.xpose.msra.mxu0 0
        %2093 = vmatprep.subr.bf16.mxu0 0
        %2094 = vmatpush1.bf16.xpose.msra.mxu0 0
        %2095 = vmatprep.subr.bf16.mxu0 0
        %2096 = vmatpush1.bf16.xpose.msra.mxu0 0
        %2097 = vmatprep.subr.bf16.mxu0 0
        %2098 = vmatpush1.bf16.xpose.msra.mxu0 0
        %2099 = vmatprep.mubr.bf16.mxu0 0
        %2100 = vmatmul.mubr.bf16.gmra.mrb[0].mxu0 %v2062
        %v2101 = vpop.f32.mrb[0].mxu0
        %v2102 = vadd.f32 %v899, %v2101
        %v2103 = vpop.f32.mrb[0].mxu0
        %v2104 = vpop.f32.mrb[0].mxu0
        %v2105 = vpop.f32.mrb[0].mxu0
        %2106 = vdwg.mxu0
        %s2107 = scalar_lea.vmem [#allocation3], 24
        %v2108 = vld [vmem:[%s2107] sm:$0xff]
        %v2109 = vsel %vm971, %v2102, -inf
        %2110 = vmax.xlane.f32.xlu0 %v2109
        %v2111 = vpop.xlane.xlu0 %2110
        %v2112 = vmax.f32 %v2108, %v2111
        %v2113 = vsub.f32 %v2108, %v2112
        %v2114 = vmul.f32 %v2113, 1.442695
        %v2115 = vpow.pop %v2114
        %2117 = vset.pattern.permute.xlu0 0
        %2118 = vperm.xlu0 %2117, %v2112
        %v2119 = vpop.permute.xlu0 %2118
        %v2121 = vsub.f32 %v2102, %v2119
        %v2122 = vmul.f32 %v2121, 1.442695
        %v2123 = vpow.pop %v2122
        %s2124 = scalar_lea.vmem [#allocation4], 24
        %v2125 = vld [vmem:[%s2124] sm:$0xff]
        %v2126 = vmul.f32 %v2115, %v2125
        %v2127 = vsel %vm971, %v2123, 0.0
        %2128 = vadd.xlane.f32.xlu0 %v2127
        %v2129 = vpop.xlane.xlu0 %2128
        %v2130 = vadd.f32 %v2126, %v2129
        %2131 = vst.msk [vmem:[%s2124] sm:$0xff] %vm1168, %v2130
        %s2132 = scalar_lea.vmem [#allocation5], 24
        %v2133 = vld [vmem:[%s2132] sm:$0xff]
        %2135 = vset.pattern.permute.xlu0 0
        %2136 = vperm.xlu0 %2135, %v2115
        %v2137 = vpop.permute.xlu0 %2136
        %v2139 = vmul.f32 %v2137, %v2133
        %v2140 = vpack.c.bf16 %v2123, %v2123
        %v2142 = vsel %vm971, %v2140, 0
        %v2145 = vsel %vm975, %v2058, 0
        %2147 = vmatprep.subr.bf16.mxu0 0
        %2148 = vmatpush1.bf16.msra.mxu0 %v2145
        %2149 = vmatprep.subr.bf16.mxu0 0
        %2150 = vmatpush1.bf16.msra.mxu0 0
        %2151 = vmatprep.subr.bf16.mxu0 0
        %2152 = vmatpush1.bf16.msra.mxu0 0
        %2153 = vmatprep.subr.bf16.mxu0 0
        %2154 = vmatpush1.bf16.msra.mxu0 0
        %2155 = vmatprep.subr.bf16.mxu0 0
        %2156 = vmatpush1.bf16.msra.mxu0 0
        %2157 = vmatprep.subr.bf16.mxu0 0
        %2158 = vmatpush1.bf16.msra.mxu0 0
        %2159 = vmatprep.subr.bf16.mxu0 0
        %2160 = vmatpush1.bf16.msra.mxu0 0
        %2161 = vmatprep.subr.bf16.mxu0 0
        %2162 = vmatpush1.bf16.msra.mxu0 0
        %2163 = vmatprep.subr.bf16.mxu0 0
        %2164 = vmatpush1.bf16.msra.mxu0 0
        %2165 = vmatprep.subr.bf16.mxu0 0
        %2166 = vmatpush1.bf16.msra.mxu0 0
        %2167 = vmatprep.subr.bf16.mxu0 0
        %2168 = vmatpush1.bf16.msra.mxu0 0
        %2169 = vmatprep.subr.bf16.mxu0 0
        %2170 = vmatpush1.bf16.msra.mxu0 0
        %2171 = vmatprep.subr.bf16.mxu0 0
        %2172 = vmatpush1.bf16.msra.mxu0 0
        %2173 = vmatprep.subr.bf16.mxu0 0
        %2174 = vmatpush1.bf16.msra.mxu0 0
        %2175 = vmatprep.subr.bf16.mxu0 0
        %2176 = vmatpush1.bf16.msra.mxu0 0
        %2177 = vmatprep.subr.bf16.mxu0 0
        %2178 = vmatpush1.bf16.msra.mxu0 0
        %2179 = vmatprep.mubr.bf16.mxu0 0
        %2180 = vmatmul.mubr.bf16.gmra.mrb[0].mxu0 %v2142
        %v2181 = vpop.f32.mrb[0].mxu0
        %v2182 = vadd.f32 0.0, %v2181
        %v2183 = vpop.f32.mrb[0].mxu0
        %v2184 = vpop.f32.mrb[0].mxu0
        %v2185 = vpop.f32.mrb[0].mxu0
        %2186 = vdwg.mxu0
        %v2187 = vadd.f32 %v2139, %v2182
        %2188 = vst.msk [vmem:[%s2132] sm:$0xff] %vm971, %v2187
        %2189 = vst.msk [vmem:[%s2107] sm:$0xff] %vm1168, %v2112
        // Predicated region
        $region61: #{self_attention_forward.1} parent=55 // pred_check
          %p2190 = pneg %p480
        $region62: #{self_attention_forward.1} parent=55 // pred_check_branch
          %2192 = sbr.rel (%p2190) target = $region64
        $region63: #{self_attention_forward.1} parent=55 // pred_region
          %v2193 = vld [vmem:[#allocation5] sm:$0xff]
          %v2194 = vld [vmem:[#allocation4] sm:$0xff]
          %2196 = vset.pattern.permute.xlu0 0
          %2197 = vperm.xlu0 %2196, %v2194
          %v2198 = vpop.permute.xlu0 %2197
          %v2200 = vrcp.pop %v2198
          %v2201 = vmul.f32 %v2193, %v2200
          %v2202 = vpack.c.bf16 %v2201, %v2201
          %v2203 = vld [vmem:[%s7] sm:$0xf]
          %v2204 = vld [vmem:[%s1490] sm:$0xff]
          %v2205 = vld [vmem:[%s1482] sm:$0xff]
          %2207 = vset.pattern.permute.xlu0 0
          %2208 = vperm.xlu0 %2207, %v2205
          %v2209 = vpop.permute.xlu0 %2208
          %v2211 = vrcp.pop %v2209
          %v2212 = vmul.f32 %v2204, %v2211
          %v2213 = vpack.c.bf16 %v2212, %v2212
          %s2214 = scalar_lea.vmem %s7, 4
          %v2215 = vld [vmem:[%s2214] sm:$0xf]
          %v2217 = vsel %vm971, %v2213, 0
          %v2220 = vsel %vm975, %v2215, 0
          %2222 = vmatprep.subr.bf16.mxu0 0
          %2223 = vmatpush1.bf16.msra.mxu0 %v2220
          %2224 = vmatprep.subr.bf16.mxu0 0
          %2225 = vmatpush1.bf16.msra.mxu0 0
          %2226 = vmatprep.subr.bf16.mxu0 0
          %2227 = vmatpush1.bf16.msra.mxu0 0
          %2228 = vmatprep.subr.bf16.mxu0 0
          %2229 = vmatpush1.bf16.msra.mxu0 0
          %2230 = vmatprep.subr.bf16.mxu0 0
          %2231 = vmatpush1.bf16.msra.mxu0 0
          %2232 = vmatprep.subr.bf16.mxu0 0
          %2233 = vmatpush1.bf16.msra.mxu0 0
          %2234 = vmatprep.subr.bf16.mxu0 0
          %2235 = vmatpush1.bf16.msra.mxu0 0
          %2236 = vmatprep.subr.bf16.mxu0 0
          %2237 = vmatpush1.bf16.msra.mxu0 0
          %2238 = vmatprep.subr.bf16.mxu0 0
          %2239 = vmatpush1.bf16.msra.mxu0 0
          %2240 = vmatprep.subr.bf16.mxu0 0
          %2241 = vmatpush1.bf16.msra.mxu0 0
          %2242 = vmatprep.subr.bf16.mxu0 0
          %2243 = vmatpush1.bf16.msra.mxu0 0
          %2244 = vmatprep.subr.bf16.mxu0 0
          %2245 = vmatpush1.bf16.msra.mxu0 0
          %2246 = vmatprep.subr.bf16.mxu0 0
          %2247 = vmatpush1.bf16.msra.mxu0 0
          %2248 = vmatprep.subr.bf16.mxu0 0
          %2249 = vmatpush1.bf16.msra.mxu0 0
          %2250 = vmatprep.subr.bf16.mxu0 0
          %2251 = vmatpush1.bf16.msra.mxu0 0
          %2252 = vmatprep.subr.bf16.mxu0 0
          %2253 = vmatpush1.bf16.msra.mxu0 0
          %2254 = vmatprep.mubr.bf16.mxu0 0
          %2255 = vmatmul.mubr.bf16.gmra.mrb[0].mxu0 %v2217
          %v2256 = vpop.f32.mrb[0].mxu0
          %v2257 = vadd.f32 0.0, %v2256
          %v2258 = vpop.f32.mrb[0].mxu0
          %v2259 = vpop.f32.mrb[0].mxu0
          %v2260 = vpop.f32.mrb[0].mxu0
          %2261 = vdwg.mxu0
          %v2263 = vsel %vm971, %v2202, 0
          %v2266 = vsel %vm975, %v2203, 0
          %2268 = vmatprep.subr.bf16.mxu0 0
          %2269 = vmatpush1.bf16.msra.mxu0 %v2266
          %2270 = vmatprep.subr.bf16.mxu0 0
          %2271 = vmatpush1.bf16.msra.mxu0 0
          %2272 = vmatprep.subr.bf16.mxu0 0
          %2273 = vmatpush1.bf16.msra.mxu0 0
          %2274 = vmatprep.subr.bf16.mxu0 0
          %2275 = vmatpush1.bf16.msra.mxu0 0
          %2276 = vmatprep.subr.bf16.mxu0 0
          %2277 = vmatpush1.bf16.msra.mxu0 0
          %2278 = vmatprep.subr.bf16.mxu0 0
          %2279 = vmatpush1.bf16.msra.mxu0 0
          %2280 = vmatprep.subr.bf16.mxu0 0
          %2281 = vmatpush1.bf16.msra.mxu0 0
          %2282 = vmatprep.subr.bf16.mxu0 0
          %2283 = vmatpush1.bf16.msra.mxu0 0
          %2284 = vmatprep.subr.bf16.mxu0 0
          %2285 = vmatpush1.bf16.msra.mxu0 0
          %2286 = vmatprep.subr.bf16.mxu0 0
          %2287 = vmatpush1.bf16.msra.mxu0 0
          %2288 = vmatprep.subr.bf16.mxu0 0
          %2289 = vmatpush1.bf16.msra.mxu0 0
          %2290 = vmatprep.subr.bf16.mxu0 0
          %2291 = vmatpush1.bf16.msra.mxu0 0
          %2292 = vmatprep.subr.bf16.mxu0 0
          %2293 = vmatpush1.bf16.msra.mxu0 0
          %2294 = vmatprep.subr.bf16.mxu0 0
          %2295 = vmatpush1.bf16.msra.mxu0 0
          %2296 = vmatprep.subr.bf16.mxu0 0
          %2297 = vmatpush1.bf16.msra.mxu0 0
          %2298 = vmatprep.subr.bf16.mxu0 0
          %2299 = vmatpush1.bf16.msra.mxu0 0
          %2300 = vmatprep.mubr.bf16.mxu0 0
          %2301 = vmatmul.mubr.bf16.gmra.mrb[0].mxu0 %v2263
          %v2302 = vpop.f32.mrb[0].mxu0
          %v2303 = vadd.f32 %v2257, %v2302
          %v2304 = vpop.f32.mrb[0].mxu0
          %v2305 = vpop.f32.mrb[0].mxu0
          %v2306 = vpop.f32.mrb[0].mxu0
          %2307 = vdwg.mxu0
          %v2308 = vld [vmem:[%s1811] sm:$0xff]
          %v2309 = vld [vmem:[%s1803] sm:$0xff]
          %2311 = vset.pattern.permute.xlu0 0
          %2312 = vperm.xlu0 %2311, %v2309
          %v2313 = vpop.permute.xlu0 %2312
          %v2315 = vrcp.pop %v2313
          %v2316 = vmul.f32 %v2308, %v2315
          %v2317 = vpack.c.bf16 %v2316, %v2316
          %s2318 = scalar_lea.vmem %s7, 8
          %v2319 = vld [vmem:[%s2318] sm:$0xf]
          %v2321 = vsel %vm971, %v2317, 0
          %v2324 = vsel %vm975, %v2319, 0
          %2326 = vmatprep.subr.bf16.mxu0 0
          %2327 = vmatpush1.bf16.msra.mxu0 %v2324
          %2328 = vmatprep.subr.bf16.mxu0 0
          %2329 = vmatpush1.bf16.msra.mxu0 0
          %2330 = vmatprep.subr.bf16.mxu0 0
          %2331 = vmatpush1.bf16.msra.mxu0 0
          %2332 = vmatprep.subr.bf16.mxu0 0
          %2333 = vmatpush1.bf16.msra.mxu0 0
          %2334 = vmatprep.subr.bf16.mxu0 0
          %2335 = vmatpush1.bf16.msra.mxu0 0
          %2336 = vmatprep.subr.bf16.mxu0 0
          %2337 = vmatpush1.bf16.msra.mxu0 0
          %2338 = vmatprep.subr.bf16.mxu0 0
          %2339 = vmatpush1.bf16.msra.mxu0 0
          %2340 = vmatprep.subr.bf16.mxu0 0
          %2341 = vmatpush1.bf16.msra.mxu0 0
          %2342 = vmatprep.subr.bf16.mxu0 0
          %2343 = vmatpush1.bf16.msra.mxu0 0
          %2344 = vmatprep.subr.bf16.mxu0 0
          %2345 = vmatpush1.bf16.msra.mxu0 0
          %2346 = vmatprep.subr.bf16.mxu0 0
          %2347 = vmatpush1.bf16.msra.mxu0 0
          %2348 = vmatprep.subr.bf16.mxu0 0
          %2349 = vmatpush1.bf16.msra.mxu0 0
          %2350 = vmatprep.subr.bf16.mxu0 0
          %2351 = vmatpush1.bf16.msra.mxu0 0
          %2352 = vmatprep.subr.bf16.mxu0 0
          %2353 = vmatpush1.bf16.msra.mxu0 0
          %2354 = vmatprep.subr.bf16.mxu0 0
          %2355 = vmatpush1.bf16.msra.mxu0 0
          %2356 = vmatprep.subr.bf16.mxu0 0
          %2357 = vmatpush1.bf16.msra.mxu0 0
          %2358 = vmatprep.mubr.bf16.mxu0 0
          %2359 = vmatmul.mubr.bf16.gmra.mrb[0].mxu0 %v2321
          %v2360 = vpop.f32.mrb[0].mxu0
          %v2361 = vadd.f32 0.0, %v2360
          %v2362 = vpop.f32.mrb[0].mxu0
          %v2363 = vpop.f32.mrb[0].mxu0
          %v2364 = vpop.f32.mrb[0].mxu0
          %2365 = vdwg.mxu0
          %v2366 = vadd.f32 %v2303, %v2361
          %v2367 = vld [vmem:[%s2132] sm:$0xff]
          %v2368 = vld [vmem:[%s2124] sm:$0xff]
          %2370 = vset.pattern.permute.xlu0 0
          %2371 = vperm.xlu0 %2370, %v2368
          %v2372 = vpop.permute.xlu0 %2371
          %v2374 = vrcp.pop %v2372
          %v2375 = vmul.f32 %v2367, %v2374
          %v2376 = vpack.c.bf16 %v2375, %v2375
          %s2377 = scalar_lea.vmem %s7, 12
          %v2378 = vld [vmem:[%s2377] sm:$0xf]
          %v2380 = vsel %vm971, %v2376, 0
          %v2383 = vsel %vm975, %v2378, 0
          %2385 = vmatprep.subr.bf16.mxu0 0
          %2386 = vmatpush1.bf16.msra.mxu0 %v2383
          %2387 = vmatprep.subr.bf16.mxu0 0
          %2388 = vmatpush1.bf16.msra.mxu0 0
          %2389 = vmatprep.subr.bf16.mxu0 0
          %2390 = vmatpush1.bf16.msra.mxu0 0
          %2391 = vmatprep.subr.bf16.mxu0 0
          %2392 = vmatpush1.bf16.msra.mxu0 0
          %2393 = vmatprep.subr.bf16.mxu0 0
          %2394 = vmatpush1.bf16.msra.mxu0 0
          %2395 = vmatprep.subr.bf16.mxu0 0
          %2396 = vmatpush1.bf16.msra.mxu0 0
          %2397 = vmatprep.subr.bf16.mxu0 0
          %2398 = vmatpush1.bf16.msra.mxu0 0
          %2399 = vmatprep.subr.bf16.mxu0 0
          %2400 = vmatpush1.bf16.msra.mxu0 0
          %2401 = vmatprep.subr.bf16.mxu0 0
          %2402 = vmatpush1.bf16.msra.mxu0 0
          %2403 = vmatprep.subr.bf16.mxu0 0
          %2404 = vmatpush1.bf16.msra.mxu0 0
          %2405 = vmatprep.subr.bf16.mxu0 0
          %2406 = vmatpush1.bf16.msra.mxu0 0
          %2407 = vmatprep.subr.bf16.mxu0 0
          %2408 = vmatpush1.bf16.msra.mxu0 0
          %2409 = vmatprep.subr.bf16.mxu0 0
          %2410 = vmatpush1.bf16.msra.mxu0 0
          %2411 = vmatprep.subr.bf16.mxu0 0
          %2412 = vmatpush1.bf16.msra.mxu0 0
          %2413 = vmatprep.subr.bf16.mxu0 0
          %2414 = vmatpush1.bf16.msra.mxu0 0
          %2415 = vmatprep.subr.bf16.mxu0 0
          %2416 = vmatpush1.bf16.msra.mxu0 0
          %2417 = vmatprep.mubr.bf16.mxu0 0
          %2418 = vmatmul.mubr.bf16.gmra.mrb[0].mxu0 %v2380
          %v2419 = vpop.f32.mrb[0].mxu0
          %v2420 = vadd.f32 0.0, %v2419
          %v2421 = vpop.f32.mrb[0].mxu0
          %v2422 = vpop.f32.mrb[0].mxu0
          %v2423 = vpop.f32.mrb[0].mxu0
          %2424 = vdwg.mxu0
          %v2425 = vadd.f32 %v2366, %v2420
          %v2426 = vld [vmem:[%s8] sm:$0x1]
          %v2428 = vlaneseq
          %v2429 = vshrl.u32 %v2428, 7
          %v2430 = vsub.s32 0, %v2429
          %v2431 = vrot.slane %v2426, %v2430
          %v2433 = vadd.f32 %v2425, %v2431
          %vm2434 = vcmask 261120
          %2435 = vst.msk [vmem:[%s438] sm:$0xff] %vm2434, %v2433
        $region64: #{self_attention_forward.1} parent=55 // pred_fallthru
          _
        %s2436 = sand.u32 %s271, 1
        %s2437 = scalar_lea.sflag [#allocation7], %s2436
        %s2438 = sand.u32 %s271, 1
        %s2439 = smul.addr %s2438, 8
        %s2440 = scalar_lea.vmem [#allocation6], %s2439
        // Predicated region
        $region65: #{self_attention_forward.1} parent=55 // pred_check
          %p2441 = pneg %p281
        $region66: #{self_attention_forward.1} parent=55 // pred_check_branch
          %2443 = sbr.rel (%p2441) target = $region68
        $region67: #{self_attention_forward.1} parent=55 // pred_region
          %s2445 = ssub.s32 128, 128
          %2446 = vsyncadd %s2437, %s2445
          %s2447 = sadd.s32 %s29, %s28
          %s2448 = smul.addr %s2447, 128
          %s2449 = scalar_lea.hbm %s9, %s2448
          %s2451 = sshll.u32 %s2440, 4
          %s2452 = int_to_ptr.vmem [resolvable:$true] %s2451
          %2454 = dma.vmem_to_hbm [thread:$0]  %s2452, 128, %s2449, %s2437
        $region68: #{self_attention_forward.1} parent=55 // pred_fallthru
          _
      $region56: #{self_attention_forward.1} parent=5 // pred_fallthru
        _
      %p2455 = scmp.le.s32.totalorder 2, %s18
      // Predicated region
      $region69: #{self_attention_forward.1} parent=5 // pred_check
        %p2456 = pneg %p2455
      $region70: #{self_attention_forward.1} parent=5 // pred_check_branch
        %2458 = sbr.rel (%p2456) target = $region72
      $region71: #{self_attention_forward.1} parent=5 // pred_region
        %s2459 = ssub.s32 %s18, 2
        // Predicated region
        $region73: #{self_attention_forward.1} parent=71 // pred_check
          %p2460 = pneg %p287
        $region74: #{self_attention_forward.1} parent=71 // pred_check_branch
          %2462 = sbr.rel (%p2460) target = $region76
        $region75: #{self_attention_forward.1} parent=71 // pred_region
          %s2463 = sand.u32 %s272, 1
          %s2464 = scalar_lea.sflag [#allocation7], %s2463
          %s2465 = sand.u32 %s272, 1
          %s2466 = smul.addr %s2465, 8
          %s2467 = scalar_lea.vmem [#allocation6], %s2466
          %2468 = dma.done %s2464, 128
        $region76: #{self_attention_forward.1} parent=71 // pred_fallthru
          _
      $region72: #{self_attention_forward.1} parent=5 // pred_fallthru
        _
    $region6: #{self_attention_forward.1} parent=1 // loop_footer
      %s22 = sadd.s32 1, %s18
    $region7: #{self_attention_forward.1} parent=1 // loop_footer_branch
      %17 = sbr.rel target = $region3
    $region8: #{self_attention_forward.1} parent=1 // loop_exit
      _
    %2469 = vsyncpa [#allocation7], 1
    %s2470 = scalar_lea.sflag [#allocation7], 1
    %2471 = vsyncpa %s2470, 1

</llo_original>
